<compile_context>
chip_gen: v5e
topology: v5e:2x2
jax: 0.10.0
libtpu: 0.0.40
codegen_flags: <defaults>
</compile_context>

<pallas_src>
import functools
import math

import jax
import jax.numpy as jnp
import numpy as np
from jax.experimental import pallas as pl
from jax.experimental.pallas import tpu as pltpu


_VMEM_LIMIT_BYTES = 32 * 1024 * 1024

# Column (W-axis) offset of the valid region inside the padded VMEM scratch.
# 16 keeps the interior store aligned to the packed-bf16 sublane tile (16x128).
_COL0 = 16


# ----------------------------------------------------------------------------
# In-kernel helpers
# ----------------------------------------------------------------------------
def _lip_swish(x):
    # x * sigmoid(x) / 1.1
    return x * (1.0 / (1.0 + jnp.exp(-x))) * (1.0 / 1.1)


def _pad_scratch_shape(H, W, C):
    # rows: 1-px halo top/bottom; cols: valid region at [_COL0, _COL0+W) with a
    # 1-px zero halo on each side (taps read cols [_COL0-1, _COL0+W]).
    return (H + 2, W + _COL0 + 1, C)


def _fill_padded(pad_ref, x_bf16, H, W):
    """Zero the scratch, then write the activation at the aligned offset."""
    pad_ref[...] = jnp.zeros(pad_ref.shape, jnp.bfloat16)
    pad_ref[1:H + 1, _COL0:_COL0 + W, :] = x_bf16


def _conv3x3(pad_ref, w_ref, b_row, H, W, Cin, Cout):
    """3x3 'same' conv: shifted bf16 x bf16 MXU matmuls with f32 accumulation.

    pad_ref : (H+2, W+_COL0+1, Cin) bf16 VMEM scratch (zero halo already set)
    w_ref   : (9, Cin, Cout) bf16
    b_row   : (1, Cout) f32
    returns : (H*W, Cout) f32
    """
    xp = pad_ref[...]
    acc = jnp.zeros((H * W, Cout), jnp.float32)
    for kh in range(3):
        if H == 1 and kh != 1:
            continue                       # tap would read only the zero halo
        for kw in range(3):
            if W == 1 and kw != 1:
                continue
            tap = xp[kh:kh + H, _COL0 - 1 + kw:_COL0 - 1 + kw + W, :]
            acc = acc + jnp.dot(tap.reshape(H * W, Cin),
                                w_ref[kh * 3 + kw],
                                preferred_element_type=jnp.float32)
    return acc + b_row


# ----------------------------------------------------------------------------
# Pallas kernels
# ----------------------------------------------------------------------------
def _stem_kernel(x_ref, w_ref, b_ref, o_ref, pad_ref, *, H, W, Cin, Cout):
    # conv1 (3x3, pad 1) + Lip_swish, fused.
    _fill_padded(pad_ref, x_ref[...].astype(jnp.bfloat16), H, W)
    y = _lip_swish(_conv3x3(pad_ref, w_ref, b_ref[...], H, W, Cin, Cout))
    o_ref[...] = y.reshape(H, W, Cout).astype(o_ref.dtype)


def _resblock_kernel(*refs, H, W, Cin, Cout, downsample, has_skip, reduce_out):
    if has_skip:
        (x_ref, w1_ref, b1_ref, w2_ref, b2_ref, wskip_ref,
         o_ref, pad1_ref, pad2_ref) = refs
    else:
        (x_ref, w1_ref, b1_ref, w2_ref, b2_ref,
         o_ref, pad1_ref, pad2_ref) = refs
        wskip_ref = None

    x = x_ref[...]                           # (H, W, Cin) f32
    xb = x.astype(jnp.bfloat16)

    # conv1 + Lip_swish   (f32 accumulate, bf16 MXU inputs)
    _fill_padded(pad1_ref, xb, H, W)
    h = _lip_swish(_conv3x3(pad1_ref, w1_ref, b1_ref[...], H, W, Cin, Cout))

    # conv2
    _fill_padded(pad2_ref, h.astype(jnp.bfloat16).reshape(H, W, Cout), H, W)
    y = _conv3x3(pad2_ref, w2_ref, b2_ref[...], H, W, Cout, Cout)

    # skip path (1x1 conv, no bias) or identity
    if has_skip:
        skip = jnp.dot(xb.reshape(H * W, Cin), wskip_ref[...],
                       preferred_element_type=jnp.float32)
    else:
        skip = x.reshape(H * W, Cin)         # Cin == Cout in this case

    z = (y + skip).reshape(H, W, Cout)

    if downsample:                           # fused 2x2 average pool
        z = z.reshape(H // 2, 2, W, Cout)
        z = z[:, 0] + z[:, 1]
        z = z.reshape(H // 2, W // 2, 2, Cout)
        z = (z[:, :, 0] + z[:, :, 1]) * 0.25

    z = _lip_swish(z)

    if reduce_out:
        # Fused head reduction: global spatial sum -> lane-dense (1, Cout).
        Ho, Wo = z.shape[0], z.shape[1]
        o_ref[...] = z.reshape(Ho * Wo, Cout).sum(
            axis=0, keepdims=True).astype(o_ref.dtype)
    else:
        o_ref[...] = z.astype(o_ref.dtype)


# ----------------------------------------------------------------------------
# Pallas wrappers
# ----------------------------------------------------------------------------
def _conv_w_prep(w):
    """(K, K, Cin, Cout) f32 -> (K*K, Cin, Cout) bf16 for the MXU."""
    K, _, Cin, Cout = w.shape
    return w.reshape(K * K, Cin, Cout).astype(jnp.bfloat16)


def _compiler_params():
    return pltpu.CompilerParams(
        dimension_semantics=("parallel",),
        vmem_limit_bytes=_VMEM_LIMIT_BYTES)


def stem_conv(x, w, b):
    """x: (N, H, W, Cin) f32; w: (3, 3, Cin, Cout); b: (Cout,)."""
    N, H, W, Cin = x.shape
    Cout = w.shape[-1]
    kern = functools.partial(_stem_kernel, H=H, W=W, Cin=Cin, Cout=Cout)
    return pl.pallas_call(
        kern,
        out_shape=jax.ShapeDtypeStruct((N, H, W, Cout), x.dtype),
        grid_spec=pltpu.PrefetchScalarGridSpec(
            num_scalar_prefetch=0,
            grid=(N,),
            in_specs=[
                pl.BlockSpec((None, H, W, Cin), lambda n: (n, 0, 0, 0)),
                pl.BlockSpec((9, Cin, Cout), lambda n: (0, 0, 0)),
                pl.BlockSpec((1, Cout), lambda n: (0, 0)),
            ],
            out_specs=pl.BlockSpec((None, H, W, Cout), lambda n: (n, 0, 0, 0)),
            scratch_shapes=[
                pltpu.VMEM(_pad_scratch_shape(H, W, Cin), jnp.bfloat16),
            ],
        ),
        compiler_params=_compiler_params(),
    )(x, _conv_w_prep(w), b.reshape(1, Cout))


def resblock(x, bp, *, downsample, reduce_out):
    """One fused ResBlock (conv1+swish, conv2, skip, add, pool, swish)."""
    N, H, W, Cin = x.shape
    Cout = bp["c1_w"].shape[-1]
    has_skip = "skip_w" in bp
    Ho, Wo = (H // 2, W // 2) if downsample else (H, W)

    kern = functools.partial(
        _resblock_kernel, H=H, W=W, Cin=Cin, Cout=Cout,
        downsample=downsample, has_skip=has_skip, reduce_out=reduce_out)

    in_specs = [
        pl.BlockSpec((None, H, W, Cin), lambda n: (n, 0, 0, 0)),
        pl.BlockSpec((9, Cin, Cout), lambda n: (0, 0, 0)),
        pl.BlockSpec((1, Cout), lambda n: (0, 0)),
        pl.BlockSpec((9, Cout, Cout), lambda n: (0, 0, 0)),
        pl.BlockSpec((1, Cout), lambda n: (0, 0)),
    ]
    args = [x,
            _conv_w_prep(bp["c1_w"]), bp["c1_b"].reshape(1, Cout),
            _conv_w_prep(bp["c2_w"]), bp["c2_b"].reshape(1, Cout)]
    if has_skip:
        in_specs.append(pl.BlockSpec((Cin, Cout), lambda n: (0, 0)))
        args.append(bp["skip_w"].reshape(Cin, Cout).astype(jnp.bfloat16))

    if reduce_out:
        out_shape = jax.ShapeDtypeStruct((N, Cout), jnp.float32)
        out_spec = pl.BlockSpec((1, Cout), lambda n: (n, 0))
    else:
        out_shape = jax.ShapeDtypeStruct((N, Ho, Wo, Cout), x.dtype)
        out_spec = pl.BlockSpec((None, Ho, Wo, Cout), lambda n: (n, 0, 0, 0))

    return pl.pallas_call(
        kern,
        out_shape=out_shape,
        grid_spec=pltpu.PrefetchScalarGridSpec(
            num_scalar_prefetch=0,
            grid=(N,),
            in_specs=in_specs,
            out_specs=out_spec,
            scratch_shapes=[
                pltpu.VMEM(_pad_scratch_shape(H, W, Cin), jnp.bfloat16),
                pltpu.VMEM(_pad_scratch_shape(H, W, Cout), jnp.bfloat16),
            ],
        ),
        compiler_params=_compiler_params(),
    )(*args)


# ----------------------------------------------------------------------------
# Model: config, parameter init, forward
# ----------------------------------------------------------------------------
def block_config(mid):
    m = mid
    return [
        (m, m, True), (m, m, False),
        (m, 2 * m, True), (2 * m, 2 * m, False), (2 * m, 2 * m, False),
        (2 * m, 2 * m, True), (2 * m, 4 * m, False), (4 * m, 4 * m, False),
        (4 * m, 4 * m, True), (4 * m, 4 * m, False),
    ]


def init_params(key, nc=3, mid=16):
    def conv_w(k, K, cin, cout):
        std = 1.5 / math.sqrt(K * K * cin)
        return jax.random.normal(k, (K, K, cin, cout), jnp.float32) * std

    keys = iter(jax.random.split(key, 64))
    params = {
        "conv1_w": conv_w(next(keys), 3, nc, mid),
        "conv1_b": 0.1 * jax.random.normal(next(keys), (mid,), jnp.float32),
        "blocks": [],
    }
    for (cin, cout, down) in block_config(mid):
        bp = {
            "c1_w": conv_w(next(keys), 3, cin, cout),
            "c1_b": 0.1 * jax.random.normal(next(keys), (cout,), jnp.float32),
            "c2_w": conv_w(next(keys), 3, cout, cout),
            "c2_b": 0.1 * jax.random.normal(next(keys), (cout,), jnp.float32),
        }
        if cin != cout or down:
            bp["skip_w"] = conv_w(next(keys), 1, cin, cout)
        params["blocks"].append(bp)
    C = 4 * mid
    params["lin_w"] = (jax.random.normal(next(keys), (C, 1), jnp.float32)
                       / math.sqrt(C))
    params["lin_b"] = 0.1 * jax.random.normal(next(keys), (1,), jnp.float32)
    return params


def ebm_forward(params, x_nhwc, mid):
    out = stem_conv(x_nhwc, params["conv1_w"], params["conv1_b"])
    cfg = block_config(mid)
    for i, (bp, (_, _, down)) in enumerate(zip(params["blocks"], cfg)):
        out = resblock(out, bp, downsample=down,
                       reduce_out=(i == len(cfg) - 1))
    # out: (N, 4*mid) spatially-summed features (reduction fused in-kernel).
    # The final (N,C)x(C,1) linear is tiny and lane-degenerate -> plain JAX.
    y = out @ params["lin_w"] + params["lin_b"]
    return y[:, 0]


# ----------------------------------------------------------------------------
# Pure-JAX reference (mirrors the kernel's bf16 MXU inputs / f32 accumulation)
# ----------------------------------------------------------------------------
def _ref_lip(x):
    return x * (1.0 / (1.0 + jnp.exp(-x))) * (1.0 / 1.1)


def _ref_conv(x, w, b, K):
    pad = (K - 1) // 2
    y = jax.lax.conv_general_dilated(
        x.astype(jnp.bfloat16), w.astype(jnp.bfloat16),
        window_strides=(1, 1), padding=[(pad, pad), (pad, pad)],
        dimension_numbers=("NHWC", "HWIO", "NHWC"),
        preferred_element_type=jnp.float32)
    if b is not None:
        y = y + b
    return y


def ref_forward(params, x_nhwc, mid):
    out = _ref_lip(_ref_conv(x_nhwc, params["conv1_w"], params["conv1_b"], 3))
    for bp, (_, _, down) in zip(params["blocks"], block_config(mid)):
        h = _ref_lip(_ref_conv(out, bp["c1_w"], bp["c1_b"], 3))
        h = _ref_conv(h, bp["c2_w"], bp["c2_b"], 3)
        skip = (_ref_conv(out, bp["skip_w"], None, 1)
                if "skip_w" in bp else out)
        z = h + skip
        if down:
            N, H, W, C = z.shape
            z = z.reshape(N, H // 2, 2, W // 2, 2, C).mean(axis=(2, 4))
        out = _ref_lip(z)
    feat = out.reshape(out.shape[0], -1, out.shape[-1]).sum(axis=1)  # (N, C)
    y = feat @ params["lin_w"] + params["lin_b"]
    return y[:, 0]


# ----------------------------------------------------------------------------
# Main
# ----------------------------------------------------------------------------
if __name__ == "__main__":
    # Small shapes; the full model is nc=3, mid=64, 64x64 input.
    N, nc, mid, S = 2, 3, 16, 16
    key = jax.random.PRNGKey(0)
    pkey, xkey = jax.random.split(key)
    params = init_params(pkey, nc=nc, mid=mid)

    # PyTorch-style NCHW input; transpose once to the kernel layout NHWC.
    x_nchw = jax.random.normal(xkey, (N, nc, S, S), jnp.float32)
    x_nhwc = jnp.transpose(x_nchw, (0, 2, 3, 1))

    out = jax.block_until_ready(ebm_forward(params, x_nhwc, mid))

    ref = ref_forward(params, x_nhwc, mid)
    np.testing.assert_allclose(np.asarray(out), np.asarray(ref),
                               rtol=2e-2, atol=1e-3)
    print("KERNEL_OK")
</pallas_src>

<mosaic_0001>
module attributes {stable_mosaic.version = 11 : i64} {
  func.func @_stem_kernel(%arg0: i32, %arg1: memref<1x16x16x3xf32, #tpu.memory_space<vmem>>, %arg2: memref<9x3x16xbf16, #tpu.memory_space<vmem>>, %arg3: memref<1x16xf32, #tpu.memory_space<vmem>>, %arg4: memref<1x16x16x16xf32, #tpu.memory_space<vmem>>, %arg5: memref<18x33x3xbf16, #tpu.memory_space<vmem>>) attributes {dimension_semantics = [#tpu.dimension_semantics<parallel>], iteration_bounds = array<i64: 2>, scalar_prefetch = 0 : i64, scratch_operands = 1 : i64, tpu.core_type = #tpu.core_type<tc>, window_params = [{transform_indices = @transform_0, window_bounds = array<i64: 1, 16, 16, 3>}, {pipeline_mode = #tpu.pipeline_mode<synchronous>, transform_indices = @transform_1, window_bounds = array<i64: 9, 3, 16>}, {pipeline_mode = #tpu.pipeline_mode<synchronous>, transform_indices = @transform_2, window_bounds = array<i64: 1, 16>}, {transform_indices = @transform_3, window_bounds = array<i64: 1, 16, 16, 16>}]} {
    %c0 = arith.constant 0 : index
    %c0_0 = arith.constant 0 : index
    %c0_1 = arith.constant 0 : index
    %c0_2 = arith.constant 0 : index
    %0 = vector.load %arg1[%c0, %c0_0, %c0_1, %c0_2] : memref<1x16x16x3xf32, #tpu.memory_space<vmem>>, vector<1x16x16x3xf32>
    %1 = vector.shape_cast %0 : vector<1x16x16x3xf32> to vector<16x16x3xf32>
    %2 = arith.truncf %1 : vector<16x16x3xf32> to vector<16x16x3xbf16>
    %cst = arith.constant 0.000000e+00 : bf16
    %3 = vector.broadcast %cst : bf16 to vector<18x33x3xbf16>
    %c0_3 = arith.constant 0 : index
    %c0_4 = arith.constant 0 : index
    %c0_5 = arith.constant 0 : index
    %4 = vector.load %arg5[%c0_3, %c0_4, %c0_5] : memref<18x33x3xbf16, #tpu.memory_space<vmem>>, vector<18x33x3xbf16>
    tpu.vector_store %arg5[%c0_3, %c0_4, %c0_5], %3 {strides = array<i32>} : memref<18x33x3xbf16, #tpu.memory_space<vmem>>, vector<18x33x3xbf16>,
    %c1 = arith.constant 1 : index
    %c16 = arith.constant 16 : index
    %c0_6 = arith.constant 0 : index
    %5 = vector.load %arg5[%c1, %c16, %c0_6] : memref<18x33x3xbf16, #tpu.memory_space<vmem>>, vector<16x16x3xbf16>
    tpu.vector_store %arg5[%c1, %c16, %c0_6], %2 {strides = array<i32>} : memref<18x33x3xbf16, #tpu.memory_space<vmem>>, vector<16x16x3xbf16>,
    %c0_7 = arith.constant 0 : index
    %c0_8 = arith.constant 0 : index
    %6 = vector.load %arg3[%c0_7, %c0_8] : memref<1x16xf32, #tpu.memory_space<vmem>>, vector<1x16xf32>
    %c0_9 = arith.constant 0 : index
    %c0_10 = arith.constant 0 : index
    %c0_11 = arith.constant 0 : index
    %7 = vector.load %arg5[%c0_9, %c0_10, %c0_11] : memref<18x33x3xbf16, #tpu.memory_space<vmem>>, vector<18x33x3xbf16>
    %cst_12 = arith.constant 0.000000e+00 : f32
    %8 = vector.broadcast %cst_12 : f32 to vector<256x16xf32>
    %9 = vector.extract_strided_slice %7 {offsets = [0, 15, 0], sizes = [16, 16, 3], strides = [1, 1, 1]} : vector<18x33x3xbf16> to vector<16x16x3xbf16>
    %10 = vector.shape_cast %9 : vector<16x16x3xbf16> to vector<256x3xbf16>
    %c0_13 = arith.constant 0 : index
    %c0_14 = arith.constant 0 : index
    %c0_15 = arith.constant 0 : index
    %11 = vector.load %arg2[%c0_13, %c0_14, %c0_15] : memref<9x3x16xbf16, #tpu.memory_space<vmem>>, vector<1x3x16xbf16>
    %12 = vector.shape_cast %11 : vector<1x3x16xbf16> to vector<3x16xbf16>
    %cst_16 = arith.constant dense<0.000000e+00> : vector<256x16xf32>
    %13 = tpu.matmul %10, %12, %cst_16 {dimension_numbers = #tpu.dot_dimension_numbers<[1], [0], [0], [1], [0, 0, 1, 1], [], []>} : vector<256x3xbf16>, vector<3x16xbf16>, vector<256x16xf32> -> vector<256x16xf32>
    %14 = arith.addf %8, %13 : vector<256x16xf32>
    %15 = vector.extract_strided_slice %7 {offsets = [0, 16, 0], sizes = [16, 16, 3], strides = [1, 1, 1]} : vector<18x33x3xbf16> to vector<16x16x3xbf16>
    %16 = vector.shape_cast %15 : vector<16x16x3xbf16> to vector<256x3xbf16>
    %c1_17 = arith.constant 1 : index
    %c0_18 = arith.constant 0 : index
    %c0_19 = arith.constant 0 : index
    %17 = vector.load %arg2[%c1_17, %c0_18, %c0_19] : memref<9x3x16xbf16, #tpu.memory_space<vmem>>, vector<1x3x16xbf16>
    %18 = vector.shape_cast %17 : vector<1x3x16xbf16> to vector<3x16xbf16>
    %cst_20 = arith.constant dense<0.000000e+00> : vector<256x16xf32>
    %19 = tpu.matmul %16, %18, %cst_20 {dimension_numbers = #tpu.dot_dimension_numbers<[1], [0], [0], [1], [0, 0, 1, 1], [], []>} : vector<256x3xbf16>, vector<3x16xbf16>, vector<256x16xf32> -> vector<256x16xf32>
    %20 = arith.addf %14, %19 : vector<256x16xf32>
    %21 = vector.extract_strided_slice %7 {offsets = [0, 17, 0], sizes = [16, 16, 3], strides = [1, 1, 1]} : vector<18x33x3xbf16> to vector<16x16x3xbf16>
    %22 = vector.shape_cast %21 : vector<16x16x3xbf16> to vector<256x3xbf16>
    %c2 = arith.constant 2 : index
    %c0_21 = arith.constant 0 : index
    %c0_22 = arith.constant 0 : index
    %23 = vector.load %arg2[%c2, %c0_21, %c0_22] : memref<9x3x16xbf16, #tpu.memory_space<vmem>>, vector<1x3x16xbf16>
    %24 = vector.shape_cast %23 : vector<1x3x16xbf16> to vector<3x16xbf16>
    %cst_23 = arith.constant dense<0.000000e+00> : vector<256x16xf32>
    %25 = tpu.matmul %22, %24, %cst_23 {dimension_numbers = #tpu.dot_dimension_numbers<[1], [0], [0], [1], [0, 0, 1, 1], [], []>} : vector<256x3xbf16>, vector<3x16xbf16>, vector<256x16xf32> -> vector<256x16xf32>
    %26 = arith.addf %20, %25 : vector<256x16xf32>
    %27 = vector.extract_strided_slice %7 {offsets = [1, 15, 0], sizes = [16, 16, 3], strides = [1, 1, 1]} : vector<18x33x3xbf16> to vector<16x16x3xbf16>
    %28 = vector.shape_cast %27 : vector<16x16x3xbf16> to vector<256x3xbf16>
    %c3 = arith.constant 3 : index
    %c0_24 = arith.constant 0 : index
    %c0_25 = arith.constant 0 : index
    %29 = vector.load %arg2[%c3, %c0_24, %c0_25] : memref<9x3x16xbf16, #tpu.memory_space<vmem>>, vector<1x3x16xbf16>
    %30 = vector.shape_cast %29 : vector<1x3x16xbf16> to vector<3x16xbf16>
    %cst_26 = arith.constant dense<0.000000e+00> : vector<256x16xf32>
    %31 = tpu.matmul %28, %30, %cst_26 {dimension_numbers = #tpu.dot_dimension_numbers<[1], [0], [0], [1], [0, 0, 1, 1], [], []>} : vector<256x3xbf16>, vector<3x16xbf16>, vector<256x16xf32> -> vector<256x16xf32>
    %32 = arith.addf %26, %31 : vector<256x16xf32>
    %33 = vector.extract_strided_slice %7 {offsets = [1, 16, 0], sizes = [16, 16, 3], strides = [1, 1, 1]} : vector<18x33x3xbf16> to vector<16x16x3xbf16>
    %34 = vector.shape_cast %33 : vector<16x16x3xbf16> to vector<256x3xbf16>
    %c4 = arith.constant 4 : index
    %c0_27 = arith.constant 0 : index
    %c0_28 = arith.constant 0 : index
    %35 = vector.load %arg2[%c4, %c0_27, %c0_28] : memref<9x3x16xbf16, #tpu.memory_space<vmem>>, vector<1x3x16xbf16>
    %36 = vector.shape_cast %35 : vector<1x3x16xbf16> to vector<3x16xbf16>
    %cst_29 = arith.constant dense<0.000000e+00> : vector<256x16xf32>
    %37 = tpu.matmul %34, %36, %cst_29 {dimension_numbers = #tpu.dot_dimension_numbers<[1], [0], [0], [1], [0, 0, 1, 1], [], []>} : vector<256x3xbf16>, vector<3x16xbf16>, vector<256x16xf32> -> vector<256x16xf32>
    %38 = arith.addf %32, %37 : vector<256x16xf32>
    %39 = vector.extract_strided_slice %7 {offsets = [1, 17, 0], sizes = [16, 16, 3], strides = [1, 1, 1]} : vector<18x33x3xbf16> to vector<16x16x3xbf16>
    %40 = vector.shape_cast %39 : vector<16x16x3xbf16> to vector<256x3xbf16>
    %c5 = arith.constant 5 : index
    %c0_30 = arith.constant 0 : index
    %c0_31 = arith.constant 0 : index
    %41 = vector.load %arg2[%c5, %c0_30, %c0_31] : memref<9x3x16xbf16, #tpu.memory_space<vmem>>, vector<1x3x16xbf16>
    %42 = vector.shape_cast %41 : vector<1x3x16xbf16> to vector<3x16xbf16>
    %cst_32 = arith.constant dense<0.000000e+00> : vector<256x16xf32>
    %43 = tpu.matmul %40, %42, %cst_32 {dimension_numbers = #tpu.dot_dimension_numbers<[1], [0], [0], [1], [0, 0, 1, 1], [], []>} : vector<256x3xbf16>, vector<3x16xbf16>, vector<256x16xf32> -> vector<256x16xf32>
    %44 = arith.addf %38, %43 : vector<256x16xf32>
    %45 = vector.extract_strided_slice %7 {offsets = [2, 15, 0], sizes = [16, 16, 3], strides = [1, 1, 1]} : vector<18x33x3xbf16> to vector<16x16x3xbf16>
    %46 = vector.shape_cast %45 : vector<16x16x3xbf16> to vector<256x3xbf16>
    %c6 = arith.constant 6 : index
    %c0_33 = arith.constant 0 : index
    %c0_34 = arith.constant 0 : index
    %47 = vector.load %arg2[%c6, %c0_33, %c0_34] : memref<9x3x16xbf16, #tpu.memory_space<vmem>>, vector<1x3x16xbf16>
    %48 = vector.shape_cast %47 : vector<1x3x16xbf16> to vector<3x16xbf16>
    %cst_35 = arith.constant dense<0.000000e+00> : vector<256x16xf32>
    %49 = tpu.matmul %46, %48, %cst_35 {dimension_numbers = #tpu.dot_dimension_numbers<[1], [0], [0], [1], [0, 0, 1, 1], [], []>} : vector<256x3xbf16>, vector<3x16xbf16>, vector<256x16xf32> -> vector<256x16xf32>
    %50 = arith.addf %44, %49 : vector<256x16xf32>
    %51 = vector.extract_strided_slice %7 {offsets = [2, 16, 0], sizes = [16, 16, 3], strides = [1, 1, 1]} : vector<18x33x3xbf16> to vector<16x16x3xbf16>
    %52 = vector.shape_cast %51 : vector<16x16x3xbf16> to vector<256x3xbf16>
    %c7 = arith.constant 7 : index
    %c0_36 = arith.constant 0 : index
    %c0_37 = arith.constant 0 : index
    %53 = vector.load %arg2[%c7, %c0_36, %c0_37] : memref<9x3x16xbf16, #tpu.memory_space<vmem>>, vector<1x3x16xbf16>
    %54 = vector.shape_cast %53 : vector<1x3x16xbf16> to vector<3x16xbf16>
    %cst_38 = arith.constant dense<0.000000e+00> : vector<256x16xf32>
    %55 = tpu.matmul %52, %54, %cst_38 {dimension_numbers = #tpu.dot_dimension_numbers<[1], [0], [0], [1], [0, 0, 1, 1], [], []>} : vector<256x3xbf16>, vector<3x16xbf16>, vector<256x16xf32> -> vector<256x16xf32>
    %56 = arith.addf %50, %55 : vector<256x16xf32>
    %57 = vector.extract_strided_slice %7 {offsets = [2, 17, 0], sizes = [16, 16, 3], strides = [1, 1, 1]} : vector<18x33x3xbf16> to vector<16x16x3xbf16>
    %58 = vector.shape_cast %57 : vector<16x16x3xbf16> to vector<256x3xbf16>
    %c8 = arith.constant 8 : index
    %c0_39 = arith.constant 0 : index
    %c0_40 = arith.constant 0 : index
    %59 = vector.load %arg2[%c8, %c0_39, %c0_40] : memref<9x3x16xbf16, #tpu.memory_space<vmem>>, vector<1x3x16xbf16>
    %60 = vector.shape_cast %59 : vector<1x3x16xbf16> to vector<3x16xbf16>
    %cst_41 = arith.constant dense<0.000000e+00> : vector<256x16xf32>
    %61 = tpu.matmul %58, %60, %cst_41 {dimension_numbers = #tpu.dot_dimension_numbers<[1], [0], [0], [1], [0, 0, 1, 1], [], []>} : vector<256x3xbf16>, vector<3x16xbf16>, vector<256x16xf32> -> vector<256x16xf32>
    %62 = arith.addf %56, %61 : vector<256x16xf32>
    %63 = vector.broadcast %6 : vector<1x16xf32> to vector<256x16xf32>
    %64 = arith.addf %62, %63 : vector<256x16xf32>
    %cst_42 = arith.constant 0.000000e+00 : f32
    %65 = vector.broadcast %cst_42 : f32 to vector<256x16xf32>
    %66 = arith.subf %65, %64 : vector<256x16xf32>
    %67 = math.exp %66 : vector<256x16xf32>
    %cst_43 = arith.constant 1.000000e+00 : f32
    %68 = vector.broadcast %cst_43 : f32 to vector<256x16xf32>
    %69 = arith.addf %68, %67 : vector<256x16xf32>
    %cst_44 = arith.constant 1.000000e+00 : f32
    %70 = vector.broadcast %cst_44 : f32 to vector<256x16xf32>
    %71 = arith.divf %70, %69 : vector<256x16xf32>
    %72 = arith.mulf %64, %71 : vector<256x16xf32>
    %cst_45 = arith.constant 0.909090936 : f32
    %73 = vector.broadcast %cst_45 : f32 to vector<256x16xf32>
    %74 = arith.mulf %72, %73 : vector<256x16xf32>
    %75 = vector.shape_cast %74 : vector<256x16xf32> to vector<16x16x16xf32>
    %c0_46 = arith.constant 0 : index
    %c0_47 = arith.constant 0 : index
    %c0_48 = arith.constant 0 : index
    %c0_49 = arith.constant 0 : index
    %76 = vector.load %arg4[%c0_46, %c0_47, %c0_48, %c0_49] : memref<1x16x16x16xf32, #tpu.memory_space<vmem>>, vector<1x16x16x16xf32>
    %77 = vector.shape_cast %76 : vector<1x16x16x16xf32> to vector<16x16x16xf32>
    %78 = vector.shape_cast %75 : vector<16x16x16xf32> to vector<1x16x16x16xf32>
    tpu.vector_store %arg4[%c0_46, %c0_47, %c0_48, %c0_49], %78 {strides = array<i32>} : memref<1x16x16x16xf32, #tpu.memory_space<vmem>>, vector<1x16x16x16xf32>,
    return
  }
  func.func @transform_0(%arg0: i32) -> (i32, i32, i32, i32) {
    %c0_i32 = arith.constant 0 : i32
    %c0_i32_0 = arith.constant 0 : i32
    %c0_i32_1 = arith.constant 0 : i32
    %c0_i32_2 = arith.constant 0 : i32
    return %arg0, %c0_i32, %c0_i32_0, %c0_i32_1 : i32, i32, i32, i32
  }
  func.func @transform_1(%arg0: i32) -> (i32, i32, i32) {
    %c0_i32 = arith.constant 0 : i32
    %c0_i32_0 = arith.constant 0 : i32
    %c0_i32_1 = arith.constant 0 : i32
    %c0_i32_2 = arith.constant 0 : i32
    return %c0_i32, %c0_i32_0, %c0_i32_1 : i32, i32, i32
  }
  func.func @transform_2(%arg0: i32) -> (i32, i32) {
    %c0_i32 = arith.constant 0 : i32
    %c0_i32_0 = arith.constant 0 : i32
    %c0_i32_1 = arith.constant 0 : i32
    return %c0_i32, %c0_i32_0 : i32, i32
  }
  func.func @transform_3(%arg0: i32) -> (i32, i32, i32, i32) {
    %c0_i32 = arith.constant 0 : i32
    %c0_i32_0 = arith.constant 0 : i32
    %c0_i32_1 = arith.constant 0 : i32
    %c0_i32_2 = arith.constant 0 : i32
    return %arg0, %c0_i32, %c0_i32_0, %c0_i32_1 : i32, i32, i32, i32
  }
}

</mosaic_0001>

<llo_original>
// kernel: tpu_custom_call.1
$region0: #{tpu_custom_call.1}
  #allocation0 [shape = 'u32[]', space=smem, size = 0x4, offset = 0x4, fixed_abs, tag = 'smem constant byte address 0x4 - core index']
  #allocation1 [shape = 'u32[72,128]{1,0:T(1,128)}', space=vmem, size = 0x9000, scoped, tag = 'internal scratch']
  #allocation2 [shape = 'bf16[18,33,3]{2,1,0:T(8,128)(2,1)}', space=vmem, size = 0x2d000, scoped, tag = 'scratch operand']
  %s0 = inlined_call_operand.vmem [shape: f32[2,16,16,3], index: 0, kind: input, shape index: {}]
  %s1 = inlined_call_operand.vmem [shape: bf16[9,3,16], index: 1, kind: input, shape index: {}]
  %s2 = inlined_call_operand.vmem [shape: f32[1,16], index: 2, kind: input, shape index: {}]
  %s3 = inlined_call_operand.hbm [shape: f32[2,16,16,16], index: 3, kind: output, shape index: {}]
  %s4 = sld [smem:[#allocation0]]
  $region45: #{tpu_custom_call.1} parent=0
    _
  %s6 = ssub.s32 1, %s4
  %s7 = scalar_select 0, %s6, %s4
  $region1: #{tpu_custom_call.1} parent=0
    #allocation3 [shape = 'u8[262144]{0}', space=vmem, size = 0x40000, scoped, tag = 'output window, operand 0']
    #allocation4 [shape = 's32[2]{0}', space=sflag, size = 0x8, scoped, tag = 'scoped memory for tpu_custom_call.1']
    %8 = vsyncpa [#allocation4], 0
    %s9 = scalar_lea.sflag [#allocation4], 1
    %10 = vsyncpa %s9, 0
    loop: start=0, step=1, limit=4
    $region2: #{tpu_custom_call.1} parent=1 // loop_pre_header
      _
    $region3: #{tpu_custom_call.1} parent=1 // loop_header
      %s12 = sphi 0, %s16
      %p13 = scmp.ge.s32.totalorder %s12, 4
      %s22 = sphi 0, %s24
      %s25 = sphi 0, %s22
      %s26 = sphi 0, %s25
      %s42 = sphi 0, %s26
      %s46 = sphi 0, %s46
      %s48 = sphi 0, %s46
      %s49 = sphi 0, %s48
      %s63 = sphi 0, %s49
      %s67 = sphi 0, %s67
      %s69 = sphi 0, %s67
      %s70 = sphi 0, %s69
      %s84 = sphi 0, %s70
      %s90 = sphi 0, %s92
      %s93 = sphi 0, %s90
      %s94 = sphi 0, %s93
      %s110 = sphi 0, %s94
    $region4: #{tpu_custom_call.1} parent=1 // loop_header_branch
      %15 = sbr.rel (%p13) target = $region8
    $region5: #{tpu_custom_call.1} parent=1 // loop_body
      %s17 = ssub.s32 %s12, 1
      %s18 = ssub.s32 %s12, 2
      %s19 = sadd.s32 %s12, 1
      %s20 = ssub.s32 %s12, %s19
      %p21 = scmp.eq.s32.totalorder %s20, 0
      %s23 = sadd.s32 %s22, 1
      %s24 = scalar_select %p21, %s22, %s23
      %p27 = pneg %p21
      %p28 = scmp.eq.s32.totalorder %s12, 1
      %p29 = por %p27, %p28
      %p30 = scmp.ne.s32.totalorder %s22, %s25
      %p31 = scmp.eq.s32.totalorder %s12, 0
      %p32 = por %p30, %p31
      %p33 = scmp.ne.s32.totalorder %s22, %s25
      %p34 = scmp.eq.s32.totalorder %s17, 1
      %p35 = por %p33, %p34
      %p36 = scmp.ne.s32.totalorder %s25, %s26
      %p37 = scmp.eq.s32.totalorder %s17, 0
      %p38 = por %p36, %p37
      %p39 = scmp.ne.s32.totalorder %s25, %s26
      %p40 = scmp.eq.s32.totalorder %s18, 1
      %p41 = por %p39, %p40
      %p43 = scmp.ne.s32.totalorder %s26, %s42
      %p44 = scmp.eq.s32.totalorder %s18, 0
      %p45 = por %p43, %p44
      %s47 = sadd.s32 %s46, 1
      %p50 = scmp.eq.s32.totalorder %s12, 1
      %p51 = scmp.ne.s32.totalorder %s46, %s48
      %p52 = scmp.eq.s32.totalorder %s12, 0
      %p53 = por %p51, %p52
      %p54 = scmp.ne.s32.totalorder %s46, %s48
      %p55 = scmp.eq.s32.totalorder %s17, 1
      %p56 = por %p54, %p55
      %p57 = scmp.ne.s32.totalorder %s48, %s49
      %p58 = scmp.eq.s32.totalorder %s17, 0
      %p59 = por %p57, %p58
      %p60 = scmp.ne.s32.totalorder %s48, %s49
      %p61 = scmp.eq.s32.totalorder %s18, 1
      %p62 = por %p60, %p61
      %p64 = scmp.ne.s32.totalorder %s49, %s63
      %p65 = scmp.eq.s32.totalorder %s18, 0
      %p66 = por %p64, %p65
      %s68 = sadd.s32 %s67, 1
      %p71 = scmp.eq.s32.totalorder %s12, 1
      %p72 = scmp.ne.s32.totalorder %s67, %s69
      %p73 = scmp.eq.s32.totalorder %s12, 0
      %p74 = por %p72, %p73
      %p75 = scmp.ne.s32.totalorder %s67, %s69
      %p76 = scmp.eq.s32.totalorder %s17, 1
      %p77 = por %p75, %p76
      %p78 = scmp.ne.s32.totalorder %s69, %s70
      %p79 = scmp.eq.s32.totalorder %s17, 0
      %p80 = por %p78, %p79
      %p81 = scmp.ne.s32.totalorder %s69, %s70
      %p82 = scmp.eq.s32.totalorder %s18, 1
      %p83 = por %p81, %p82
      %p85 = scmp.ne.s32.totalorder %s70, %s84
      %p86 = scmp.eq.s32.totalorder %s18, 0
      %p87 = por %p85, %p86
      %s88 = ssub.s32 %s12, %s19
      %p89 = scmp.eq.s32.totalorder %s88, 0
      %s91 = sadd.s32 %s90, 1
      %s92 = scalar_select %p89, %s90, %s91
      %p95 = pneg %p89
      %p96 = scmp.eq.s32.totalorder %s12, 1
      %p97 = por %p95, %p96
      %p98 = scmp.ne.s32.totalorder %s90, %s93
      %p99 = scmp.eq.s32.totalorder %s12, 0
      %p100 = por %p98, %p99
      %p101 = scmp.ne.s32.totalorder %s90, %s93
      %p102 = scmp.eq.s32.totalorder %s17, 1
      %p103 = por %p101, %p102
      %p104 = scmp.ne.s32.totalorder %s93, %s94
      %p105 = scmp.eq.s32.totalorder %s17, 0
      %p106 = por %p104, %p105
      %p107 = scmp.ne.s32.totalorder %s93, %s94
      %p108 = scmp.eq.s32.totalorder %s18, 1
      %p109 = por %p107, %p108
      %p111 = scmp.ne.s32.totalorder %s94, %s110
      %p112 = scmp.eq.s32.totalorder %s18, 0
      %p113 = por %p111, %p112
      %p114 = scmp.le.s32.totalorder 1, %s12
      %p115 = scmp.lt.s32.totalorder %s12, 3
      %p116 = pnand %p114, %p115
      %p117 = pneg %p116
      // Predicated region
      $region9: #{tpu_custom_call.1} parent=5 // pred_check
        _
      $region10: #{tpu_custom_call.1} parent=5 // pred_check_branch
        %119 = sbr.rel (%p116) target = $region12
      $region11: #{tpu_custom_call.1} parent=5 // pred_region
        %s120 = ssub.s32 %s12, 1
        // Predicated region
        $region13: #{tpu_custom_call.1} parent=11 // pred_check
          %p121 = pneg %p59
        $region14: #{tpu_custom_call.1} parent=11 // pred_check_branch
          %123 = sbr.rel (%p121) target = $region16
        $region15: #{tpu_custom_call.1} parent=11 // pred_region
          _
        $region16: #{tpu_custom_call.1} parent=11 // pred_fallthru
          _
        // Predicated region
        $region17: #{tpu_custom_call.1} parent=11 // pred_check
          %p124 = pneg %p80
        $region18: #{tpu_custom_call.1} parent=11 // pred_check_branch
          %126 = sbr.rel (%p124) target = $region20
        $region19: #{tpu_custom_call.1} parent=11 // pred_region
          _
        $region20: #{tpu_custom_call.1} parent=11 // pred_fallthru
          _
      $region12: #{tpu_custom_call.1} parent=5 // pred_fallthru
        _
      %p127 = scmp.lt.s32.totalorder %s12, 2
      // Predicated region
      $region21: #{tpu_custom_call.1} parent=5 // pred_check
        %p128 = pneg %p127
      $region22: #{tpu_custom_call.1} parent=5 // pred_check_branch
        %130 = sbr.rel (%p128) target = $region24
      $region23: #{tpu_custom_call.1} parent=5 // pred_region
        // Predicated region
        $region25: #{tpu_custom_call.1} parent=23 // pred_check
          %p131 = pneg %p32
        $region26: #{tpu_custom_call.1} parent=23 // pred_check_branch
          %133 = sbr.rel (%p131) target = $region28
        $region27: #{tpu_custom_call.1} parent=23 // pred_region
          %p134 = scmp.lt.s32.totalorder %s12, 1
          %s135 = scalar_select %p134, %s12, 1
          %s136 = smul.addr %s135, 32
          %s137 = smul.addr %s136, 8
          %s138 = scalar_lea.vmem %s0, %s137
        $region28: #{tpu_custom_call.1} parent=23 // pred_fallthru
          _
      $region24: #{tpu_custom_call.1} parent=5 // pred_fallthru
        _
      %p139 = scmp.le.s32.totalorder 1, %s12
      %p140 = scmp.lt.s32.totalorder %s12, 3
      %p141 = pnand %p139, %p140
      %p142 = pneg %p141
      // Predicated region
      $region29: #{tpu_custom_call.1} parent=5 // pred_check
        _
      $region30: #{tpu_custom_call.1} parent=5 // pred_check_branch
        %144 = sbr.rel (%p141) target = $region32
      $region31: #{tpu_custom_call.1} parent=5 // pred_region
        %s145 = ssub.s32 %s12, 1
        %p146 = scmp.lt.s32.totalorder %s17, 1
        %s147 = scalar_select %p146, %s17, 1
        %s148 = smul.addr %s147, 32
        %s149 = smul.addr %s148, 8
        %s150 = scalar_lea.vmem %s0, %s149
        %p151 = pneg %p38
        %p152 = pneg %p35
        %p153 = pneg %p59
        %p154 = pneg %p56
        %p155 = pneg %p80
        %p156 = pneg %p77
        %p157 = pneg %p106
        %p158 = pneg %p103
        %s159 = sand.u32 %s93, 1
        %s160 = scalar_lea.sflag [#allocation4], %s159
        %s161 = sand.u32 %s93, 1
        %s162 = smul.addr %s161, 256
        %s163 = scalar_lea.vmem [#allocation3], %s162
        %p164 = scmp.lt.s32.totalorder %s17, 1
        %s165 = scalar_select %p164, %s17, 1
        %s166 = smul.addr %s165, 32
        %s167 = smul.addr %s166, 8
        %s168 = scalar_lea.vmem %s0, %s167
        %v170 = vld [vmem:[%s168] sm:$0xff]
        %v171 = vld [vmem:[%s168 + $0x8] sm:$0xff]
        %v172 = vld [vmem:[%s168 + $0x10] sm:$0xff]
        %v173 = vld [vmem:[%s168 + $0x18] sm:$0xff]
        %v174 = vld [vmem:[%s168 + $0x20] sm:$0xff]
        %v175 = vld [vmem:[%s168 + $0x28] sm:$0xff]
        %v176 = vld [vmem:[%s168 + $0x30] sm:$0xff]
        %v177 = vld [vmem:[%s168 + $0x38] sm:$0xff]
        %v178 = vld [vmem:[%s168 + $0x40] sm:$0xff]
        %v179 = vld [vmem:[%s168 + $0x48] sm:$0xff]
        %v180 = vld [vmem:[%s168 + $0x50] sm:$0xff]
        %v181 = vld [vmem:[%s168 + $0x58] sm:$0xff]
        %v182 = vld [vmem:[%s168 + $0x60] sm:$0xff]
        %v183 = vld [vmem:[%s168 + $0x68] sm:$0xff]
        %v184 = vld [vmem:[%s168 + $0x70] sm:$0xff]
        %v185 = vld [vmem:[%s168 + $0x78] sm:$0xff]
        %v186 = vld [vmem:[%s168 + $0x80] sm:$0xff]
        %v187 = vld [vmem:[%s168 + $0x88] sm:$0xff]
        %v188 = vld [vmem:[%s168 + $0x90] sm:$0xff]
        %v189 = vld [vmem:[%s168 + $0x98] sm:$0xff]
        %v190 = vld [vmem:[%s168 + $0xa0] sm:$0xff]
        %v191 = vld [vmem:[%s168 + $0xa8] sm:$0xff]
        %v192 = vld [vmem:[%s168 + $0xb0] sm:$0xff]
        %v193 = vld [vmem:[%s168 + $0xb8] sm:$0xff]
        %v194 = vld [vmem:[%s168 + $0xc0] sm:$0xff]
        %v195 = vld [vmem:[%s168 + $0xc8] sm:$0xff]
        %v196 = vld [vmem:[%s168 + $0xd0] sm:$0xff]
        %v197 = vld [vmem:[%s168 + $0xd8] sm:$0xff]
        %v198 = vld [vmem:[%s168 + $0xe0] sm:$0xff]
        %v199 = vld [vmem:[%s168 + $0xe8] sm:$0xff]
        %v200 = vld [vmem:[%s168 + $0xf0] sm:$0xff]
        %v201 = vld [vmem:[%s168 + $0xf8] sm:$0xff]
        %v202 = vpack.c.bf16 %v170, %v170
        %v203 = vpack.c.bf16 %v171, %v171
        %v204 = vpack.c.bf16 %v172, %v172
        %v205 = vpack.c.bf16 %v173, %v173
        %v206 = vpack.c.bf16 %v174, %v174
        %v207 = vpack.c.bf16 %v175, %v175
        %v208 = vpack.c.bf16 %v176, %v176
        %v209 = vpack.c.bf16 %v177, %v177
        %v210 = vpack.c.bf16 %v178, %v178
        %v211 = vpack.c.bf16 %v179, %v179
        %v212 = vpack.c.bf16 %v180, %v180
        %v213 = vpack.c.bf16 %v181, %v181
        %v214 = vpack.c.bf16 %v182, %v182
        %v215 = vpack.c.bf16 %v183, %v183
        %v216 = vpack.c.bf16 %v184, %v184
        %v217 = vpack.c.bf16 %v185, %v185
        %v218 = vpack.c.bf16 %v186, %v186
        %v219 = vpack.c.bf16 %v187, %v187
        %v220 = vpack.c.bf16 %v188, %v188
        %v221 = vpack.c.bf16 %v189, %v189
        %v222 = vpack.c.bf16 %v190, %v190
        %v223 = vpack.c.bf16 %v191, %v191
        %v224 = vpack.c.bf16 %v192, %v192
        %v225 = vpack.c.bf16 %v193, %v193
        %v226 = vpack.c.bf16 %v194, %v194
        %v227 = vpack.c.bf16 %v195, %v195
        %v228 = vpack.c.bf16 %v196, %v196
        %v229 = vpack.c.bf16 %v197, %v197
        %v230 = vpack.c.bf16 %v198, %v198
        %v231 = vpack.c.bf16 %v199, %v199
        %v232 = vpack.c.bf16 %v200, %v200
        %v233 = vpack.c.bf16 %v201, %v201
        %vm234 = vcmask 19456
        %235 = vst.msk [vmem:[#allocation2] sm:$0xf] %vm234, 0
        %236 = vst.msk [vmem:[#allocation2 + $0x4] sm:$0xf] %vm234, 0
        %237 = vst.msk [vmem:[#allocation2 + $0x8] sm:$0xf] %vm234, 0
        %238 = vst.msk [vmem:[#allocation2 + $0xc] sm:$0xf] %vm234, 0
        %vm239 = vcmask 16384
        %vm240 = vsmask.f32 256
        %vm241 = vmand %vm239, %vm240
        %v242 = vld [vmem:[#allocation2 + $0x10] sm:$0x1]
        %v243 = vsel %vm241, 0, %v242
        %244 = vst [vmem:[#allocation2 + $0x10] sm:$0x1] %v243
        %245 = vst.msk [vmem:[#allocation2 + $0x14] sm:$0xf] %vm234, 0
        %246 = vst.msk [vmem:[#allocation2 + $0x18] sm:$0xf] %vm234, 0
        %247 = vst.msk [vmem:[#allocation2 + $0x1c] sm:$0xf] %vm234, 0
        %248 = vst.msk [vmem:[#allocation2 + $0x20] sm:$0xf] %vm234, 0
        %v249 = vld [vmem:[#allocation2 + $0x24] sm:$0x1]
        %v250 = vsel %vm241, 0, %v249
        %251 = vst [vmem:[#allocation2 + $0x24] sm:$0x1] %v250
        %252 = vst.msk [vmem:[#allocation2 + $0x28] sm:$0xf] %vm234, 0
        %253 = vst.msk [vmem:[#allocation2 + $0x2c] sm:$0xf] %vm234, 0
        %254 = vst.msk [vmem:[#allocation2 + $0x30] sm:$0xf] %vm234, 0
        %255 = vst.msk [vmem:[#allocation2 + $0x34] sm:$0xf] %vm234, 0
        %v256 = vld [vmem:[#allocation2 + $0x38] sm:$0x1]
        %v257 = vsel %vm241, 0, %v256
        %258 = vst [vmem:[#allocation2 + $0x38] sm:$0x1] %v257
        %259 = vst.msk [vmem:[#allocation2 + $0x3c] sm:$0xf] %vm234, 0
        %260 = vst.msk [vmem:[#allocation2 + $0x40] sm:$0xf] %vm234, 0
        %261 = vst.msk [vmem:[#allocation2 + $0x44] sm:$0xf] %vm234, 0
        %262 = vst.msk [vmem:[#allocation2 + $0x48] sm:$0xf] %vm234, 0
        %v263 = vld [vmem:[#allocation2 + $0x4c] sm:$0x1]
        %v264 = vsel %vm241, 0, %v263
        %265 = vst [vmem:[#allocation2 + $0x4c] sm:$0x1] %v264
        %266 = vst.msk [vmem:[#allocation2 + $0x50] sm:$0xf] %vm234, 0
        %267 = vst.msk [vmem:[#allocation2 + $0x54] sm:$0xf] %vm234, 0
        %268 = vst.msk [vmem:[#allocation2 + $0x58] sm:$0xf] %vm234, 0
        %269 = vst.msk [vmem:[#allocation2 + $0x5c] sm:$0xf] %vm234, 0
        %v270 = vld [vmem:[#allocation2 + $0x60] sm:$0x1]
        %v271 = vsel %vm241, 0, %v270
        %272 = vst [vmem:[#allocation2 + $0x60] sm:$0x1] %v271
        %273 = vst.msk [vmem:[#allocation2 + $0x64] sm:$0xf] %vm234, 0
        %274 = vst.msk [vmem:[#allocation2 + $0x68] sm:$0xf] %vm234, 0
        %275 = vst.msk [vmem:[#allocation2 + $0x6c] sm:$0xf] %vm234, 0
        %276 = vst.msk [vmem:[#allocation2 + $0x70] sm:$0xf] %vm234, 0
        %v277 = vld [vmem:[#allocation2 + $0x74] sm:$0x1]
        %v278 = vsel %vm241, 0, %v277
        %279 = vst [vmem:[#allocation2 + $0x74] sm:$0x1] %v278
        %280 = vst.msk [vmem:[#allocation2 + $0x78] sm:$0xf] %vm234, 0
        %281 = vst.msk [vmem:[#allocation2 + $0x7c] sm:$0xf] %vm234, 0
        %282 = vst.msk [vmem:[#allocation2 + $0x80] sm:$0xf] %vm234, 0
        %283 = vst.msk [vmem:[#allocation2 + $0x84] sm:$0xf] %vm234, 0
        %v284 = vld [vmem:[#allocation2 + $0x88] sm:$0x1]
        %v285 = vsel %vm241, 0, %v284
        %286 = vst [vmem:[#allocation2 + $0x88] sm:$0x1] %v285
        %287 = vst.msk [vmem:[#allocation2 + $0x8c] sm:$0xf] %vm234, 0
        %288 = vst.msk [vmem:[#allocation2 + $0x90] sm:$0xf] %vm234, 0
        %289 = vst.msk [vmem:[#allocation2 + $0x94] sm:$0xf] %vm234, 0
        %290 = vst.msk [vmem:[#allocation2 + $0x98] sm:$0xf] %vm234, 0
        %v291 = vld [vmem:[#allocation2 + $0x9c] sm:$0x1]
        %v292 = vsel %vm241, 0, %v291
        %293 = vst [vmem:[#allocation2 + $0x9c] sm:$0x1] %v292
        %294 = vst.msk [vmem:[#allocation2 + $0xa0] sm:$0xf] %vm234, 0
        %295 = vst.msk [vmem:[#allocation2 + $0xa4] sm:$0xf] %vm234, 0
        %296 = vst.msk [vmem:[#allocation2 + $0xa8] sm:$0xf] %vm234, 0
        %297 = vst.msk [vmem:[#allocation2 + $0xac] sm:$0xf] %vm234, 0
        %v298 = vld [vmem:[#allocation2 + $0xb0] sm:$0x1]
        %v299 = vsel %vm241, 0, %v298
        %300 = vst [vmem:[#allocation2 + $0xb0] sm:$0x1] %v299
        %301 = vst.msk [vmem:[#allocation2 + $0xb4] sm:$0xf] %vm234, 0
        %302 = vst.msk [vmem:[#allocation2 + $0xb8] sm:$0xf] %vm234, 0
        %303 = vst.msk [vmem:[#allocation2 + $0xbc] sm:$0xf] %vm234, 0
        %304 = vst.msk [vmem:[#allocation2 + $0xc0] sm:$0xf] %vm234, 0
        %v305 = vld [vmem:[#allocation2 + $0xc4] sm:$0x1]
        %v306 = vsel %vm241, 0, %v305
        %307 = vst [vmem:[#allocation2 + $0xc4] sm:$0x1] %v306
        %308 = vst.msk [vmem:[#allocation2 + $0xc8] sm:$0xf] %vm234, 0
        %309 = vst.msk [vmem:[#allocation2 + $0xcc] sm:$0xf] %vm234, 0
        %310 = vst.msk [vmem:[#allocation2 + $0xd0] sm:$0xf] %vm234, 0
        %311 = vst.msk [vmem:[#allocation2 + $0xd4] sm:$0xf] %vm234, 0
        %v312 = vld [vmem:[#allocation2 + $0xd8] sm:$0x1]
        %v313 = vsel %vm241, 0, %v312
        %314 = vst [vmem:[#allocation2 + $0xd8] sm:$0x1] %v313
        %315 = vst.msk [vmem:[#allocation2 + $0xdc] sm:$0xf] %vm234, 0
        %316 = vst.msk [vmem:[#allocation2 + $0xe0] sm:$0xf] %vm234, 0
        %317 = vst.msk [vmem:[#allocation2 + $0xe4] sm:$0xf] %vm234, 0
        %318 = vst.msk [vmem:[#allocation2 + $0xe8] sm:$0xf] %vm234, 0
        %v319 = vld [vmem:[#allocation2 + $0xec] sm:$0x1]
        %v320 = vsel %vm241, 0, %v319
        %321 = vst [vmem:[#allocation2 + $0xec] sm:$0x1] %v320
        %322 = vst.msk [vmem:[#allocation2 + $0xf0] sm:$0xf] %vm234, 0
        %323 = vst.msk [vmem:[#allocation2 + $0xf4] sm:$0xf] %vm234, 0
        %324 = vst.msk [vmem:[#allocation2 + $0xf8] sm:$0xf] %vm234, 0
        %325 = vst.msk [vmem:[#allocation2 + $0xfc] sm:$0xf] %vm234, 0
        %v326 = vld [vmem:[#allocation2 + $0x100] sm:$0x1]
        %v327 = vsel %vm241, 0, %v326
        %328 = vst [vmem:[#allocation2 + $0x100] sm:$0x1] %v327
        %329 = vst.msk [vmem:[#allocation2 + $0x104] sm:$0xf] %vm234, 0
        %330 = vst.msk [vmem:[#allocation2 + $0x108] sm:$0xf] %vm234, 0
        %331 = vst.msk [vmem:[#allocation2 + $0x10c] sm:$0xf] %vm234, 0
        %332 = vst.msk [vmem:[#allocation2 + $0x110] sm:$0xf] %vm234, 0
        %v333 = vld [vmem:[#allocation2 + $0x114] sm:$0x1]
        %v334 = vsel %vm241, 0, %v333
        %335 = vst [vmem:[#allocation2 + $0x114] sm:$0x1] %v334
        %336 = vst.msk [vmem:[#allocation2 + $0x118] sm:$0xf] %vm234, 0
        %337 = vst.msk [vmem:[#allocation2 + $0x11c] sm:$0xf] %vm234, 0
        %338 = vst.msk [vmem:[#allocation2 + $0x120] sm:$0xf] %vm234, 0
        %339 = vst.msk [vmem:[#allocation2 + $0x124] sm:$0xf] %vm234, 0
        %v340 = vld [vmem:[#allocation2 + $0x128] sm:$0x1]
        %v341 = vsel %vm241, 0, %v340
        %342 = vst [vmem:[#allocation2 + $0x128] sm:$0x1] %v341
        %343 = vst.msk [vmem:[#allocation2 + $0x12c] sm:$0xf] %vm234, 0
        %344 = vst.msk [vmem:[#allocation2 + $0x130] sm:$0xf] %vm234, 0
        %345 = vst.msk [vmem:[#allocation2 + $0x134] sm:$0xf] %vm234, 0
        %346 = vst.msk [vmem:[#allocation2 + $0x138] sm:$0xf] %vm234, 0
        %v347 = vld [vmem:[#allocation2 + $0x13c] sm:$0x1]
        %v348 = vsel %vm241, 0, %v347
        %349 = vst [vmem:[#allocation2 + $0x13c] sm:$0x1] %v348
        %350 = vst.msk [vmem:[#allocation2 + $0x140] sm:$0xf] %vm234, 0
        %351 = vst.msk [vmem:[#allocation2 + $0x144] sm:$0xf] %vm234, 0
        %352 = vst.msk [vmem:[#allocation2 + $0x148] sm:$0xf] %vm234, 0
        %353 = vst.msk [vmem:[#allocation2 + $0x14c] sm:$0xf] %vm234, 0
        %v354 = vld [vmem:[#allocation2 + $0x150] sm:$0x1]
        %v355 = vsel %vm241, 0, %v354
        %356 = vst [vmem:[#allocation2 + $0x150] sm:$0x1] %v355
        %357 = vst.msk [vmem:[#allocation2 + $0x154] sm:$0xf] %vm234, 0
        %358 = vst.msk [vmem:[#allocation2 + $0x158] sm:$0xf] %vm234, 0
        %359 = vst.msk [vmem:[#allocation2 + $0x15c] sm:$0xf] %vm234, 0
        %360 = vst.msk [vmem:[#allocation2 + $0x160] sm:$0xf] %vm234, 0
        %v361 = vld [vmem:[#allocation2 + $0x164] sm:$0x1]
        %v362 = vsel %vm241, 0, %v361
        %363 = vst [vmem:[#allocation2 + $0x164] sm:$0x1] %v362
        %s364 = scalar_lea.vmem [#allocation2], 20
        %365 = vst.msk [vmem:[%s364 + $0x8] sm:$0xf] %vm234, %v202
        %366 = vst.msk [vmem:[%s364 + $0xc] sm:$0xf] %vm234, %v203
        %367 = vst.msk [vmem:[%s364 + $0x1c] sm:$0xf] %vm234, %v204
        %368 = vst.msk [vmem:[%s364 + $0x20] sm:$0xf] %vm234, %v205
        %369 = vst.msk [vmem:[%s364 + $0x30] sm:$0xf] %vm234, %v206
        %370 = vst.msk [vmem:[%s364 + $0x34] sm:$0xf] %vm234, %v207
        %371 = vst.msk [vmem:[%s364 + $0x44] sm:$0xf] %vm234, %v208
        %372 = vst.msk [vmem:[%s364 + $0x48] sm:$0xf] %vm234, %v209
        %373 = vst.msk [vmem:[%s364 + $0x58] sm:$0xf] %vm234, %v210
        %374 = vst.msk [vmem:[%s364 + $0x5c] sm:$0xf] %vm234, %v211
        %375 = vst.msk [vmem:[%s364 + $0x6c] sm:$0xf] %vm234, %v212
        %376 = vst.msk [vmem:[%s364 + $0x70] sm:$0xf] %vm234, %v213
        %377 = vst.msk [vmem:[%s364 + $0x80] sm:$0xf] %vm234, %v214
        %378 = vst.msk [vmem:[%s364 + $0x84] sm:$0xf] %vm234, %v215
        %379 = vst.msk [vmem:[%s364 + $0x94] sm:$0xf] %vm234, %v216
        %380 = vst.msk [vmem:[%s364 + $0x98] sm:$0xf] %vm234, %v217
        %381 = vst.msk [vmem:[%s364 + $0xa8] sm:$0xf] %vm234, %v218
        %382 = vst.msk [vmem:[%s364 + $0xac] sm:$0xf] %vm234, %v219
        %383 = vst.msk [vmem:[%s364 + $0xbc] sm:$0xf] %vm234, %v220
        %384 = vst.msk [vmem:[%s364 + $0xc0] sm:$0xf] %vm234, %v221
        %385 = vst.msk [vmem:[%s364 + $0xd0] sm:$0xf] %vm234, %v222
        %386 = vst.msk [vmem:[%s364 + $0xd4] sm:$0xf] %vm234, %v223
        %387 = vst.msk [vmem:[%s364 + $0xe4] sm:$0xf] %vm234, %v224
        %388 = vst.msk [vmem:[%s364 + $0xe8] sm:$0xf] %vm234, %v225
        %389 = vst.msk [vmem:[%s364 + $0xf8] sm:$0xf] %vm234, %v226
        %390 = vst.msk [vmem:[%s364 + $0xfc] sm:$0xf] %vm234, %v227
        %391 = vst.msk [vmem:[%s364 + $0x10c] sm:$0xf] %vm234, %v228
        %392 = vst.msk [vmem:[%s364 + $0x110] sm:$0xf] %vm234, %v229
        %393 = vst.msk [vmem:[%s364 + $0x120] sm:$0xf] %vm234, %v230
        %394 = vst.msk [vmem:[%s364 + $0x124] sm:$0xf] %vm234, %v231
        %395 = vst.msk [vmem:[%s364 + $0x134] sm:$0xf] %vm234, %v232
        %396 = vst.msk [vmem:[%s364 + $0x138] sm:$0xf] %vm234, %v233
        %v397 = vld [vmem:[%s2] sm:$0x1]
        %v398 = vld [vmem:[#allocation2 + $0x4] sm:$0xf]
        %v399 = vld [vmem:[#allocation2 + $0x8] sm:$0xf]
        %v400 = vld [vmem:[#allocation2 + $0xc] sm:$0xf]
        %v401 = vld [vmem:[#allocation2 + $0x10] sm:$0x1]
        %v402 = vld [vmem:[#allocation2 + $0x18] sm:$0xf]
        %v403 = vld [vmem:[#allocation2 + $0x1c] sm:$0xf]
        %v404 = vld [vmem:[#allocation2 + $0x20] sm:$0xf]
        %v405 = vld [vmem:[#allocation2 + $0x24] sm:$0x1]
        %v406 = vld [vmem:[#allocation2 + $0x2c] sm:$0xf]
        %v407 = vld [vmem:[#allocation2 + $0x30] sm:$0xf]
        %v408 = vld [vmem:[#allocation2 + $0x34] sm:$0xf]
        %v409 = vld [vmem:[#allocation2 + $0x38] sm:$0x1]
        %v410 = vld [vmem:[#allocation2 + $0x40] sm:$0xf]
        %v411 = vld [vmem:[#allocation2 + $0x44] sm:$0xf]
        %v412 = vld [vmem:[#allocation2 + $0x48] sm:$0xf]
        %v413 = vld [vmem:[#allocation2 + $0x4c] sm:$0x1]
        %v414 = vld [vmem:[#allocation2 + $0x54] sm:$0xf]
        %v415 = vld [vmem:[#allocation2 + $0x58] sm:$0xf]
        %v416 = vld [vmem:[#allocation2 + $0x5c] sm:$0xf]
        %v417 = vld [vmem:[#allocation2 + $0x60] sm:$0x1]
        %v418 = vld [vmem:[#allocation2 + $0x68] sm:$0xf]
        %v419 = vld [vmem:[#allocation2 + $0x6c] sm:$0xf]
        %v420 = vld [vmem:[#allocation2 + $0x70] sm:$0xf]
        %v421 = vld [vmem:[#allocation2 + $0x74] sm:$0x1]
        %v422 = vld [vmem:[#allocation2 + $0x7c] sm:$0xf]
        %v423 = vld [vmem:[#allocation2 + $0x80] sm:$0xf]
        %v424 = vld [vmem:[#allocation2 + $0x84] sm:$0xf]
        %v425 = vld [vmem:[#allocation2 + $0x88] sm:$0x1]
        %v426 = vld [vmem:[#allocation2 + $0x90] sm:$0xf]
        %v427 = vld [vmem:[#allocation2 + $0x94] sm:$0xf]
        %v428 = vld [vmem:[#allocation2 + $0x98] sm:$0xf]
        %v429 = vld [vmem:[#allocation2 + $0x9c] sm:$0x1]
        %v430 = vld [vmem:[#allocation2 + $0xa4] sm:$0xf]
        %v431 = vld [vmem:[#allocation2 + $0xa8] sm:$0xf]
        %v432 = vld [vmem:[#allocation2 + $0xac] sm:$0xf]
        %v433 = vld [vmem:[#allocation2 + $0xb0] sm:$0x1]
        %v434 = vld [vmem:[#allocation2 + $0xb8] sm:$0xf]
        %v435 = vld [vmem:[#allocation2 + $0xbc] sm:$0xf]
        %v436 = vld [vmem:[#allocation2 + $0xc0] sm:$0xf]
        %v437 = vld [vmem:[#allocation2 + $0xc4] sm:$0x1]
        %v438 = vld [vmem:[#allocation2 + $0xcc] sm:$0xf]
        %v439 = vld [vmem:[#allocation2 + $0xd0] sm:$0xf]
        %v440 = vld [vmem:[#allocation2 + $0xd4] sm:$0xf]
        %v441 = vld [vmem:[#allocation2 + $0xd8] sm:$0x1]
        %v442 = vld [vmem:[#allocation2 + $0xe0] sm:$0xf]
        %v443 = vld [vmem:[#allocation2 + $0xe4] sm:$0xf]
        %v444 = vld [vmem:[#allocation2 + $0xe8] sm:$0xf]
        %v445 = vld [vmem:[#allocation2 + $0xec] sm:$0x1]
        %v446 = vld [vmem:[#allocation2 + $0xf4] sm:$0xf]
        %v447 = vld [vmem:[#allocation2 + $0xf8] sm:$0xf]
        %v448 = vld [vmem:[#allocation2 + $0xfc] sm:$0xf]
        %v449 = vld [vmem:[#allocation2 + $0x100] sm:$0x1]
        %v450 = vld [vmem:[#allocation2 + $0x108] sm:$0xf]
        %v451 = vld [vmem:[#allocation2 + $0x10c] sm:$0xf]
        %v452 = vld [vmem:[#allocation2 + $0x110] sm:$0xf]
        %v453 = vld [vmem:[#allocation2 + $0x114] sm:$0x1]
        %v454 = vld [vmem:[#allocation2 + $0x11c] sm:$0xf]
        %v455 = vld [vmem:[#allocation2 + $0x120] sm:$0xf]
        %v456 = vld [vmem:[#allocation2 + $0x124] sm:$0xf]
        %v457 = vld [vmem:[#allocation2 + $0x128] sm:$0x1]
        %v458 = vld [vmem:[#allocation2 + $0x130] sm:$0xf]
        %v459 = vld [vmem:[#allocation2 + $0x134] sm:$0xf]
        %v460 = vld [vmem:[#allocation2 + $0x138] sm:$0xf]
        %v461 = vld [vmem:[#allocation2 + $0x13c] sm:$0x1]
        %v462 = vld [vmem:[#allocation2 + $0x144] sm:$0xf]
        %v463 = vld [vmem:[#allocation2 + $0x148] sm:$0xf]
        %v464 = vld [vmem:[#allocation2 + $0x14c] sm:$0xf]
        %v465 = vld [vmem:[#allocation2 + $0x150] sm:$0x1]
        %v466 = vld [vmem:[#allocation2 + $0x158] sm:$0xf]
        %v467 = vld [vmem:[#allocation2 + $0x15c] sm:$0xf]
        %v468 = vld [vmem:[#allocation2 + $0x160] sm:$0xf]
        %v469 = vld [vmem:[#allocation2 + $0x164] sm:$0x1]
        %vm470 = vsmask.f32 4368
        %vm471 = vmor %vm240, %vm470
        %v473 = vshrl.u32 %v398, 16
        %v475 = vrot.slane %v473, 7
        %v476 = vrot.slane %v475, 4
        %v478 = vshrl.u32 %v399, 16
        %v480 = vrot.slane %v478, 7
        %v481 = vshll.u32 %v399, 16
        %v483 = vor.u32 %v480, %v481
        %v484 = vsel %vm471, %v476, %v483
        %v485 = vrot.slane %v480, 4
        %v487 = vshrl.u32 %v400, 16
        %v489 = vrot.slane %v487, 7
        %v490 = vshll.u32 %v400, 16
        %v492 = vor.u32 %v489, %v490
        %v493 = vsel %vm471, %v485, %v492
        %v495 = vshrl.u32 %v402, 16
        %v497 = vrot.slane %v495, 7
        %v498 = vrot.slane %v497, 4
        %v500 = vshrl.u32 %v403, 16
        %v502 = vrot.slane %v500, 7
        %v503 = vshll.u32 %v403, 16
        %v505 = vor.u32 %v502, %v503
        %v506 = vsel %vm471, %v498, %v505
        %v507 = vrot.slane %v502, 4
        %v509 = vshrl.u32 %v404, 16
        %v511 = vrot.slane %v509, 7
        %v512 = vshll.u32 %v404, 16
        %v514 = vor.u32 %v511, %v512
        %v515 = vsel %vm471, %v507, %v514
        %v517 = vshrl.u32 %v406, 16
        %v519 = vrot.slane %v517, 7
        %v520 = vrot.slane %v519, 4
        %v522 = vshrl.u32 %v407, 16
        %v524 = vrot.slane %v522, 7
        %v525 = vshll.u32 %v407, 16
        %v527 = vor.u32 %v524, %v525
        %v528 = vsel %vm471, %v520, %v527
        %v529 = vrot.slane %v524, 4
        %v531 = vshrl.u32 %v408, 16
        %v533 = vrot.slane %v531, 7
        %v534 = vshll.u32 %v408, 16
        %v536 = vor.u32 %v533, %v534
        %v537 = vsel %vm471, %v529, %v536
        %v539 = vshrl.u32 %v410, 16
        %v541 = vrot.slane %v539, 7
        %v542 = vrot.slane %v541, 4
        %v544 = vshrl.u32 %v411, 16
        %v546 = vrot.slane %v544, 7
        %v547 = vshll.u32 %v411, 16
        %v549 = vor.u32 %v546, %v547
        %v550 = vsel %vm471, %v542, %v549
        %v551 = vrot.slane %v546, 4
        %v553 = vshrl.u32 %v412, 16
        %v555 = vrot.slane %v553, 7
        %v556 = vshll.u32 %v412, 16
        %v558 = vor.u32 %v555, %v556
        %v559 = vsel %vm471, %v551, %v558
        %v561 = vshrl.u32 %v414, 16
        %v563 = vrot.slane %v561, 7
        %v564 = vrot.slane %v563, 4
        %v566 = vshrl.u32 %v415, 16
        %v568 = vrot.slane %v566, 7
        %v569 = vshll.u32 %v415, 16
        %v571 = vor.u32 %v568, %v569
        %v572 = vsel %vm471, %v564, %v571
        %v573 = vrot.slane %v568, 4
        %v575 = vshrl.u32 %v416, 16
        %v577 = vrot.slane %v575, 7
        %v578 = vshll.u32 %v416, 16
        %v580 = vor.u32 %v577, %v578
        %v581 = vsel %vm471, %v573, %v580
        %v583 = vshrl.u32 %v418, 16
        %v585 = vrot.slane %v583, 7
        %v586 = vrot.slane %v585, 4
        %v588 = vshrl.u32 %v419, 16
        %v590 = vrot.slane %v588, 7
        %v591 = vshll.u32 %v419, 16
        %v593 = vor.u32 %v590, %v591
        %v594 = vsel %vm471, %v586, %v593
        %v595 = vrot.slane %v590, 4
        %v597 = vshrl.u32 %v420, 16
        %v599 = vrot.slane %v597, 7
        %v600 = vshll.u32 %v420, 16
        %v602 = vor.u32 %v599, %v600
        %v603 = vsel %vm471, %v595, %v602
        %v605 = vshrl.u32 %v422, 16
        %v607 = vrot.slane %v605, 7
        %v608 = vrot.slane %v607, 4
        %v610 = vshrl.u32 %v423, 16
        %v612 = vrot.slane %v610, 7
        %v613 = vshll.u32 %v423, 16
        %v615 = vor.u32 %v612, %v613
        %v616 = vsel %vm471, %v608, %v615
        %v617 = vrot.slane %v612, 4
        %v619 = vshrl.u32 %v424, 16
        %v621 = vrot.slane %v619, 7
        %v622 = vshll.u32 %v424, 16
        %v624 = vor.u32 %v621, %v622
        %v625 = vsel %vm471, %v617, %v624
        %v627 = vshrl.u32 %v426, 16
        %v629 = vrot.slane %v627, 7
        %v630 = vrot.slane %v629, 4
        %v632 = vshrl.u32 %v427, 16
        %v634 = vrot.slane %v632, 7
        %v635 = vshll.u32 %v427, 16
        %v637 = vor.u32 %v634, %v635
        %v638 = vsel %vm471, %v630, %v637
        %v639 = vrot.slane %v634, 4
        %v641 = vshrl.u32 %v428, 16
        %v643 = vrot.slane %v641, 7
        %v644 = vshll.u32 %v428, 16
        %v646 = vor.u32 %v643, %v644
        %v647 = vsel %vm471, %v639, %v646
        %v649 = vshrl.u32 %v430, 16
        %v651 = vrot.slane %v649, 7
        %v652 = vrot.slane %v651, 4
        %v654 = vshrl.u32 %v431, 16
        %v656 = vrot.slane %v654, 7
        %v657 = vshll.u32 %v431, 16
        %v659 = vor.u32 %v656, %v657
        %v660 = vsel %vm471, %v652, %v659
        %v661 = vrot.slane %v656, 4
        %v663 = vshrl.u32 %v432, 16
        %v665 = vrot.slane %v663, 7
        %v666 = vshll.u32 %v432, 16
        %v668 = vor.u32 %v665, %v666
        %v669 = vsel %vm471, %v661, %v668
        %v671 = vshrl.u32 %v434, 16
        %v673 = vrot.slane %v671, 7
        %v674 = vrot.slane %v673, 4
        %v676 = vshrl.u32 %v435, 16
        %v678 = vrot.slane %v676, 7
        %v679 = vshll.u32 %v435, 16
        %v681 = vor.u32 %v678, %v679
        %v682 = vsel %vm471, %v674, %v681
        %v683 = vrot.slane %v678, 4
        %v685 = vshrl.u32 %v436, 16
        %v687 = vrot.slane %v685, 7
        %v688 = vshll.u32 %v436, 16
        %v690 = vor.u32 %v687, %v688
        %v691 = vsel %vm471, %v683, %v690
        %v693 = vshrl.u32 %v438, 16
        %v695 = vrot.slane %v693, 7
        %v696 = vrot.slane %v695, 4
        %v698 = vshrl.u32 %v439, 16
        %v700 = vrot.slane %v698, 7
        %v701 = vshll.u32 %v439, 16
        %v703 = vor.u32 %v700, %v701
        %v704 = vsel %vm471, %v696, %v703
        %v705 = vrot.slane %v700, 4
        %v707 = vshrl.u32 %v440, 16
        %v709 = vrot.slane %v707, 7
        %v710 = vshll.u32 %v440, 16
        %v712 = vor.u32 %v709, %v710
        %v713 = vsel %vm471, %v705, %v712
        %v715 = vshrl.u32 %v442, 16
        %v717 = vrot.slane %v715, 7
        %v718 = vrot.slane %v717, 4
        %v720 = vshrl.u32 %v443, 16
        %v722 = vrot.slane %v720, 7
        %v723 = vshll.u32 %v443, 16
        %v725 = vor.u32 %v722, %v723
        %v726 = vsel %vm471, %v718, %v725
        %v727 = vrot.slane %v722, 4
        %v729 = vshrl.u32 %v444, 16
        %v731 = vrot.slane %v729, 7
        %v732 = vshll.u32 %v444, 16
        %v734 = vor.u32 %v731, %v732
        %v735 = vsel %vm471, %v727, %v734
        %v737 = vshrl.u32 %v446, 16
        %v739 = vrot.slane %v737, 7
        %v740 = vrot.slane %v739, 4
        %v742 = vshrl.u32 %v447, 16
        %v744 = vrot.slane %v742, 7
        %v745 = vshll.u32 %v447, 16
        %v747 = vor.u32 %v744, %v745
        %v748 = vsel %vm471, %v740, %v747
        %v749 = vrot.slane %v744, 4
        %v751 = vshrl.u32 %v448, 16
        %v753 = vrot.slane %v751, 7
        %v754 = vshll.u32 %v448, 16
        %v756 = vor.u32 %v753, %v754
        %v757 = vsel %vm471, %v749, %v756
        %v759 = vshrl.u32 %v450, 16
        %v761 = vrot.slane %v759, 7
        %v762 = vrot.slane %v761, 4
        %v764 = vshrl.u32 %v451, 16
        %v766 = vrot.slane %v764, 7
        %v767 = vshll.u32 %v451, 16
        %v769 = vor.u32 %v766, %v767
        %v770 = vsel %vm471, %v762, %v769
        %v771 = vrot.slane %v766, 4
        %v773 = vshrl.u32 %v452, 16
        %v775 = vrot.slane %v773, 7
        %v776 = vshll.u32 %v452, 16
        %v778 = vor.u32 %v775, %v776
        %v779 = vsel %vm471, %v771, %v778
        %v781 = vshrl.u32 %v454, 16
        %v783 = vrot.slane %v781, 7
        %v784 = vrot.slane %v783, 4
        %v786 = vshrl.u32 %v455, 16
        %v788 = vrot.slane %v786, 7
        %v789 = vshll.u32 %v455, 16
        %v791 = vor.u32 %v788, %v789
        %v792 = vsel %vm471, %v784, %v791
        %v793 = vrot.slane %v788, 4
        %v795 = vshrl.u32 %v456, 16
        %v797 = vrot.slane %v795, 7
        %v798 = vshll.u32 %v456, 16
        %v800 = vor.u32 %v797, %v798
        %v801 = vsel %vm471, %v793, %v800
        %v803 = vshrl.u32 %v458, 16
        %v805 = vrot.slane %v803, 7
        %v806 = vrot.slane %v805, 4
        %v808 = vshrl.u32 %v459, 16
        %v810 = vrot.slane %v808, 7
        %v811 = vshll.u32 %v459, 16
        %v813 = vor.u32 %v810, %v811
        %v814 = vsel %vm471, %v806, %v813
        %v815 = vrot.slane %v810, 4
        %v817 = vshrl.u32 %v460, 16
        %v819 = vrot.slane %v817, 7
        %v820 = vshll.u32 %v460, 16
        %v822 = vor.u32 %v819, %v820
        %v823 = vsel %vm471, %v815, %v822
        %v824 = vld [vmem:[%s1] sm:$0x3]
        %s825 = scalar_lea.vmem %s1, 2
        %v826 = vld [vmem:[%s825] sm:$0x3]
        %v859 = vunpack.c.l.b16 %v399
        %v860 = vunpack.c.l.b16 %v400
        %v861 = vunpack.c.l.b16 %v403
        %v862 = vunpack.c.l.b16 %v404
        %v863 = vunpack.c.l.b16 %v407
        %v864 = vunpack.c.l.b16 %v408
        %v865 = vunpack.c.l.b16 %v411
        %v866 = vunpack.c.l.b16 %v412
        %v867 = vunpack.c.l.b16 %v415
        %v868 = vunpack.c.l.b16 %v416
        %v869 = vunpack.c.l.b16 %v419
        %v870 = vunpack.c.l.b16 %v420
        %v871 = vunpack.c.l.b16 %v423
        %v872 = vunpack.c.l.b16 %v424
        %v873 = vunpack.c.l.b16 %v427
        %v874 = vunpack.c.l.b16 %v428
        %v875 = vunpack.c.l.b16 %v431
        %v876 = vunpack.c.l.b16 %v432
        %v877 = vunpack.c.l.b16 %v435
        %v878 = vunpack.c.l.b16 %v436
        %v879 = vunpack.c.l.b16 %v439
        %v880 = vunpack.c.l.b16 %v440
        %v881 = vunpack.c.l.b16 %v443
        %v882 = vunpack.c.l.b16 %v444
        %v883 = vunpack.c.l.b16 %v447
        %v884 = vunpack.c.l.b16 %v448
        %v885 = vunpack.c.l.b16 %v451
        %v886 = vunpack.c.l.b16 %v452
        %v887 = vunpack.c.l.b16 %v455
        %v888 = vunpack.c.l.b16 %v456
        %v889 = vunpack.c.l.b16 %v459
        %v890 = vunpack.c.l.b16 %v460
        %v891 = vpack.c.b16 %v860, %v859
        %v892 = vpack.c.b16 %v862, %v861
        %v893 = vpack.c.b16 %v864, %v863
        %v894 = vpack.c.b16 %v866, %v865
        %v895 = vpack.c.b16 %v868, %v867
        %v896 = vpack.c.b16 %v870, %v869
        %v897 = vpack.c.b16 %v872, %v871
        %v898 = vpack.c.b16 %v874, %v873
        %v899 = vpack.c.b16 %v876, %v875
        %v900 = vpack.c.b16 %v878, %v877
        %v901 = vpack.c.b16 %v880, %v879
        %v902 = vpack.c.b16 %v882, %v881
        %v903 = vpack.c.b16 %v884, %v883
        %v904 = vpack.c.b16 %v886, %v885
        %v905 = vpack.c.b16 %v888, %v887
        %v906 = vpack.c.b16 %v890, %v889
        %vm907 = vcmask 23552
        %v909 = vsel %vm907, %v891, 0
        %v912 = vsel %vm907, %v892, 0
        %v915 = vsel %vm907, %v893, 0
        %v918 = vsel %vm907, %v894, 0
        %v921 = vsel %vm907, %v895, 0
        %v924 = vsel %vm907, %v896, 0
        %v927 = vsel %vm907, %v897, 0
        %v930 = vsel %vm907, %v898, 0
        %v933 = vsel %vm907, %v899, 0
        %v936 = vsel %vm907, %v900, 0
        %v939 = vsel %vm907, %v901, 0
        %v942 = vsel %vm907, %v902, 0
        %v945 = vsel %vm907, %v903, 0
        %v948 = vsel %vm907, %v904, 0
        %v951 = vsel %vm907, %v905, 0
        %v954 = vsel %vm907, %v906, 0
        %vm956 = vcmask 1040384
        %vm957 = vcmask 1041408
        %v958 = vsel %vm956, 4294967295, 65535
        %v959 = vsel %vm957, %v958, 0
        %v961 = vand.u32 %v826, %v959
        %963 = vmatpush.bf16.msra.mxu0 0
        %964 = vmatpush.bf16.msra.mxu0 0
        %965 = vmatpush.bf16.msra.mxu0 0
        %966 = vmatpush.bf16.msra.mxu0 0
        %967 = vmatpush.bf16.msra.mxu0 0
        %968 = vmatpush.bf16.msra.mxu0 0
        %969 = vmatpush.bf16.msra.mxu0 0
        %970 = vmatpush.bf16.msra.mxu0 %v961
        %971 = vmatmul.bf16.gmra.mxu0 %v909
        %v972 = vpop.f32.mrf.mxu0
        %v973 = vadd.f32 0.0, %v972
        %v974 = vpop.f32.mrf.mxu0
        %v975 = vadd.f32 0.0, %v974
        %976 = vmatmul.bf16.gmra.mxu0 %v912
        %v977 = vpop.f32.mrf.mxu0
        %v978 = vadd.f32 0.0, %v977
        %v979 = vpop.f32.mrf.mxu0
        %v980 = vadd.f32 0.0, %v979
        %981 = vmatmul.bf16.gmra.mxu0 %v915
        %v982 = vpop.f32.mrf.mxu0
        %v983 = vadd.f32 0.0, %v982
        %v984 = vpop.f32.mrf.mxu0
        %v985 = vadd.f32 0.0, %v984
        %986 = vmatmul.bf16.gmra.mxu0 %v918
        %v987 = vpop.f32.mrf.mxu0
        %v988 = vadd.f32 0.0, %v987
        %v989 = vpop.f32.mrf.mxu0
        %v990 = vadd.f32 0.0, %v989
        %991 = vmatmul.bf16.gmra.mxu0 %v921
        %v992 = vpop.f32.mrf.mxu0
        %v993 = vadd.f32 0.0, %v992
        %v994 = vpop.f32.mrf.mxu0
        %v995 = vadd.f32 0.0, %v994
        %996 = vmatmul.bf16.gmra.mxu0 %v924
        %v997 = vpop.f32.mrf.mxu0
        %v998 = vadd.f32 0.0, %v997
        %v999 = vpop.f32.mrf.mxu0
        %v1000 = vadd.f32 0.0, %v999
        %1001 = vmatmul.bf16.gmra.mxu0 %v927
        %v1002 = vpop.f32.mrf.mxu0
        %v1003 = vadd.f32 0.0, %v1002
        %v1004 = vpop.f32.mrf.mxu0
        %v1005 = vadd.f32 0.0, %v1004
        %1006 = vmatmul.bf16.gmra.mxu0 %v930
        %v1007 = vpop.f32.mrf.mxu0
        %v1008 = vadd.f32 0.0, %v1007
        %v1009 = vpop.f32.mrf.mxu0
        %v1010 = vadd.f32 0.0, %v1009
        %1011 = vmatmul.bf16.gmra.mxu0 %v933
        %v1012 = vpop.f32.mrf.mxu0
        %v1013 = vadd.f32 0.0, %v1012
        %v1014 = vpop.f32.mrf.mxu0
        %v1015 = vadd.f32 0.0, %v1014
        %1016 = vmatmul.bf16.gmra.mxu0 %v936
        %v1017 = vpop.f32.mrf.mxu0
        %v1018 = vadd.f32 0.0, %v1017
        %v1019 = vpop.f32.mrf.mxu0
        %v1020 = vadd.f32 0.0, %v1019
        %1021 = vmatmul.bf16.gmra.mxu0 %v939
        %v1022 = vpop.f32.mrf.mxu0
        %v1023 = vadd.f32 0.0, %v1022
        %v1024 = vpop.f32.mrf.mxu0
        %v1025 = vadd.f32 0.0, %v1024
        %1026 = vmatmul.bf16.gmra.mxu0 %v942
        %v1027 = vpop.f32.mrf.mxu0
        %v1028 = vadd.f32 0.0, %v1027
        %v1029 = vpop.f32.mrf.mxu0
        %v1030 = vadd.f32 0.0, %v1029
        %1031 = vmatmul.bf16.gmra.mxu0 %v945
        %v1032 = vpop.f32.mrf.mxu0
        %v1033 = vadd.f32 0.0, %v1032
        %v1034 = vpop.f32.mrf.mxu0
        %v1035 = vadd.f32 0.0, %v1034
        %1036 = vmatmul.bf16.gmra.mxu0 %v948
        %v1037 = vpop.f32.mrf.mxu0
        %v1038 = vadd.f32 0.0, %v1037
        %v1039 = vpop.f32.mrf.mxu0
        %v1040 = vadd.f32 0.0, %v1039
        %1041 = vmatmul.bf16.gmra.mxu0 %v951
        %v1042 = vpop.f32.mrf.mxu0
        %v1043 = vadd.f32 0.0, %v1042
        %v1044 = vpop.f32.mrf.mxu0
        %v1045 = vadd.f32 0.0, %v1044
        %1046 = vmatmul.bf16.gmra.mxu0 %v954
        %v1047 = vpop.f32.mrf.mxu0
        %v1048 = vadd.f32 0.0, %v1047
        %v1049 = vpop.f32.mrf.mxu0
        %v1050 = vadd.f32 0.0, %v1049
        %1051 = vdwg.mxu0
        %v1052 = vunpack.c.l.b16 %v484
        %v1053 = vunpack.c.l.b16 %v493
        %v1054 = vunpack.c.l.b16 %v506
        %v1055 = vunpack.c.l.b16 %v515
        %v1056 = vunpack.c.l.b16 %v528
        %v1057 = vunpack.c.l.b16 %v537
        %v1058 = vunpack.c.l.b16 %v550
        %v1059 = vunpack.c.l.b16 %v559
        %v1060 = vunpack.c.l.b16 %v572
        %v1061 = vunpack.c.l.b16 %v581
        %v1062 = vunpack.c.l.b16 %v594
        %v1063 = vunpack.c.l.b16 %v603
        %v1064 = vunpack.c.l.b16 %v616
        %v1065 = vunpack.c.l.b16 %v625
        %v1066 = vunpack.c.l.b16 %v638
        %v1067 = vunpack.c.l.b16 %v647
        %v1068 = vunpack.c.l.b16 %v660
        %v1069 = vunpack.c.l.b16 %v669
        %v1070 = vunpack.c.l.b16 %v682
        %v1071 = vunpack.c.l.b16 %v691
        %v1072 = vunpack.c.l.b16 %v704
        %v1073 = vunpack.c.l.b16 %v713
        %v1074 = vunpack.c.l.b16 %v726
        %v1075 = vunpack.c.l.b16 %v735
        %v1076 = vunpack.c.l.b16 %v748
        %v1077 = vunpack.c.l.b16 %v757
        %v1078 = vunpack.c.l.b16 %v770
        %v1079 = vunpack.c.l.b16 %v779
        %v1080 = vunpack.c.l.b16 %v792
        %v1081 = vunpack.c.l.b16 %v801
        %v1082 = vunpack.c.l.b16 %v814
        %v1083 = vunpack.c.l.b16 %v823
        %v1084 = vpack.c.b16 %v1053, %v1052
        %v1085 = vpack.c.b16 %v1055, %v1054
        %v1086 = vpack.c.b16 %v1057, %v1056
        %v1087 = vpack.c.b16 %v1059, %v1058
        %v1088 = vpack.c.b16 %v1061, %v1060
        %v1089 = vpack.c.b16 %v1063, %v1062
        %v1090 = vpack.c.b16 %v1065, %v1064
        %v1091 = vpack.c.b16 %v1067, %v1066
        %v1092 = vpack.c.b16 %v1069, %v1068
        %v1093 = vpack.c.b16 %v1071, %v1070
        %v1094 = vpack.c.b16 %v1073, %v1072
        %v1095 = vpack.c.b16 %v1075, %v1074
        %v1096 = vpack.c.b16 %v1077, %v1076
        %v1097 = vpack.c.b16 %v1079, %v1078
        %v1098 = vpack.c.b16 %v1081, %v1080
        %v1099 = vpack.c.b16 %v1083, %v1082
        %v1101 = vsel %vm907, %v1084, 0
        %v1104 = vsel %vm907, %v1085, 0
        %v1107 = vsel %vm907, %v1086, 0
        %v1110 = vsel %vm907, %v1087, 0
        %v1113 = vsel %vm907, %v1088, 0
        %v1116 = vsel %vm907, %v1089, 0
        %v1119 = vsel %vm907, %v1090, 0
        %v1122 = vsel %vm907, %v1091, 0
        %v1125 = vsel %vm907, %v1092, 0
        %v1128 = vsel %vm907, %v1093, 0
        %v1131 = vsel %vm907, %v1094, 0
        %v1134 = vsel %vm907, %v1095, 0
        %v1137 = vsel %vm907, %v1096, 0
        %v1140 = vsel %vm907, %v1097, 0
        %v1143 = vsel %vm907, %v1098, 0
        %v1146 = vsel %vm907, %v1099, 0
        %v1149 = vand.u32 %v824, %v959
        %1151 = vmatpush.bf16.msra.mxu0 0
        %1152 = vmatpush.bf16.msra.mxu0 0
        %1153 = vmatpush.bf16.msra.mxu0 0
        %1154 = vmatpush.bf16.msra.mxu0 0
        %1155 = vmatpush.bf16.msra.mxu0 0
        %1156 = vmatpush.bf16.msra.mxu0 0
        %1157 = vmatpush.bf16.msra.mxu0 0
        %1158 = vmatpush.bf16.msra.mxu0 %v1149
        %1159 = vmatmul.bf16.gmra.mxu0 %v1101
        %v1160 = vpop.f32.mrf.mxu0
        %v1161 = vadd.f32 %v973, %v1160
        %v1162 = vpop.f32.mrf.mxu0
        %v1163 = vadd.f32 %v975, %v1162
        %1164 = vmatmul.bf16.gmra.mxu0 %v1104
        %v1165 = vpop.f32.mrf.mxu0
        %v1166 = vadd.f32 %v978, %v1165
        %v1167 = vpop.f32.mrf.mxu0
        %v1168 = vadd.f32 %v980, %v1167
        %1169 = vmatmul.bf16.gmra.mxu0 %v1107
        %v1170 = vpop.f32.mrf.mxu0
        %v1171 = vadd.f32 %v983, %v1170
        %v1172 = vpop.f32.mrf.mxu0
        %v1173 = vadd.f32 %v985, %v1172
        %1174 = vmatmul.bf16.gmra.mxu0 %v1110
        %v1175 = vpop.f32.mrf.mxu0
        %v1176 = vadd.f32 %v988, %v1175
        %v1177 = vpop.f32.mrf.mxu0
        %v1178 = vadd.f32 %v990, %v1177
        %1179 = vmatmul.bf16.gmra.mxu0 %v1113
        %v1180 = vpop.f32.mrf.mxu0
        %v1181 = vadd.f32 %v993, %v1180
        %v1182 = vpop.f32.mrf.mxu0
        %v1183 = vadd.f32 %v995, %v1182
        %1184 = vmatmul.bf16.gmra.mxu0 %v1116
        %v1185 = vpop.f32.mrf.mxu0
        %v1186 = vadd.f32 %v998, %v1185
        %v1187 = vpop.f32.mrf.mxu0
        %v1188 = vadd.f32 %v1000, %v1187
        %1189 = vmatmul.bf16.gmra.mxu0 %v1119
        %v1190 = vpop.f32.mrf.mxu0
        %v1191 = vadd.f32 %v1003, %v1190
        %v1192 = vpop.f32.mrf.mxu0
        %v1193 = vadd.f32 %v1005, %v1192
        %1194 = vmatmul.bf16.gmra.mxu0 %v1122
        %v1195 = vpop.f32.mrf.mxu0
        %v1196 = vadd.f32 %v1008, %v1195
        %v1197 = vpop.f32.mrf.mxu0
        %v1198 = vadd.f32 %v1010, %v1197
        %1199 = vmatmul.bf16.gmra.mxu0 %v1125
        %v1200 = vpop.f32.mrf.mxu0
        %v1201 = vadd.f32 %v1013, %v1200
        %v1202 = vpop.f32.mrf.mxu0
        %v1203 = vadd.f32 %v1015, %v1202
        %1204 = vmatmul.bf16.gmra.mxu0 %v1128
        %v1205 = vpop.f32.mrf.mxu0
        %v1206 = vadd.f32 %v1018, %v1205
        %v1207 = vpop.f32.mrf.mxu0
        %v1208 = vadd.f32 %v1020, %v1207
        %1209 = vmatmul.bf16.gmra.mxu0 %v1131
        %v1210 = vpop.f32.mrf.mxu0
        %v1211 = vadd.f32 %v1023, %v1210
        %v1212 = vpop.f32.mrf.mxu0
        %v1213 = vadd.f32 %v1025, %v1212
        %1214 = vmatmul.bf16.gmra.mxu0 %v1134
        %v1215 = vpop.f32.mrf.mxu0
        %v1216 = vadd.f32 %v1028, %v1215
        %v1217 = vpop.f32.mrf.mxu0
        %v1218 = vadd.f32 %v1030, %v1217
        %1219 = vmatmul.bf16.gmra.mxu0 %v1137
        %v1220 = vpop.f32.mrf.mxu0
        %v1221 = vadd.f32 %v1033, %v1220
        %v1222 = vpop.f32.mrf.mxu0
        %v1223 = vadd.f32 %v1035, %v1222
        %1224 = vmatmul.bf16.gmra.mxu0 %v1140
        %v1225 = vpop.f32.mrf.mxu0
        %v1226 = vadd.f32 %v1038, %v1225
        %v1227 = vpop.f32.mrf.mxu0
        %v1228 = vadd.f32 %v1040, %v1227
        %1229 = vmatmul.bf16.gmra.mxu0 %v1143
        %v1230 = vpop.f32.mrf.mxu0
        %v1231 = vadd.f32 %v1043, %v1230
        %v1232 = vpop.f32.mrf.mxu0
        %v1233 = vadd.f32 %v1045, %v1232
        %1234 = vmatmul.bf16.gmra.mxu0 %v1146
        %v1235 = vpop.f32.mrf.mxu0
        %v1236 = vadd.f32 %v1048, %v1235
        %v1237 = vpop.f32.mrf.mxu0
        %v1238 = vadd.f32 %v1050, %v1237
        %1239 = vdwg.mxu0
        %vm1240 = vsmask.f32 3328
        %vm1241 = vsmask.f32 7440
        %vm1242 = vmor %vm1240, %vm1241
        %v1243 = vrot.slane %v478, 4
        %v1244 = vrot.slane %v481, 5
        %v1245 = vor.u32 %v1243, %v1244
        %v1246 = vrot.slane %v1245, 4
        %v1247 = vrot.slane %v490, 5
        %v1248 = vsel %vm1242, %v1246, %v1247
        %v1249 = vrot.slane %v487, 4
        %v1250 = vor.u32 %v1249, %v1247
        %v1251 = vrot.slane %v1250, 4
        %v1253 = vshll.u32 %v401, 16
        %v1255 = vrot.slane %v1253, 5
        %v1256 = vsel %vm1242, %v1251, %v1255
        %v1257 = vrot.slane %v500, 4
        %v1258 = vrot.slane %v503, 5
        %v1259 = vor.u32 %v1257, %v1258
        %v1260 = vrot.slane %v1259, 4
        %v1261 = vrot.slane %v512, 5
        %v1262 = vsel %vm1242, %v1260, %v1261
        %v1263 = vrot.slane %v509, 4
        %v1264 = vor.u32 %v1263, %v1261
        %v1265 = vrot.slane %v1264, 4
        %v1267 = vshll.u32 %v405, 16
        %v1269 = vrot.slane %v1267, 5
        %v1270 = vsel %vm1242, %v1265, %v1269
        %v1271 = vrot.slane %v522, 4
        %v1272 = vrot.slane %v525, 5
        %v1273 = vor.u32 %v1271, %v1272
        %v1274 = vrot.slane %v1273, 4
        %v1275 = vrot.slane %v534, 5
        %v1276 = vsel %vm1242, %v1274, %v1275
        %v1277 = vrot.slane %v531, 4
        %v1278 = vor.u32 %v1277, %v1275
        %v1279 = vrot.slane %v1278, 4
        %v1281 = vshll.u32 %v409, 16
        %v1283 = vrot.slane %v1281, 5
        %v1284 = vsel %vm1242, %v1279, %v1283
        %v1285 = vrot.slane %v544, 4
        %v1286 = vrot.slane %v547, 5
        %v1287 = vor.u32 %v1285, %v1286
        %v1288 = vrot.slane %v1287, 4
        %v1289 = vrot.slane %v556, 5
        %v1290 = vsel %vm1242, %v1288, %v1289
        %v1291 = vrot.slane %v553, 4
        %v1292 = vor.u32 %v1291, %v1289
        %v1293 = vrot.slane %v1292, 4
        %v1295 = vshll.u32 %v413, 16
        %v1297 = vrot.slane %v1295, 5
        %v1298 = vsel %vm1242, %v1293, %v1297
        %v1299 = vrot.slane %v566, 4
        %v1300 = vrot.slane %v569, 5
        %v1301 = vor.u32 %v1299, %v1300
        %v1302 = vrot.slane %v1301, 4
        %v1303 = vrot.slane %v578, 5
        %v1304 = vsel %vm1242, %v1302, %v1303
        %v1305 = vrot.slane %v575, 4
        %v1306 = vor.u32 %v1305, %v1303
        %v1307 = vrot.slane %v1306, 4
        %v1309 = vshll.u32 %v417, 16
        %v1311 = vrot.slane %v1309, 5
        %v1312 = vsel %vm1242, %v1307, %v1311
        %v1313 = vrot.slane %v588, 4
        %v1314 = vrot.slane %v591, 5
        %v1315 = vor.u32 %v1313, %v1314
        %v1316 = vrot.slane %v1315, 4
        %v1317 = vrot.slane %v600, 5
        %v1318 = vsel %vm1242, %v1316, %v1317
        %v1319 = vrot.slane %v597, 4
        %v1320 = vor.u32 %v1319, %v1317
        %v1321 = vrot.slane %v1320, 4
        %v1323 = vshll.u32 %v421, 16
        %v1325 = vrot.slane %v1323, 5
        %v1326 = vsel %vm1242, %v1321, %v1325
        %v1327 = vrot.slane %v610, 4
        %v1328 = vrot.slane %v613, 5
        %v1329 = vor.u32 %v1327, %v1328
        %v1330 = vrot.slane %v1329, 4
        %v1331 = vrot.slane %v622, 5
        %v1332 = vsel %vm1242, %v1330, %v1331
        %v1333 = vrot.slane %v619, 4
        %v1334 = vor.u32 %v1333, %v1331
        %v1335 = vrot.slane %v1334, 4
        %v1337 = vshll.u32 %v425, 16
        %v1339 = vrot.slane %v1337, 5
        %v1340 = vsel %vm1242, %v1335, %v1339
        %v1341 = vrot.slane %v632, 4
        %v1342 = vrot.slane %v635, 5
        %v1343 = vor.u32 %v1341, %v1342
        %v1344 = vrot.slane %v1343, 4
        %v1345 = vrot.slane %v644, 5
        %v1346 = vsel %vm1242, %v1344, %v1345
        %v1347 = vrot.slane %v641, 4
        %v1348 = vor.u32 %v1347, %v1345
        %v1349 = vrot.slane %v1348, 4
        %v1351 = vshll.u32 %v429, 16
        %v1353 = vrot.slane %v1351, 5
        %v1354 = vsel %vm1242, %v1349, %v1353
        %v1355 = vrot.slane %v654, 4
        %v1356 = vrot.slane %v657, 5
        %v1357 = vor.u32 %v1355, %v1356
        %v1358 = vrot.slane %v1357, 4
        %v1359 = vrot.slane %v666, 5
        %v1360 = vsel %vm1242, %v1358, %v1359
        %v1361 = vrot.slane %v663, 4
        %v1362 = vor.u32 %v1361, %v1359
        %v1363 = vrot.slane %v1362, 4
        %v1365 = vshll.u32 %v433, 16
        %v1367 = vrot.slane %v1365, 5
        %v1368 = vsel %vm1242, %v1363, %v1367
        %v1369 = vrot.slane %v676, 4
        %v1370 = vrot.slane %v679, 5
        %v1371 = vor.u32 %v1369, %v1370
        %v1372 = vrot.slane %v1371, 4
        %v1373 = vrot.slane %v688, 5
        %v1374 = vsel %vm1242, %v1372, %v1373
        %v1375 = vrot.slane %v685, 4
        %v1376 = vor.u32 %v1375, %v1373
        %v1377 = vrot.slane %v1376, 4
        %v1379 = vshll.u32 %v437, 16
        %v1381 = vrot.slane %v1379, 5
        %v1382 = vsel %vm1242, %v1377, %v1381
        %v1383 = vrot.slane %v698, 4
        %v1384 = vrot.slane %v701, 5
        %v1385 = vor.u32 %v1383, %v1384
        %v1386 = vrot.slane %v1385, 4
        %v1387 = vrot.slane %v710, 5
        %v1388 = vsel %vm1242, %v1386, %v1387
        %v1389 = vrot.slane %v707, 4
        %v1390 = vor.u32 %v1389, %v1387
        %v1391 = vrot.slane %v1390, 4
        %v1393 = vshll.u32 %v441, 16
        %v1395 = vrot.slane %v1393, 5
        %v1396 = vsel %vm1242, %v1391, %v1395
        %v1397 = vrot.slane %v720, 4
        %v1398 = vrot.slane %v723, 5
        %v1399 = vor.u32 %v1397, %v1398
        %v1400 = vrot.slane %v1399, 4
        %v1401 = vrot.slane %v732, 5
        %v1402 = vsel %vm1242, %v1400, %v1401
        %v1403 = vrot.slane %v729, 4
        %v1404 = vor.u32 %v1403, %v1401
        %v1405 = vrot.slane %v1404, 4
        %v1407 = vshll.u32 %v445, 16
        %v1409 = vrot.slane %v1407, 5
        %v1410 = vsel %vm1242, %v1405, %v1409
        %v1411 = vrot.slane %v742, 4
        %v1412 = vrot.slane %v745, 5
        %v1413 = vor.u32 %v1411, %v1412
        %v1414 = vrot.slane %v1413, 4
        %v1415 = vrot.slane %v754, 5
        %v1416 = vsel %vm1242, %v1414, %v1415
        %v1417 = vrot.slane %v751, 4
        %v1418 = vor.u32 %v1417, %v1415
        %v1419 = vrot.slane %v1418, 4
        %v1421 = vshll.u32 %v449, 16
        %v1423 = vrot.slane %v1421, 5
        %v1424 = vsel %vm1242, %v1419, %v1423
        %v1425 = vrot.slane %v764, 4
        %v1426 = vrot.slane %v767, 5
        %v1427 = vor.u32 %v1425, %v1426
        %v1428 = vrot.slane %v1427, 4
        %v1429 = vrot.slane %v776, 5
        %v1430 = vsel %vm1242, %v1428, %v1429
        %v1431 = vrot.slane %v773, 4
        %v1432 = vor.u32 %v1431, %v1429
        %v1433 = vrot.slane %v1432, 4
        %v1435 = vshll.u32 %v453, 16
        %v1437 = vrot.slane %v1435, 5
        %v1438 = vsel %vm1242, %v1433, %v1437
        %v1439 = vrot.slane %v786, 4
        %v1440 = vrot.slane %v789, 5
        %v1441 = vor.u32 %v1439, %v1440
        %v1442 = vrot.slane %v1441, 4
        %v1443 = vrot.slane %v798, 5
        %v1444 = vsel %vm1242, %v1442, %v1443
        %v1445 = vrot.slane %v795, 4
        %v1446 = vor.u32 %v1445, %v1443
        %v1447 = vrot.slane %v1446, 4
        %v1449 = vshll.u32 %v457, 16
        %v1451 = vrot.slane %v1449, 5
        %v1452 = vsel %vm1242, %v1447, %v1451
        %v1453 = vrot.slane %v808, 4
        %v1454 = vrot.slane %v811, 5
        %v1455 = vor.u32 %v1453, %v1454
        %v1456 = vrot.slane %v1455, 4
        %v1457 = vrot.slane %v820, 5
        %v1458 = vsel %vm1242, %v1456, %v1457
        %v1459 = vrot.slane %v817, 4
        %v1460 = vor.u32 %v1459, %v1457
        %v1461 = vrot.slane %v1460, 4
        %v1463 = vshll.u32 %v461, 16
        %v1465 = vrot.slane %v1463, 5
        %v1466 = vsel %vm1242, %v1461, %v1465
        %s1467 = scalar_lea.vmem %s1, 4
        %v1468 = vld [vmem:[%s1467] sm:$0x3]
        %v1469 = vunpack.c.l.b16 %v1248
        %v1470 = vunpack.c.l.b16 %v1256
        %v1471 = vunpack.c.l.b16 %v1262
        %v1472 = vunpack.c.l.b16 %v1270
        %v1473 = vunpack.c.l.b16 %v1276
        %v1474 = vunpack.c.l.b16 %v1284
        %v1475 = vunpack.c.l.b16 %v1290
        %v1476 = vunpack.c.l.b16 %v1298
        %v1477 = vunpack.c.l.b16 %v1304
        %v1478 = vunpack.c.l.b16 %v1312
        %v1479 = vunpack.c.l.b16 %v1318
        %v1480 = vunpack.c.l.b16 %v1326
        %v1481 = vunpack.c.l.b16 %v1332
        %v1482 = vunpack.c.l.b16 %v1340
        %v1483 = vunpack.c.l.b16 %v1346
        %v1484 = vunpack.c.l.b16 %v1354
        %v1485 = vunpack.c.l.b16 %v1360
        %v1486 = vunpack.c.l.b16 %v1368
        %v1487 = vunpack.c.l.b16 %v1374
        %v1488 = vunpack.c.l.b16 %v1382
        %v1489 = vunpack.c.l.b16 %v1388
        %v1490 = vunpack.c.l.b16 %v1396
        %v1491 = vunpack.c.l.b16 %v1402
        %v1492 = vunpack.c.l.b16 %v1410
        %v1493 = vunpack.c.l.b16 %v1416
        %v1494 = vunpack.c.l.b16 %v1424
        %v1495 = vunpack.c.l.b16 %v1430
        %v1496 = vunpack.c.l.b16 %v1438
        %v1497 = vunpack.c.l.b16 %v1444
        %v1498 = vunpack.c.l.b16 %v1452
        %v1499 = vunpack.c.l.b16 %v1458
        %v1500 = vunpack.c.l.b16 %v1466
        %v1501 = vpack.c.b16 %v1470, %v1469
        %v1502 = vpack.c.b16 %v1472, %v1471
        %v1503 = vpack.c.b16 %v1474, %v1473
        %v1504 = vpack.c.b16 %v1476, %v1475
        %v1505 = vpack.c.b16 %v1478, %v1477
        %v1506 = vpack.c.b16 %v1480, %v1479
        %v1507 = vpack.c.b16 %v1482, %v1481
        %v1508 = vpack.c.b16 %v1484, %v1483
        %v1509 = vpack.c.b16 %v1486, %v1485
        %v1510 = vpack.c.b16 %v1488, %v1487
        %v1511 = vpack.c.b16 %v1490, %v1489
        %v1512 = vpack.c.b16 %v1492, %v1491
        %v1513 = vpack.c.b16 %v1494, %v1493
        %v1514 = vpack.c.b16 %v1496, %v1495
        %v1515 = vpack.c.b16 %v1498, %v1497
        %v1516 = vpack.c.b16 %v1500, %v1499
        %v1518 = vsel %vm907, %v1501, 0
        %v1521 = vsel %vm907, %v1502, 0
        %v1524 = vsel %vm907, %v1503, 0
        %v1527 = vsel %vm907, %v1504, 0
        %v1530 = vsel %vm907, %v1505, 0
        %v1533 = vsel %vm907, %v1506, 0
        %v1536 = vsel %vm907, %v1507, 0
        %v1539 = vsel %vm907, %v1508, 0
        %v1542 = vsel %vm907, %v1509, 0
        %v1545 = vsel %vm907, %v1510, 0
        %v1548 = vsel %vm907, %v1511, 0
        %v1551 = vsel %vm907, %v1512, 0
        %v1554 = vsel %vm907, %v1513, 0
        %v1557 = vsel %vm907, %v1514, 0
        %v1560 = vsel %vm907, %v1515, 0
        %v1563 = vsel %vm907, %v1516, 0
        %v1566 = vand.u32 %v1468, %v959
        %1568 = vmatpush.bf16.msra.mxu0 0
        %1569 = vmatpush.bf16.msra.mxu0 0
        %1570 = vmatpush.bf16.msra.mxu0 0
        %1571 = vmatpush.bf16.msra.mxu0 0
        %1572 = vmatpush.bf16.msra.mxu0 0
        %1573 = vmatpush.bf16.msra.mxu0 0
        %1574 = vmatpush.bf16.msra.mxu0 0
        %1575 = vmatpush.bf16.msra.mxu0 %v1566
        %1576 = vmatmul.bf16.gmra.mxu0 %v1518
        %v1577 = vpop.f32.mrf.mxu0
        %v1578 = vadd.f32 0.0, %v1577
        %v1579 = vpop.f32.mrf.mxu0
        %v1580 = vadd.f32 0.0, %v1579
        %1581 = vmatmul.bf16.gmra.mxu0 %v1521
        %v1582 = vpop.f32.mrf.mxu0
        %v1583 = vadd.f32 0.0, %v1582
        %v1584 = vpop.f32.mrf.mxu0
        %v1585 = vadd.f32 0.0, %v1584
        %1586 = vmatmul.bf16.gmra.mxu0 %v1524
        %v1587 = vpop.f32.mrf.mxu0
        %v1588 = vadd.f32 0.0, %v1587
        %v1589 = vpop.f32.mrf.mxu0
        %v1590 = vadd.f32 0.0, %v1589
        %1591 = vmatmul.bf16.gmra.mxu0 %v1527
        %v1592 = vpop.f32.mrf.mxu0
        %v1593 = vadd.f32 0.0, %v1592
        %v1594 = vpop.f32.mrf.mxu0
        %v1595 = vadd.f32 0.0, %v1594
        %1596 = vmatmul.bf16.gmra.mxu0 %v1530
        %v1597 = vpop.f32.mrf.mxu0
        %v1598 = vadd.f32 0.0, %v1597
        %v1599 = vpop.f32.mrf.mxu0
        %v1600 = vadd.f32 0.0, %v1599
        %1601 = vmatmul.bf16.gmra.mxu0 %v1533
        %v1602 = vpop.f32.mrf.mxu0
        %v1603 = vadd.f32 0.0, %v1602
        %v1604 = vpop.f32.mrf.mxu0
        %v1605 = vadd.f32 0.0, %v1604
        %1606 = vmatmul.bf16.gmra.mxu0 %v1536
        %v1607 = vpop.f32.mrf.mxu0
        %v1608 = vadd.f32 0.0, %v1607
        %v1609 = vpop.f32.mrf.mxu0
        %v1610 = vadd.f32 0.0, %v1609
        %1611 = vmatmul.bf16.gmra.mxu0 %v1539
        %v1612 = vpop.f32.mrf.mxu0
        %v1613 = vadd.f32 0.0, %v1612
        %v1614 = vpop.f32.mrf.mxu0
        %v1615 = vadd.f32 0.0, %v1614
        %1616 = vmatmul.bf16.gmra.mxu0 %v1542
        %v1617 = vpop.f32.mrf.mxu0
        %v1618 = vadd.f32 0.0, %v1617
        %v1619 = vpop.f32.mrf.mxu0
        %v1620 = vadd.f32 0.0, %v1619
        %1621 = vmatmul.bf16.gmra.mxu0 %v1545
        %v1622 = vpop.f32.mrf.mxu0
        %v1623 = vadd.f32 0.0, %v1622
        %v1624 = vpop.f32.mrf.mxu0
        %v1625 = vadd.f32 0.0, %v1624
        %1626 = vmatmul.bf16.gmra.mxu0 %v1548
        %v1627 = vpop.f32.mrf.mxu0
        %v1628 = vadd.f32 0.0, %v1627
        %v1629 = vpop.f32.mrf.mxu0
        %v1630 = vadd.f32 0.0, %v1629
        %1631 = vmatmul.bf16.gmra.mxu0 %v1551
        %v1632 = vpop.f32.mrf.mxu0
        %v1633 = vadd.f32 0.0, %v1632
        %v1634 = vpop.f32.mrf.mxu0
        %v1635 = vadd.f32 0.0, %v1634
        %1636 = vmatmul.bf16.gmra.mxu0 %v1554
        %v1637 = vpop.f32.mrf.mxu0
        %v1638 = vadd.f32 0.0, %v1637
        %v1639 = vpop.f32.mrf.mxu0
        %v1640 = vadd.f32 0.0, %v1639
        %1641 = vmatmul.bf16.gmra.mxu0 %v1557
        %v1642 = vpop.f32.mrf.mxu0
        %v1643 = vadd.f32 0.0, %v1642
        %v1644 = vpop.f32.mrf.mxu0
        %v1645 = vadd.f32 0.0, %v1644
        %1646 = vmatmul.bf16.gmra.mxu0 %v1560
        %v1647 = vpop.f32.mrf.mxu0
        %v1648 = vadd.f32 0.0, %v1647
        %v1649 = vpop.f32.mrf.mxu0
        %v1650 = vadd.f32 0.0, %v1649
        %1651 = vmatmul.bf16.gmra.mxu0 %v1563
        %v1652 = vpop.f32.mrf.mxu0
        %v1653 = vadd.f32 0.0, %v1652
        %v1654 = vpop.f32.mrf.mxu0
        %v1655 = vadd.f32 0.0, %v1654
        %1656 = vdwg.mxu0
        %v1657 = vadd.f32 %v1161, %v1578
        %v1658 = vadd.f32 %v1163, %v1580
        %v1659 = vadd.f32 %v1166, %v1583
        %v1660 = vadd.f32 %v1168, %v1585
        %v1661 = vadd.f32 %v1171, %v1588
        %v1662 = vadd.f32 %v1173, %v1590
        %v1663 = vadd.f32 %v1176, %v1593
        %v1664 = vadd.f32 %v1178, %v1595
        %v1665 = vadd.f32 %v1181, %v1598
        %v1666 = vadd.f32 %v1183, %v1600
        %v1667 = vadd.f32 %v1186, %v1603
        %v1668 = vadd.f32 %v1188, %v1605
        %v1669 = vadd.f32 %v1191, %v1608
        %v1670 = vadd.f32 %v1193, %v1610
        %v1671 = vadd.f32 %v1196, %v1613
        %v1672 = vadd.f32 %v1198, %v1615
        %v1673 = vadd.f32 %v1201, %v1618
        %v1674 = vadd.f32 %v1203, %v1620
        %v1675 = vadd.f32 %v1206, %v1623
        %v1676 = vadd.f32 %v1208, %v1625
        %v1677 = vadd.f32 %v1211, %v1628
        %v1678 = vadd.f32 %v1213, %v1630
        %v1679 = vadd.f32 %v1216, %v1633
        %v1680 = vadd.f32 %v1218, %v1635
        %v1681 = vadd.f32 %v1221, %v1638
        %v1682 = vadd.f32 %v1223, %v1640
        %v1683 = vadd.f32 %v1226, %v1643
        %v1684 = vadd.f32 %v1228, %v1645
        %v1685 = vadd.f32 %v1231, %v1648
        %v1686 = vadd.f32 %v1233, %v1650
        %v1687 = vadd.f32 %v1236, %v1653
        %v1688 = vadd.f32 %v1238, %v1655
        %v1690 = vshrl.u32 %v462, 16
        %v1692 = vrot.slane %v1690, 7
        %v1693 = vrot.slane %v1692, 4
        %v1695 = vshrl.u32 %v463, 16
        %v1697 = vrot.slane %v1695, 7
        %v1698 = vshll.u32 %v463, 16
        %v1700 = vor.u32 %v1697, %v1698
        %v1701 = vsel %vm471, %v1693, %v1700
        %v1702 = vrot.slane %v1697, 4
        %v1704 = vshrl.u32 %v464, 16
        %v1706 = vrot.slane %v1704, 7
        %v1707 = vshll.u32 %v464, 16
        %v1709 = vor.u32 %v1706, %v1707
        %v1710 = vsel %vm471, %v1702, %v1709
        %s1711 = scalar_lea.vmem %s1, 6
        %v1712 = vld [vmem:[%s1711] sm:$0x3]
        %v1713 = vunpack.c.l.b16 %v1701
        %v1714 = vunpack.c.l.b16 %v1710
        %v1715 = vpack.c.b16 %v1714, %v1713
        %v1717 = vsel %vm907, %v1715, 0
        %v1720 = vand.u32 %v1712, %v959
        %1722 = vmatpush.bf16.msra.mxu0 0
        %1723 = vmatpush.bf16.msra.mxu0 0
        %1724 = vmatpush.bf16.msra.mxu0 0
        %1725 = vmatpush.bf16.msra.mxu0 0
        %1726 = vmatpush.bf16.msra.mxu0 0
        %1727 = vmatpush.bf16.msra.mxu0 0
        %1728 = vmatpush.bf16.msra.mxu0 0
        %1729 = vmatpush.bf16.msra.mxu0 %v1720
        %1730 = vmatmul.bf16.gmra.mxu0 %v1104
        %v1731 = vpop.f32.mrf.mxu0
        %v1732 = vadd.f32 0.0, %v1731
        %v1733 = vpop.f32.mrf.mxu0
        %v1734 = vadd.f32 0.0, %v1733
        %1735 = vmatmul.bf16.gmra.mxu0 %v1107
        %v1736 = vpop.f32.mrf.mxu0
        %v1737 = vadd.f32 0.0, %v1736
        %v1738 = vpop.f32.mrf.mxu0
        %v1739 = vadd.f32 0.0, %v1738
        %1740 = vmatmul.bf16.gmra.mxu0 %v1110
        %v1741 = vpop.f32.mrf.mxu0
        %v1742 = vadd.f32 0.0, %v1741
        %v1743 = vpop.f32.mrf.mxu0
        %v1744 = vadd.f32 0.0, %v1743
        %1745 = vmatmul.bf16.gmra.mxu0 %v1113
        %v1746 = vpop.f32.mrf.mxu0
        %v1747 = vadd.f32 0.0, %v1746
        %v1748 = vpop.f32.mrf.mxu0
        %v1749 = vadd.f32 0.0, %v1748
        %1750 = vmatmul.bf16.gmra.mxu0 %v1116
        %v1751 = vpop.f32.mrf.mxu0
        %v1752 = vadd.f32 0.0, %v1751
        %v1753 = vpop.f32.mrf.mxu0
        %v1754 = vadd.f32 0.0, %v1753
        %1755 = vmatmul.bf16.gmra.mxu0 %v1119
        %v1756 = vpop.f32.mrf.mxu0
        %v1757 = vadd.f32 0.0, %v1756
        %v1758 = vpop.f32.mrf.mxu0
        %v1759 = vadd.f32 0.0, %v1758
        %1760 = vmatmul.bf16.gmra.mxu0 %v1122
        %v1761 = vpop.f32.mrf.mxu0
        %v1762 = vadd.f32 0.0, %v1761
        %v1763 = vpop.f32.mrf.mxu0
        %v1764 = vadd.f32 0.0, %v1763
        %1765 = vmatmul.bf16.gmra.mxu0 %v1125
        %v1766 = vpop.f32.mrf.mxu0
        %v1767 = vadd.f32 0.0, %v1766
        %v1768 = vpop.f32.mrf.mxu0
        %v1769 = vadd.f32 0.0, %v1768
        %1770 = vmatmul.bf16.gmra.mxu0 %v1128
        %v1771 = vpop.f32.mrf.mxu0
        %v1772 = vadd.f32 0.0, %v1771
        %v1773 = vpop.f32.mrf.mxu0
        %v1774 = vadd.f32 0.0, %v1773
        %1775 = vmatmul.bf16.gmra.mxu0 %v1131
        %v1776 = vpop.f32.mrf.mxu0
        %v1777 = vadd.f32 0.0, %v1776
        %v1778 = vpop.f32.mrf.mxu0
        %v1779 = vadd.f32 0.0, %v1778
        %1780 = vmatmul.bf16.gmra.mxu0 %v1134
        %v1781 = vpop.f32.mrf.mxu0
        %v1782 = vadd.f32 0.0, %v1781
        %v1783 = vpop.f32.mrf.mxu0
        %v1784 = vadd.f32 0.0, %v1783
        %1785 = vmatmul.bf16.gmra.mxu0 %v1137
        %v1786 = vpop.f32.mrf.mxu0
        %v1787 = vadd.f32 0.0, %v1786
        %v1788 = vpop.f32.mrf.mxu0
        %v1789 = vadd.f32 0.0, %v1788
        %1790 = vmatmul.bf16.gmra.mxu0 %v1140
        %v1791 = vpop.f32.mrf.mxu0
        %v1792 = vadd.f32 0.0, %v1791
        %v1793 = vpop.f32.mrf.mxu0
        %v1794 = vadd.f32 0.0, %v1793
        %1795 = vmatmul.bf16.gmra.mxu0 %v1143
        %v1796 = vpop.f32.mrf.mxu0
        %v1797 = vadd.f32 0.0, %v1796
        %v1798 = vpop.f32.mrf.mxu0
        %v1799 = vadd.f32 0.0, %v1798
        %1800 = vmatmul.bf16.gmra.mxu0 %v1146
        %v1801 = vpop.f32.mrf.mxu0
        %v1802 = vadd.f32 0.0, %v1801
        %v1803 = vpop.f32.mrf.mxu0
        %v1804 = vadd.f32 0.0, %v1803
        %1805 = vmatmul.bf16.gmra.mxu0 %v1717
        %v1806 = vpop.f32.mrf.mxu0
        %v1807 = vadd.f32 0.0, %v1806
        %v1808 = vpop.f32.mrf.mxu0
        %v1809 = vadd.f32 0.0, %v1808
        %1810 = vdwg.mxu0
        %v1811 = vadd.f32 %v1657, %v1732
        %v1812 = vadd.f32 %v1658, %v1734
        %v1813 = vadd.f32 %v1659, %v1737
        %v1814 = vadd.f32 %v1660, %v1739
        %v1815 = vadd.f32 %v1661, %v1742
        %v1816 = vadd.f32 %v1662, %v1744
        %v1817 = vadd.f32 %v1663, %v1747
        %v1818 = vadd.f32 %v1664, %v1749
        %v1819 = vadd.f32 %v1665, %v1752
        %v1820 = vadd.f32 %v1666, %v1754
        %v1821 = vadd.f32 %v1667, %v1757
        %v1822 = vadd.f32 %v1668, %v1759
        %v1823 = vadd.f32 %v1669, %v1762
        %v1824 = vadd.f32 %v1670, %v1764
        %v1825 = vadd.f32 %v1671, %v1767
        %v1826 = vadd.f32 %v1672, %v1769
        %v1827 = vadd.f32 %v1673, %v1772
        %v1828 = vadd.f32 %v1674, %v1774
        %v1829 = vadd.f32 %v1675, %v1777
        %v1830 = vadd.f32 %v1676, %v1779
        %v1831 = vadd.f32 %v1677, %v1782
        %v1832 = vadd.f32 %v1678, %v1784
        %v1833 = vadd.f32 %v1679, %v1787
        %v1834 = vadd.f32 %v1680, %v1789
        %v1835 = vadd.f32 %v1681, %v1792
        %v1836 = vadd.f32 %v1682, %v1794
        %v1837 = vadd.f32 %v1683, %v1797
        %v1838 = vadd.f32 %v1684, %v1799
        %v1839 = vadd.f32 %v1685, %v1802
        %v1840 = vadd.f32 %v1686, %v1804
        %v1841 = vadd.f32 %v1687, %v1807
        %v1842 = vadd.f32 %v1688, %v1809
        %s1843 = scalar_lea.vmem %s1, 8
        %v1844 = vld [vmem:[%s1843] sm:$0x3]
        %v1847 = vunpack.c.l.b16 %v463
        %v1848 = vunpack.c.l.b16 %v464
        %v1849 = vpack.c.b16 %v1848, %v1847
        %v1851 = vsel %vm907, %v1849, 0
        %v1854 = vand.u32 %v1844, %v959
        %1856 = vmatpush.bf16.msra.mxu0 0
        %1857 = vmatpush.bf16.msra.mxu0 0
        %1858 = vmatpush.bf16.msra.mxu0 0
        %1859 = vmatpush.bf16.msra.mxu0 0
        %1860 = vmatpush.bf16.msra.mxu0 0
        %1861 = vmatpush.bf16.msra.mxu0 0
        %1862 = vmatpush.bf16.msra.mxu0 0
        %1863 = vmatpush.bf16.msra.mxu0 %v1854
        %1864 = vmatmul.bf16.gmra.mxu0 %v912
        %v1865 = vpop.f32.mrf.mxu0
        %v1866 = vadd.f32 0.0, %v1865
        %v1867 = vpop.f32.mrf.mxu0
        %v1868 = vadd.f32 0.0, %v1867
        %1869 = vmatmul.bf16.gmra.mxu0 %v915
        %v1870 = vpop.f32.mrf.mxu0
        %v1871 = vadd.f32 0.0, %v1870
        %v1872 = vpop.f32.mrf.mxu0
        %v1873 = vadd.f32 0.0, %v1872
        %1874 = vmatmul.bf16.gmra.mxu0 %v918
        %v1875 = vpop.f32.mrf.mxu0
        %v1876 = vadd.f32 0.0, %v1875
        %v1877 = vpop.f32.mrf.mxu0
        %v1878 = vadd.f32 0.0, %v1877
        %1879 = vmatmul.bf16.gmra.mxu0 %v921
        %v1880 = vpop.f32.mrf.mxu0
        %v1881 = vadd.f32 0.0, %v1880
        %v1882 = vpop.f32.mrf.mxu0
        %v1883 = vadd.f32 0.0, %v1882
        %1884 = vmatmul.bf16.gmra.mxu0 %v924
        %v1885 = vpop.f32.mrf.mxu0
        %v1886 = vadd.f32 0.0, %v1885
        %v1887 = vpop.f32.mrf.mxu0
        %v1888 = vadd.f32 0.0, %v1887
        %1889 = vmatmul.bf16.gmra.mxu0 %v927
        %v1890 = vpop.f32.mrf.mxu0
        %v1891 = vadd.f32 0.0, %v1890
        %v1892 = vpop.f32.mrf.mxu0
        %v1893 = vadd.f32 0.0, %v1892
        %1894 = vmatmul.bf16.gmra.mxu0 %v930
        %v1895 = vpop.f32.mrf.mxu0
        %v1896 = vadd.f32 0.0, %v1895
        %v1897 = vpop.f32.mrf.mxu0
        %v1898 = vadd.f32 0.0, %v1897
        %1899 = vmatmul.bf16.gmra.mxu0 %v933
        %v1900 = vpop.f32.mrf.mxu0
        %v1901 = vadd.f32 0.0, %v1900
        %v1902 = vpop.f32.mrf.mxu0
        %v1903 = vadd.f32 0.0, %v1902
        %1904 = vmatmul.bf16.gmra.mxu0 %v936
        %v1905 = vpop.f32.mrf.mxu0
        %v1906 = vadd.f32 0.0, %v1905
        %v1907 = vpop.f32.mrf.mxu0
        %v1908 = vadd.f32 0.0, %v1907
        %1909 = vmatmul.bf16.gmra.mxu0 %v939
        %v1910 = vpop.f32.mrf.mxu0
        %v1911 = vadd.f32 0.0, %v1910
        %v1912 = vpop.f32.mrf.mxu0
        %v1913 = vadd.f32 0.0, %v1912
        %1914 = vmatmul.bf16.gmra.mxu0 %v942
        %v1915 = vpop.f32.mrf.mxu0
        %v1916 = vadd.f32 0.0, %v1915
        %v1917 = vpop.f32.mrf.mxu0
        %v1918 = vadd.f32 0.0, %v1917
        %1919 = vmatmul.bf16.gmra.mxu0 %v945
        %v1920 = vpop.f32.mrf.mxu0
        %v1921 = vadd.f32 0.0, %v1920
        %v1922 = vpop.f32.mrf.mxu0
        %v1923 = vadd.f32 0.0, %v1922
        %1924 = vmatmul.bf16.gmra.mxu0 %v948
        %v1925 = vpop.f32.mrf.mxu0
        %v1926 = vadd.f32 0.0, %v1925
        %v1927 = vpop.f32.mrf.mxu0
        %v1928 = vadd.f32 0.0, %v1927
        %1929 = vmatmul.bf16.gmra.mxu0 %v951
        %v1930 = vpop.f32.mrf.mxu0
        %v1931 = vadd.f32 0.0, %v1930
        %v1932 = vpop.f32.mrf.mxu0
        %v1933 = vadd.f32 0.0, %v1932
        %1934 = vmatmul.bf16.gmra.mxu0 %v954
        %v1935 = vpop.f32.mrf.mxu0
        %v1936 = vadd.f32 0.0, %v1935
        %v1937 = vpop.f32.mrf.mxu0
        %v1938 = vadd.f32 0.0, %v1937
        %1939 = vmatmul.bf16.gmra.mxu0 %v1851
        %v1940 = vpop.f32.mrf.mxu0
        %v1941 = vadd.f32 0.0, %v1940
        %v1942 = vpop.f32.mrf.mxu0
        %v1943 = vadd.f32 0.0, %v1942
        %1944 = vdwg.mxu0
        %v1945 = vadd.f32 %v1811, %v1866
        %v1946 = vadd.f32 %v1812, %v1868
        %v1947 = vadd.f32 %v1813, %v1871
        %v1948 = vadd.f32 %v1814, %v1873
        %v1949 = vadd.f32 %v1815, %v1876
        %v1950 = vadd.f32 %v1816, %v1878
        %v1951 = vadd.f32 %v1817, %v1881
        %v1952 = vadd.f32 %v1818, %v1883
        %v1953 = vadd.f32 %v1819, %v1886
        %v1954 = vadd.f32 %v1820, %v1888
        %v1955 = vadd.f32 %v1821, %v1891
        %v1956 = vadd.f32 %v1822, %v1893
        %v1957 = vadd.f32 %v1823, %v1896
        %v1958 = vadd.f32 %v1824, %v1898
        %v1959 = vadd.f32 %v1825, %v1901
        %v1960 = vadd.f32 %v1826, %v1903
        %v1961 = vadd.f32 %v1827, %v1906
        %v1962 = vadd.f32 %v1828, %v1908
        %v1963 = vadd.f32 %v1829, %v1911
        %v1964 = vadd.f32 %v1830, %v1913
        %v1965 = vadd.f32 %v1831, %v1916
        %v1966 = vadd.f32 %v1832, %v1918
        %v1967 = vadd.f32 %v1833, %v1921
        %v1968 = vadd.f32 %v1834, %v1923
        %v1969 = vadd.f32 %v1835, %v1926
        %v1970 = vadd.f32 %v1836, %v1928
        %v1971 = vadd.f32 %v1837, %v1931
        %v1972 = vadd.f32 %v1838, %v1933
        %v1973 = vadd.f32 %v1839, %v1936
        %v1974 = vadd.f32 %v1840, %v1938
        %v1975 = vadd.f32 %v1841, %v1941
        %v1976 = vadd.f32 %v1842, %v1943
        %v1977 = vrot.slane %v1695, 4
        %v1978 = vrot.slane %v1698, 5
        %v1979 = vor.u32 %v1977, %v1978
        %v1980 = vrot.slane %v1979, 4
        %v1981 = vrot.slane %v1707, 5
        %v1982 = vsel %vm1242, %v1980, %v1981
        %v1983 = vrot.slane %v1704, 4
        %v1984 = vor.u32 %v1983, %v1981
        %v1985 = vrot.slane %v1984, 4
        %v1987 = vshll.u32 %v465, 16
        %v1989 = vrot.slane %v1987, 5
        %v1990 = vsel %vm1242, %v1985, %v1989
        %s1991 = scalar_lea.vmem %s1, 10
        %v1992 = vld [vmem:[%s1991] sm:$0x3]
        %v1993 = vunpack.c.l.b16 %v1982
        %v1994 = vunpack.c.l.b16 %v1990
        %v1995 = vpack.c.b16 %v1994, %v1993
        %v1997 = vsel %vm907, %v1995, 0
        %v2000 = vand.u32 %v1992, %v959
        %2002 = vmatpush.bf16.msra.mxu0 0
        %2003 = vmatpush.bf16.msra.mxu0 0
        %2004 = vmatpush.bf16.msra.mxu0 0
        %2005 = vmatpush.bf16.msra.mxu0 0
        %2006 = vmatpush.bf16.msra.mxu0 0
        %2007 = vmatpush.bf16.msra.mxu0 0
        %2008 = vmatpush.bf16.msra.mxu0 0
        %2009 = vmatpush.bf16.msra.mxu0 %v2000
        %2010 = vmatmul.bf16.gmra.mxu0 %v1521
        %v2011 = vpop.f32.mrf.mxu0
        %v2012 = vadd.f32 0.0, %v2011
        %v2013 = vpop.f32.mrf.mxu0
        %v2014 = vadd.f32 0.0, %v2013
        %2015 = vmatmul.bf16.gmra.mxu0 %v1524
        %v2016 = vpop.f32.mrf.mxu0
        %v2017 = vadd.f32 0.0, %v2016
        %v2018 = vpop.f32.mrf.mxu0
        %v2019 = vadd.f32 0.0, %v2018
        %2020 = vmatmul.bf16.gmra.mxu0 %v1527
        %v2021 = vpop.f32.mrf.mxu0
        %v2022 = vadd.f32 0.0, %v2021
        %v2023 = vpop.f32.mrf.mxu0
        %v2024 = vadd.f32 0.0, %v2023
        %2025 = vmatmul.bf16.gmra.mxu0 %v1530
        %v2026 = vpop.f32.mrf.mxu0
        %v2027 = vadd.f32 0.0, %v2026
        %v2028 = vpop.f32.mrf.mxu0
        %v2029 = vadd.f32 0.0, %v2028
        %2030 = vmatmul.bf16.gmra.mxu0 %v1533
        %v2031 = vpop.f32.mrf.mxu0
        %v2032 = vadd.f32 0.0, %v2031
        %v2033 = vpop.f32.mrf.mxu0
        %v2034 = vadd.f32 0.0, %v2033
        %2035 = vmatmul.bf16.gmra.mxu0 %v1536
        %v2036 = vpop.f32.mrf.mxu0
        %v2037 = vadd.f32 0.0, %v2036
        %v2038 = vpop.f32.mrf.mxu0
        %v2039 = vadd.f32 0.0, %v2038
        %2040 = vmatmul.bf16.gmra.mxu0 %v1539
        %v2041 = vpop.f32.mrf.mxu0
        %v2042 = vadd.f32 0.0, %v2041
        %v2043 = vpop.f32.mrf.mxu0
        %v2044 = vadd.f32 0.0, %v2043
        %2045 = vmatmul.bf16.gmra.mxu0 %v1542
        %v2046 = vpop.f32.mrf.mxu0
        %v2047 = vadd.f32 0.0, %v2046
        %v2048 = vpop.f32.mrf.mxu0
        %v2049 = vadd.f32 0.0, %v2048
        %2050 = vmatmul.bf16.gmra.mxu0 %v1545
        %v2051 = vpop.f32.mrf.mxu0
        %v2052 = vadd.f32 0.0, %v2051
        %v2053 = vpop.f32.mrf.mxu0
        %v2054 = vadd.f32 0.0, %v2053
        %2055 = vmatmul.bf16.gmra.mxu0 %v1548
        %v2056 = vpop.f32.mrf.mxu0
        %v2057 = vadd.f32 0.0, %v2056
        %v2058 = vpop.f32.mrf.mxu0
        %v2059 = vadd.f32 0.0, %v2058
        %2060 = vmatmul.bf16.gmra.mxu0 %v1551
        %v2061 = vpop.f32.mrf.mxu0
        %v2062 = vadd.f32 0.0, %v2061
        %v2063 = vpop.f32.mrf.mxu0
        %v2064 = vadd.f32 0.0, %v2063
        %2065 = vmatmul.bf16.gmra.mxu0 %v1554
        %v2066 = vpop.f32.mrf.mxu0
        %v2067 = vadd.f32 0.0, %v2066
        %v2068 = vpop.f32.mrf.mxu0
        %v2069 = vadd.f32 0.0, %v2068
        %2070 = vmatmul.bf16.gmra.mxu0 %v1557
        %v2071 = vpop.f32.mrf.mxu0
        %v2072 = vadd.f32 0.0, %v2071
        %v2073 = vpop.f32.mrf.mxu0
        %v2074 = vadd.f32 0.0, %v2073
        %2075 = vmatmul.bf16.gmra.mxu0 %v1560
        %v2076 = vpop.f32.mrf.mxu0
        %v2077 = vadd.f32 0.0, %v2076
        %v2078 = vpop.f32.mrf.mxu0
        %v2079 = vadd.f32 0.0, %v2078
        %2080 = vmatmul.bf16.gmra.mxu0 %v1563
        %v2081 = vpop.f32.mrf.mxu0
        %v2082 = vadd.f32 0.0, %v2081
        %v2083 = vpop.f32.mrf.mxu0
        %v2084 = vadd.f32 0.0, %v2083
        %2085 = vmatmul.bf16.gmra.mxu0 %v1997
        %v2086 = vpop.f32.mrf.mxu0
        %v2087 = vadd.f32 0.0, %v2086
        %v2088 = vpop.f32.mrf.mxu0
        %v2089 = vadd.f32 0.0, %v2088
        %2090 = vdwg.mxu0
        %v2091 = vadd.f32 %v1945, %v2012
        %v2092 = vadd.f32 %v1946, %v2014
        %v2093 = vadd.f32 %v1947, %v2017
        %v2094 = vadd.f32 %v1948, %v2019
        %v2095 = vadd.f32 %v1949, %v2022
        %v2096 = vadd.f32 %v1950, %v2024
        %v2097 = vadd.f32 %v1951, %v2027
        %v2098 = vadd.f32 %v1952, %v2029
        %v2099 = vadd.f32 %v1953, %v2032
        %v2100 = vadd.f32 %v1954, %v2034
        %v2101 = vadd.f32 %v1955, %v2037
        %v2102 = vadd.f32 %v1956, %v2039
        %v2103 = vadd.f32 %v1957, %v2042
        %v2104 = vadd.f32 %v1958, %v2044
        %v2105 = vadd.f32 %v1959, %v2047
        %v2106 = vadd.f32 %v1960, %v2049
        %v2107 = vadd.f32 %v1961, %v2052
        %v2108 = vadd.f32 %v1962, %v2054
        %v2109 = vadd.f32 %v1963, %v2057
        %v2110 = vadd.f32 %v1964, %v2059
        %v2111 = vadd.f32 %v1965, %v2062
        %v2112 = vadd.f32 %v1966, %v2064
        %v2113 = vadd.f32 %v1967, %v2067
        %v2114 = vadd.f32 %v1968, %v2069
        %v2115 = vadd.f32 %v1969, %v2072
        %v2116 = vadd.f32 %v1970, %v2074
        %v2117 = vadd.f32 %v1971, %v2077
        %v2118 = vadd.f32 %v1972, %v2079
        %v2119 = vadd.f32 %v1973, %v2082
        %v2120 = vadd.f32 %v1974, %v2084
        %v2121 = vadd.f32 %v1975, %v2087
        %v2122 = vadd.f32 %v1976, %v2089
        %v2124 = vshrl.u32 %v466, 16
        %v2126 = vrot.slane %v2124, 7
        %v2127 = vrot.slane %v2126, 4
        %v2129 = vshrl.u32 %v467, 16
        %v2131 = vrot.slane %v2129, 7
        %v2132 = vshll.u32 %v467, 16
        %v2134 = vor.u32 %v2131, %v2132
        %v2135 = vsel %vm471, %v2127, %v2134
        %v2136 = vrot.slane %v2131, 4
        %v2138 = vshrl.u32 %v468, 16
        %v2140 = vrot.slane %v2138, 7
        %v2141 = vshll.u32 %v468, 16
        %v2143 = vor.u32 %v2140, %v2141
        %v2144 = vsel %vm471, %v2136, %v2143
        %s2145 = scalar_lea.vmem %s1, 12
        %v2146 = vld [vmem:[%s2145] sm:$0x3]
        %v2147 = vunpack.c.l.b16 %v2135
        %v2148 = vunpack.c.l.b16 %v2144
        %v2149 = vpack.c.b16 %v2148, %v2147
        %v2151 = vsel %vm907, %v2149, 0
        %v2154 = vand.u32 %v2146, %v959
        %2156 = vmatpush.bf16.msra.mxu0 0
        %2157 = vmatpush.bf16.msra.mxu0 0
        %2158 = vmatpush.bf16.msra.mxu0 0
        %2159 = vmatpush.bf16.msra.mxu0 0
        %2160 = vmatpush.bf16.msra.mxu0 0
        %2161 = vmatpush.bf16.msra.mxu0 0
        %2162 = vmatpush.bf16.msra.mxu0 0
        %2163 = vmatpush.bf16.msra.mxu0 %v2154
        %2164 = vmatmul.bf16.gmra.mxu0 %v1107
        %v2165 = vpop.f32.mrf.mxu0
        %v2166 = vadd.f32 0.0, %v2165
        %v2167 = vpop.f32.mrf.mxu0
        %v2168 = vadd.f32 0.0, %v2167
        %2169 = vmatmul.bf16.gmra.mxu0 %v1110
        %v2170 = vpop.f32.mrf.mxu0
        %v2171 = vadd.f32 0.0, %v2170
        %v2172 = vpop.f32.mrf.mxu0
        %v2173 = vadd.f32 0.0, %v2172
        %2174 = vmatmul.bf16.gmra.mxu0 %v1113
        %v2175 = vpop.f32.mrf.mxu0
        %v2176 = vadd.f32 0.0, %v2175
        %v2177 = vpop.f32.mrf.mxu0
        %v2178 = vadd.f32 0.0, %v2177
        %2179 = vmatmul.bf16.gmra.mxu0 %v1116
        %v2180 = vpop.f32.mrf.mxu0
        %v2181 = vadd.f32 0.0, %v2180
        %v2182 = vpop.f32.mrf.mxu0
        %v2183 = vadd.f32 0.0, %v2182
        %2184 = vmatmul.bf16.gmra.mxu0 %v1119
        %v2185 = vpop.f32.mrf.mxu0
        %v2186 = vadd.f32 0.0, %v2185
        %v2187 = vpop.f32.mrf.mxu0
        %v2188 = vadd.f32 0.0, %v2187
        %2189 = vmatmul.bf16.gmra.mxu0 %v1122
        %v2190 = vpop.f32.mrf.mxu0
        %v2191 = vadd.f32 0.0, %v2190
        %v2192 = vpop.f32.mrf.mxu0
        %v2193 = vadd.f32 0.0, %v2192
        %2194 = vmatmul.bf16.gmra.mxu0 %v1125
        %v2195 = vpop.f32.mrf.mxu0
        %v2196 = vadd.f32 0.0, %v2195
        %v2197 = vpop.f32.mrf.mxu0
        %v2198 = vadd.f32 0.0, %v2197
        %2199 = vmatmul.bf16.gmra.mxu0 %v1128
        %v2200 = vpop.f32.mrf.mxu0
        %v2201 = vadd.f32 0.0, %v2200
        %v2202 = vpop.f32.mrf.mxu0
        %v2203 = vadd.f32 0.0, %v2202
        %2204 = vmatmul.bf16.gmra.mxu0 %v1131
        %v2205 = vpop.f32.mrf.mxu0
        %v2206 = vadd.f32 0.0, %v2205
        %v2207 = vpop.f32.mrf.mxu0
        %v2208 = vadd.f32 0.0, %v2207
        %2209 = vmatmul.bf16.gmra.mxu0 %v1134
        %v2210 = vpop.f32.mrf.mxu0
        %v2211 = vadd.f32 0.0, %v2210
        %v2212 = vpop.f32.mrf.mxu0
        %v2213 = vadd.f32 0.0, %v2212
        %2214 = vmatmul.bf16.gmra.mxu0 %v1137
        %v2215 = vpop.f32.mrf.mxu0
        %v2216 = vadd.f32 0.0, %v2215
        %v2217 = vpop.f32.mrf.mxu0
        %v2218 = vadd.f32 0.0, %v2217
        %2219 = vmatmul.bf16.gmra.mxu0 %v1140
        %v2220 = vpop.f32.mrf.mxu0
        %v2221 = vadd.f32 0.0, %v2220
        %v2222 = vpop.f32.mrf.mxu0
        %v2223 = vadd.f32 0.0, %v2222
        %2224 = vmatmul.bf16.gmra.mxu0 %v1143
        %v2225 = vpop.f32.mrf.mxu0
        %v2226 = vadd.f32 0.0, %v2225
        %v2227 = vpop.f32.mrf.mxu0
        %v2228 = vadd.f32 0.0, %v2227
        %2229 = vmatmul.bf16.gmra.mxu0 %v1146
        %v2230 = vpop.f32.mrf.mxu0
        %v2231 = vadd.f32 0.0, %v2230
        %v2232 = vpop.f32.mrf.mxu0
        %v2233 = vadd.f32 0.0, %v2232
        %2234 = vmatmul.bf16.gmra.mxu0 %v1717
        %v2235 = vpop.f32.mrf.mxu0
        %v2236 = vadd.f32 0.0, %v2235
        %v2237 = vpop.f32.mrf.mxu0
        %v2238 = vadd.f32 0.0, %v2237
        %2239 = vmatmul.bf16.gmra.mxu0 %v2151
        %v2240 = vpop.f32.mrf.mxu0
        %v2241 = vadd.f32 0.0, %v2240
        %v2242 = vpop.f32.mrf.mxu0
        %v2243 = vadd.f32 0.0, %v2242
        %2244 = vdwg.mxu0
        %v2245 = vadd.f32 %v2091, %v2166
        %v2246 = vadd.f32 %v2092, %v2168
        %v2247 = vadd.f32 %v2093, %v2171
        %v2248 = vadd.f32 %v2094, %v2173
        %v2249 = vadd.f32 %v2095, %v2176
        %v2250 = vadd.f32 %v2096, %v2178
        %v2251 = vadd.f32 %v2097, %v2181
        %v2252 = vadd.f32 %v2098, %v2183
        %v2253 = vadd.f32 %v2099, %v2186
        %v2254 = vadd.f32 %v2100, %v2188
        %v2255 = vadd.f32 %v2101, %v2191
        %v2256 = vadd.f32 %v2102, %v2193
        %v2257 = vadd.f32 %v2103, %v2196
        %v2258 = vadd.f32 %v2104, %v2198
        %v2259 = vadd.f32 %v2105, %v2201
        %v2260 = vadd.f32 %v2106, %v2203
        %v2261 = vadd.f32 %v2107, %v2206
        %v2262 = vadd.f32 %v2108, %v2208
        %v2263 = vadd.f32 %v2109, %v2211
        %v2264 = vadd.f32 %v2110, %v2213
        %v2265 = vadd.f32 %v2111, %v2216
        %v2266 = vadd.f32 %v2112, %v2218
        %v2267 = vadd.f32 %v2113, %v2221
        %v2268 = vadd.f32 %v2114, %v2223
        %v2269 = vadd.f32 %v2115, %v2226
        %v2270 = vadd.f32 %v2116, %v2228
        %v2271 = vadd.f32 %v2117, %v2231
        %v2272 = vadd.f32 %v2118, %v2233
        %v2273 = vadd.f32 %v2119, %v2236
        %v2274 = vadd.f32 %v2120, %v2238
        %v2275 = vadd.f32 %v2121, %v2241
        %v2276 = vadd.f32 %v2122, %v2243
        %s2277 = scalar_lea.vmem %s1, 14
        %v2278 = vld [vmem:[%s2277] sm:$0x3]
        %v2281 = vunpack.c.l.b16 %v467
        %v2282 = vunpack.c.l.b16 %v468
        %v2283 = vpack.c.b16 %v2282, %v2281
        %v2285 = vsel %vm907, %v2283, 0
        %v2288 = vand.u32 %v2278, %v959
        %2290 = vmatpush.bf16.msra.mxu0 0
        %2291 = vmatpush.bf16.msra.mxu0 0
        %2292 = vmatpush.bf16.msra.mxu0 0
        %2293 = vmatpush.bf16.msra.mxu0 0
        %2294 = vmatpush.bf16.msra.mxu0 0
        %2295 = vmatpush.bf16.msra.mxu0 0
        %2296 = vmatpush.bf16.msra.mxu0 0
        %2297 = vmatpush.bf16.msra.mxu0 %v2288
        %2298 = vmatmul.bf16.gmra.mxu0 %v915
        %v2299 = vpop.f32.mrf.mxu0
        %v2300 = vadd.f32 0.0, %v2299
        %v2301 = vpop.f32.mrf.mxu0
        %v2302 = vadd.f32 0.0, %v2301
        %2303 = vmatmul.bf16.gmra.mxu0 %v918
        %v2304 = vpop.f32.mrf.mxu0
        %v2305 = vadd.f32 0.0, %v2304
        %v2306 = vpop.f32.mrf.mxu0
        %v2307 = vadd.f32 0.0, %v2306
        %2308 = vmatmul.bf16.gmra.mxu0 %v921
        %v2309 = vpop.f32.mrf.mxu0
        %v2310 = vadd.f32 0.0, %v2309
        %v2311 = vpop.f32.mrf.mxu0
        %v2312 = vadd.f32 0.0, %v2311
        %2313 = vmatmul.bf16.gmra.mxu0 %v924
        %v2314 = vpop.f32.mrf.mxu0
        %v2315 = vadd.f32 0.0, %v2314
        %v2316 = vpop.f32.mrf.mxu0
        %v2317 = vadd.f32 0.0, %v2316
        %2318 = vmatmul.bf16.gmra.mxu0 %v927
        %v2319 = vpop.f32.mrf.mxu0
        %v2320 = vadd.f32 0.0, %v2319
        %v2321 = vpop.f32.mrf.mxu0
        %v2322 = vadd.f32 0.0, %v2321
        %2323 = vmatmul.bf16.gmra.mxu0 %v930
        %v2324 = vpop.f32.mrf.mxu0
        %v2325 = vadd.f32 0.0, %v2324
        %v2326 = vpop.f32.mrf.mxu0
        %v2327 = vadd.f32 0.0, %v2326
        %2328 = vmatmul.bf16.gmra.mxu0 %v933
        %v2329 = vpop.f32.mrf.mxu0
        %v2330 = vadd.f32 0.0, %v2329
        %v2331 = vpop.f32.mrf.mxu0
        %v2332 = vadd.f32 0.0, %v2331
        %2333 = vmatmul.bf16.gmra.mxu0 %v936
        %v2334 = vpop.f32.mrf.mxu0
        %v2335 = vadd.f32 0.0, %v2334
        %v2336 = vpop.f32.mrf.mxu0
        %v2337 = vadd.f32 0.0, %v2336
        %2338 = vmatmul.bf16.gmra.mxu0 %v939
        %v2339 = vpop.f32.mrf.mxu0
        %v2340 = vadd.f32 0.0, %v2339
        %v2341 = vpop.f32.mrf.mxu0
        %v2342 = vadd.f32 0.0, %v2341
        %2343 = vmatmul.bf16.gmra.mxu0 %v942
        %v2344 = vpop.f32.mrf.mxu0
        %v2345 = vadd.f32 0.0, %v2344
        %v2346 = vpop.f32.mrf.mxu0
        %v2347 = vadd.f32 0.0, %v2346
        %2348 = vmatmul.bf16.gmra.mxu0 %v945
        %v2349 = vpop.f32.mrf.mxu0
        %v2350 = vadd.f32 0.0, %v2349
        %v2351 = vpop.f32.mrf.mxu0
        %v2352 = vadd.f32 0.0, %v2351
        %2353 = vmatmul.bf16.gmra.mxu0 %v948
        %v2354 = vpop.f32.mrf.mxu0
        %v2355 = vadd.f32 0.0, %v2354
        %v2356 = vpop.f32.mrf.mxu0
        %v2357 = vadd.f32 0.0, %v2356
        %2358 = vmatmul.bf16.gmra.mxu0 %v951
        %v2359 = vpop.f32.mrf.mxu0
        %v2360 = vadd.f32 0.0, %v2359
        %v2361 = vpop.f32.mrf.mxu0
        %v2362 = vadd.f32 0.0, %v2361
        %2363 = vmatmul.bf16.gmra.mxu0 %v954
        %v2364 = vpop.f32.mrf.mxu0
        %v2365 = vadd.f32 0.0, %v2364
        %v2366 = vpop.f32.mrf.mxu0
        %v2367 = vadd.f32 0.0, %v2366
        %2368 = vmatmul.bf16.gmra.mxu0 %v1851
        %v2369 = vpop.f32.mrf.mxu0
        %v2370 = vadd.f32 0.0, %v2369
        %v2371 = vpop.f32.mrf.mxu0
        %v2372 = vadd.f32 0.0, %v2371
        %2373 = vmatmul.bf16.gmra.mxu0 %v2285
        %v2374 = vpop.f32.mrf.mxu0
        %v2375 = vadd.f32 0.0, %v2374
        %v2376 = vpop.f32.mrf.mxu0
        %v2377 = vadd.f32 0.0, %v2376
        %2378 = vdwg.mxu0
        %v2379 = vadd.f32 %v2245, %v2300
        %v2380 = vadd.f32 %v2246, %v2302
        %v2381 = vadd.f32 %v2247, %v2305
        %v2382 = vadd.f32 %v2248, %v2307
        %v2383 = vadd.f32 %v2249, %v2310
        %v2384 = vadd.f32 %v2250, %v2312
        %v2385 = vadd.f32 %v2251, %v2315
        %v2386 = vadd.f32 %v2252, %v2317
        %v2387 = vadd.f32 %v2253, %v2320
        %v2388 = vadd.f32 %v2254, %v2322
        %v2389 = vadd.f32 %v2255, %v2325
        %v2390 = vadd.f32 %v2256, %v2327
        %v2391 = vadd.f32 %v2257, %v2330
        %v2392 = vadd.f32 %v2258, %v2332
        %v2393 = vadd.f32 %v2259, %v2335
        %v2394 = vadd.f32 %v2260, %v2337
        %v2395 = vadd.f32 %v2261, %v2340
        %v2396 = vadd.f32 %v2262, %v2342
        %v2397 = vadd.f32 %v2263, %v2345
        %v2398 = vadd.f32 %v2264, %v2347
        %v2399 = vadd.f32 %v2265, %v2350
        %v2400 = vadd.f32 %v2266, %v2352
        %v2401 = vadd.f32 %v2267, %v2355
        %v2402 = vadd.f32 %v2268, %v2357
        %v2403 = vadd.f32 %v2269, %v2360
        %v2404 = vadd.f32 %v2270, %v2362
        %v2405 = vadd.f32 %v2271, %v2365
        %v2406 = vadd.f32 %v2272, %v2367
        %v2407 = vadd.f32 %v2273, %v2370
        %v2408 = vadd.f32 %v2274, %v2372
        %v2409 = vadd.f32 %v2275, %v2375
        %v2410 = vadd.f32 %v2276, %v2377
        %v2411 = vrot.slane %v2129, 4
        %v2412 = vrot.slane %v2132, 5
        %v2413 = vor.u32 %v2411, %v2412
        %v2414 = vrot.slane %v2413, 4
        %v2415 = vrot.slane %v2141, 5
        %v2416 = vsel %vm1242, %v2414, %v2415
        %v2417 = vrot.slane %v2138, 4
        %v2418 = vor.u32 %v2417, %v2415
        %v2419 = vrot.slane %v2418, 4
        %v2421 = vshll.u32 %v469, 16
        %v2423 = vrot.slane %v2421, 5
        %v2424 = vsel %vm1242, %v2419, %v2423
        %s2425 = scalar_lea.vmem %s1, 16
        %v2426 = vld [vmem:[%s2425] sm:$0x3]
        %v2427 = vunpack.c.l.b16 %v2416
        %v2428 = vunpack.c.l.b16 %v2424
        %v2429 = vpack.c.b16 %v2428, %v2427
        %v2431 = vsel %vm907, %v2429, 0
        %v2434 = vand.u32 %v2426, %v959
        %2436 = vmatpush.bf16.msra.mxu0 0
        %2437 = vmatpush.bf16.msra.mxu0 0
        %2438 = vmatpush.bf16.msra.mxu0 0
        %2439 = vmatpush.bf16.msra.mxu0 0
        %2440 = vmatpush.bf16.msra.mxu0 0
        %2441 = vmatpush.bf16.msra.mxu0 0
        %2442 = vmatpush.bf16.msra.mxu0 0
        %2443 = vmatpush.bf16.msra.mxu0 %v2434
        %2444 = vmatmul.bf16.gmra.mxu0 %v1524
        %v2445 = vpop.f32.mrf.mxu0
        %v2446 = vadd.f32 0.0, %v2445
        %v2447 = vpop.f32.mrf.mxu0
        %v2448 = vadd.f32 0.0, %v2447
        %2449 = vmatmul.bf16.gmra.mxu0 %v1527
        %v2450 = vpop.f32.mrf.mxu0
        %v2451 = vadd.f32 0.0, %v2450
        %v2452 = vpop.f32.mrf.mxu0
        %v2453 = vadd.f32 0.0, %v2452
        %2454 = vmatmul.bf16.gmra.mxu0 %v1530
        %v2455 = vpop.f32.mrf.mxu0
        %v2456 = vadd.f32 0.0, %v2455
        %v2457 = vpop.f32.mrf.mxu0
        %v2458 = vadd.f32 0.0, %v2457
        %2459 = vmatmul.bf16.gmra.mxu0 %v1533
        %v2460 = vpop.f32.mrf.mxu0
        %v2461 = vadd.f32 0.0, %v2460
        %v2462 = vpop.f32.mrf.mxu0
        %v2463 = vadd.f32 0.0, %v2462
        %2464 = vmatmul.bf16.gmra.mxu0 %v1536
        %v2465 = vpop.f32.mrf.mxu0
        %v2466 = vadd.f32 0.0, %v2465
        %v2467 = vpop.f32.mrf.mxu0
        %v2468 = vadd.f32 0.0, %v2467
        %2469 = vmatmul.bf16.gmra.mxu0 %v1539
        %v2470 = vpop.f32.mrf.mxu0
        %v2471 = vadd.f32 0.0, %v2470
        %v2472 = vpop.f32.mrf.mxu0
        %v2473 = vadd.f32 0.0, %v2472
        %2474 = vmatmul.bf16.gmra.mxu0 %v1542
        %v2475 = vpop.f32.mrf.mxu0
        %v2476 = vadd.f32 0.0, %v2475
        %v2477 = vpop.f32.mrf.mxu0
        %v2478 = vadd.f32 0.0, %v2477
        %2479 = vmatmul.bf16.gmra.mxu0 %v1545
        %v2480 = vpop.f32.mrf.mxu0
        %v2481 = vadd.f32 0.0, %v2480
        %v2482 = vpop.f32.mrf.mxu0
        %v2483 = vadd.f32 0.0, %v2482
        %2484 = vmatmul.bf16.gmra.mxu0 %v1548
        %v2485 = vpop.f32.mrf.mxu0
        %v2486 = vadd.f32 0.0, %v2485
        %v2487 = vpop.f32.mrf.mxu0
        %v2488 = vadd.f32 0.0, %v2487
        %2489 = vmatmul.bf16.gmra.mxu0 %v1551
        %v2490 = vpop.f32.mrf.mxu0
        %v2491 = vadd.f32 0.0, %v2490
        %v2492 = vpop.f32.mrf.mxu0
        %v2493 = vadd.f32 0.0, %v2492
        %2494 = vmatmul.bf16.gmra.mxu0 %v1554
        %v2495 = vpop.f32.mrf.mxu0
        %v2496 = vadd.f32 0.0, %v2495
        %v2497 = vpop.f32.mrf.mxu0
        %v2498 = vadd.f32 0.0, %v2497
        %2499 = vmatmul.bf16.gmra.mxu0 %v1557
        %v2500 = vpop.f32.mrf.mxu0
        %v2501 = vadd.f32 0.0, %v2500
        %v2502 = vpop.f32.mrf.mxu0
        %v2503 = vadd.f32 0.0, %v2502
        %2504 = vmatmul.bf16.gmra.mxu0 %v1560
        %v2505 = vpop.f32.mrf.mxu0
        %v2506 = vadd.f32 0.0, %v2505
        %v2507 = vpop.f32.mrf.mxu0
        %v2508 = vadd.f32 0.0, %v2507
        %2509 = vmatmul.bf16.gmra.mxu0 %v1563
        %v2510 = vpop.f32.mrf.mxu0
        %v2511 = vadd.f32 0.0, %v2510
        %v2512 = vpop.f32.mrf.mxu0
        %v2513 = vadd.f32 0.0, %v2512
        %2514 = vmatmul.bf16.gmra.mxu0 %v1997
        %v2515 = vpop.f32.mrf.mxu0
        %v2516 = vadd.f32 0.0, %v2515
        %v2517 = vpop.f32.mrf.mxu0
        %v2518 = vadd.f32 0.0, %v2517
        %2519 = vmatmul.bf16.gmra.mxu0 %v2431
        %v2520 = vpop.f32.mrf.mxu0
        %v2521 = vadd.f32 0.0, %v2520
        %v2522 = vpop.f32.mrf.mxu0
        %v2523 = vadd.f32 0.0, %v2522
        %2524 = vdwg.mxu0
        %v2525 = vadd.f32 %v2379, %v2446
        %v2526 = vadd.f32 %v2380, %v2448
        %v2527 = vadd.f32 %v2381, %v2451
        %v2528 = vadd.f32 %v2382, %v2453
        %v2529 = vadd.f32 %v2383, %v2456
        %v2530 = vadd.f32 %v2384, %v2458
        %v2531 = vadd.f32 %v2385, %v2461
        %v2532 = vadd.f32 %v2386, %v2463
        %v2533 = vadd.f32 %v2387, %v2466
        %v2534 = vadd.f32 %v2388, %v2468
        %v2535 = vadd.f32 %v2389, %v2471
        %v2536 = vadd.f32 %v2390, %v2473
        %v2537 = vadd.f32 %v2391, %v2476
        %v2538 = vadd.f32 %v2392, %v2478
        %v2539 = vadd.f32 %v2393, %v2481
        %v2540 = vadd.f32 %v2394, %v2483
        %v2541 = vadd.f32 %v2395, %v2486
        %v2542 = vadd.f32 %v2396, %v2488
        %v2543 = vadd.f32 %v2397, %v2491
        %v2544 = vadd.f32 %v2398, %v2493
        %v2545 = vadd.f32 %v2399, %v2496
        %v2546 = vadd.f32 %v2400, %v2498
        %v2547 = vadd.f32 %v2401, %v2501
        %v2548 = vadd.f32 %v2402, %v2503
        %v2549 = vadd.f32 %v2403, %v2506
        %v2550 = vadd.f32 %v2404, %v2508
        %v2551 = vadd.f32 %v2405, %v2511
        %v2552 = vadd.f32 %v2406, %v2513
        %v2553 = vadd.f32 %v2407, %v2516
        %v2554 = vadd.f32 %v2408, %v2518
        %v2555 = vadd.f32 %v2409, %v2521
        %v2556 = vadd.f32 %v2410, %v2523
        %v2558 = vperm.slane %v397, 0
        %v2560 = vadd.f32 %v2525, %v2558
        %v2561 = vadd.f32 %v2526, %v2558
        %v2562 = vadd.f32 %v2527, %v2558
        %v2563 = vadd.f32 %v2528, %v2558
        %v2564 = vadd.f32 %v2529, %v2558
        %v2565 = vadd.f32 %v2530, %v2558
        %v2566 = vadd.f32 %v2531, %v2558
        %v2567 = vadd.f32 %v2532, %v2558
        %v2568 = vadd.f32 %v2533, %v2558
        %v2569 = vadd.f32 %v2534, %v2558
        %v2570 = vadd.f32 %v2535, %v2558
        %v2571 = vadd.f32 %v2536, %v2558
        %v2572 = vadd.f32 %v2537, %v2558
        %v2573 = vadd.f32 %v2538, %v2558
        %v2574 = vadd.f32 %v2539, %v2558
        %v2575 = vadd.f32 %v2540, %v2558
        %v2576 = vadd.f32 %v2541, %v2558
        %v2577 = vadd.f32 %v2542, %v2558
        %v2578 = vadd.f32 %v2543, %v2558
        %v2579 = vadd.f32 %v2544, %v2558
        %v2580 = vadd.f32 %v2545, %v2558
        %v2581 = vadd.f32 %v2546, %v2558
        %v2582 = vadd.f32 %v2547, %v2558
        %v2583 = vadd.f32 %v2548, %v2558
        %v2584 = vadd.f32 %v2549, %v2558
        %v2585 = vadd.f32 %v2550, %v2558
        %v2586 = vadd.f32 %v2551, %v2558
        %v2587 = vadd.f32 %v2552, %v2558
        %v2588 = vadd.f32 %v2553, %v2558
        %v2589 = vadd.f32 %v2554, %v2558
        %v2590 = vadd.f32 %v2555, %v2558
        %v2591 = vadd.f32 %v2556, %v2558
        %v2592 = vsub.f32 0.0, %v2560
        %v2593 = vsub.f32 0.0, %v2561
        %v2594 = vsub.f32 0.0, %v2562
        %v2595 = vsub.f32 0.0, %v2563
        %v2596 = vsub.f32 0.0, %v2564
        %v2597 = vsub.f32 0.0, %v2565
        %v2598 = vsub.f32 0.0, %v2566
        %v2599 = vsub.f32 0.0, %v2567
        %v2600 = vsub.f32 0.0, %v2568
        %v2601 = vsub.f32 0.0, %v2569
        %v2602 = vsub.f32 0.0, %v2570
        %v2603 = vsub.f32 0.0, %v2571
        %v2604 = vsub.f32 0.0, %v2572
        %v2605 = vsub.f32 0.0, %v2573
        %v2606 = vsub.f32 0.0, %v2574
        %v2607 = vsub.f32 0.0, %v2575
        %v2608 = vsub.f32 0.0, %v2576
        %v2609 = vsub.f32 0.0, %v2577
        %v2610 = vsub.f32 0.0, %v2578
        %v2611 = vsub.f32 0.0, %v2579
        %v2612 = vsub.f32 0.0, %v2580
        %v2613 = vsub.f32 0.0, %v2581
        %v2614 = vsub.f32 0.0, %v2582
        %v2615 = vsub.f32 0.0, %v2583
        %v2616 = vsub.f32 0.0, %v2584
        %v2617 = vsub.f32 0.0, %v2585
        %v2618 = vsub.f32 0.0, %v2586
        %v2619 = vsub.f32 0.0, %v2587
        %v2620 = vsub.f32 0.0, %v2588
        %v2621 = vsub.f32 0.0, %v2589
        %v2622 = vsub.f32 0.0, %v2590
        %v2623 = vsub.f32 0.0, %v2591
        %v2624 = vmul.f32 %v2592, 1.442695
        %v2625 = vpow.pop %v2624
        %v2626 = vmul.f32 %v2593, 1.442695
        %v2627 = vpow.pop %v2626
        %v2628 = vmul.f32 %v2594, 1.442695
        %v2629 = vpow.pop %v2628
        %v2630 = vmul.f32 %v2595, 1.442695
        %v2631 = vpow.pop %v2630
        %v2632 = vmul.f32 %v2596, 1.442695
        %v2633 = vpow.pop %v2632
        %v2634 = vmul.f32 %v2597, 1.442695
        %v2635 = vpow.pop %v2634
        %v2636 = vmul.f32 %v2598, 1.442695
        %v2637 = vpow.pop %v2636
        %v2638 = vmul.f32 %v2599, 1.442695
        %v2639 = vpow.pop %v2638
        %v2640 = vmul.f32 %v2600, 1.442695
        %v2641 = vpow.pop %v2640
        %v2642 = vmul.f32 %v2601, 1.442695
        %v2643 = vpow.pop %v2642
        %v2644 = vmul.f32 %v2602, 1.442695
        %v2645 = vpow.pop %v2644
        %v2646 = vmul.f32 %v2603, 1.442695
        %v2647 = vpow.pop %v2646
        %v2648 = vmul.f32 %v2604, 1.442695
        %v2649 = vpow.pop %v2648
        %v2650 = vmul.f32 %v2605, 1.442695
        %v2651 = vpow.pop %v2650
        %v2652 = vmul.f32 %v2606, 1.442695
        %v2653 = vpow.pop %v2652
        %v2654 = vmul.f32 %v2607, 1.442695
        %v2655 = vpow.pop %v2654
        %v2656 = vmul.f32 %v2608, 1.442695
        %v2657 = vpow.pop %v2656
        %v2658 = vmul.f32 %v2609, 1.442695
        %v2659 = vpow.pop %v2658
        %v2660 = vmul.f32 %v2610, 1.442695
        %v2661 = vpow.pop %v2660
        %v2662 = vmul.f32 %v2611, 1.442695
        %v2663 = vpow.pop %v2662
        %v2664 = vmul.f32 %v2612, 1.442695
        %v2665 = vpow.pop %v2664
        %v2666 = vmul.f32 %v2613, 1.442695
        %v2667 = vpow.pop %v2666
        %v2668 = vmul.f32 %v2614, 1.442695
        %v2669 = vpow.pop %v2668
        %v2670 = vmul.f32 %v2615, 1.442695
        %v2671 = vpow.pop %v2670
        %v2672 = vmul.f32 %v2616, 1.442695
        %v2673 = vpow.pop %v2672
        %v2674 = vmul.f32 %v2617, 1.442695
        %v2675 = vpow.pop %v2674
        %v2676 = vmul.f32 %v2618, 1.442695
        %v2677 = vpow.pop %v2676
        %v2678 = vmul.f32 %v2619, 1.442695
        %v2679 = vpow.pop %v2678
        %v2680 = vmul.f32 %v2620, 1.442695
        %v2681 = vpow.pop %v2680
        %v2682 = vmul.f32 %v2621, 1.442695
        %v2683 = vpow.pop %v2682
        %v2684 = vmul.f32 %v2622, 1.442695
        %v2685 = vpow.pop %v2684
        %v2686 = vmul.f32 %v2623, 1.442695
        %v2687 = vpow.pop %v2686
        %v2688 = vadd.f32 %v2625, 1.0
        %v2689 = vadd.f32 %v2627, 1.0
        %v2690 = vadd.f32 %v2629, 1.0
        %v2691 = vadd.f32 %v2631, 1.0
        %v2692 = vadd.f32 %v2633, 1.0
        %v2693 = vadd.f32 %v2635, 1.0
        %v2694 = vadd.f32 %v2637, 1.0
        %v2695 = vadd.f32 %v2639, 1.0
        %v2696 = vadd.f32 %v2641, 1.0
        %v2697 = vadd.f32 %v2643, 1.0
        %v2698 = vadd.f32 %v2645, 1.0
        %v2699 = vadd.f32 %v2647, 1.0
        %v2700 = vadd.f32 %v2649, 1.0
        %v2701 = vadd.f32 %v2651, 1.0
        %v2702 = vadd.f32 %v2653, 1.0
        %v2703 = vadd.f32 %v2655, 1.0
        %v2704 = vadd.f32 %v2657, 1.0
        %v2705 = vadd.f32 %v2659, 1.0
        %v2706 = vadd.f32 %v2661, 1.0
        %v2707 = vadd.f32 %v2663, 1.0
        %v2708 = vadd.f32 %v2665, 1.0
        %v2709 = vadd.f32 %v2667, 1.0
        %v2710 = vadd.f32 %v2669, 1.0
        %v2711 = vadd.f32 %v2671, 1.0
        %v2712 = vadd.f32 %v2673, 1.0
        %v2713 = vadd.f32 %v2675, 1.0
        %v2714 = vadd.f32 %v2677, 1.0
        %v2715 = vadd.f32 %v2679, 1.0
        %v2716 = vadd.f32 %v2681, 1.0
        %v2717 = vadd.f32 %v2683, 1.0
        %v2718 = vadd.f32 %v2685, 1.0
        %v2719 = vadd.f32 %v2687, 1.0
        %v2720 = vrcp.pop %v2688
        %v2721 = vmul.f32 %v2688, %v2720
        %v2722 = vsub.f32 1.0, %v2721
        %v2723 = vmul.f32 %v2720, %v2722
        %v2724 = vadd.f32 %v2720, %v2723
        %vm2725 = vweird.f32 %v2688
        %vm2726 = vweird.f32 %v2720
        %vm2727 = vmor %vm2725, %vm2726
        %v2728 = vsel %vm2727, %v2720, %v2724
        %v2729 = vand.u32 2147483647, %v2688
        %vm2730 = vcmp.eq.f32.partialorder %v2729, 8.507059e+37
        %v2731 = vand.u32 %v2688, 2147483648
        %v2732 = vor.u32 1.1754944e-38, %v2731
        %v2733 = vsel %vm2730, %v2732, %v2728
        %v2734 = vmul.f32 1.0, %v2733
        %v2735 = vrcp.pop %v2689
        %v2736 = vmul.f32 %v2689, %v2735
        %v2737 = vsub.f32 1.0, %v2736
        %v2738 = vmul.f32 %v2735, %v2737
        %v2739 = vadd.f32 %v2735, %v2738
        %vm2740 = vweird.f32 %v2689
        %vm2741 = vweird.f32 %v2735
        %vm2742 = vmor %vm2740, %vm2741
        %v2743 = vsel %vm2742, %v2735, %v2739
        %v2744 = vand.u32 2147483647, %v2689
        %vm2745 = vcmp.eq.f32.partialorder %v2744, 8.507059e+37
        %v2746 = vand.u32 %v2689, 2147483648
        %v2747 = vor.u32 1.1754944e-38, %v2746
        %v2748 = vsel %vm2745, %v2747, %v2743
        %v2749 = vmul.f32 1.0, %v2748
        %v2750 = vrcp.pop %v2690
        %v2751 = vmul.f32 %v2690, %v2750
        %v2752 = vsub.f32 1.0, %v2751
        %v2753 = vmul.f32 %v2750, %v2752
        %v2754 = vadd.f32 %v2750, %v2753
        %vm2755 = vweird.f32 %v2690
        %vm2756 = vweird.f32 %v2750
        %vm2757 = vmor %vm2755, %vm2756
        %v2758 = vsel %vm2757, %v2750, %v2754
        %v2759 = vand.u32 2147483647, %v2690
        %vm2760 = vcmp.eq.f32.partialorder %v2759, 8.507059e+37
        %v2761 = vand.u32 %v2690, 2147483648
        %v2762 = vor.u32 1.1754944e-38, %v2761
        %v2763 = vsel %vm2760, %v2762, %v2758
        %v2764 = vmul.f32 1.0, %v2763
        %v2765 = vrcp.pop %v2691
        %v2766 = vmul.f32 %v2691, %v2765
        %v2767 = vsub.f32 1.0, %v2766
        %v2768 = vmul.f32 %v2765, %v2767
        %v2769 = vadd.f32 %v2765, %v2768
        %vm2770 = vweird.f32 %v2691
        %vm2771 = vweird.f32 %v2765
        %vm2772 = vmor %vm2770, %vm2771
        %v2773 = vsel %vm2772, %v2765, %v2769
        %v2774 = vand.u32 2147483647, %v2691
        %vm2775 = vcmp.eq.f32.partialorder %v2774, 8.507059e+37
        %v2776 = vand.u32 %v2691, 2147483648
        %v2777 = vor.u32 1.1754944e-38, %v2776
        %v2778 = vsel %vm2775, %v2777, %v2773
        %v2779 = vmul.f32 1.0, %v2778
        %v2780 = vrcp.pop %v2692
        %v2781 = vmul.f32 %v2692, %v2780
        %v2782 = vsub.f32 1.0, %v2781
        %v2783 = vmul.f32 %v2780, %v2782
        %v2784 = vadd.f32 %v2780, %v2783
        %vm2785 = vweird.f32 %v2692
        %vm2786 = vweird.f32 %v2780
        %vm2787 = vmor %vm2785, %vm2786
        %v2788 = vsel %vm2787, %v2780, %v2784
        %v2789 = vand.u32 2147483647, %v2692
        %vm2790 = vcmp.eq.f32.partialorder %v2789, 8.507059e+37
        %v2791 = vand.u32 %v2692, 2147483648
        %v2792 = vor.u32 1.1754944e-38, %v2791
        %v2793 = vsel %vm2790, %v2792, %v2788
        %v2794 = vmul.f32 1.0, %v2793
        %v2795 = vrcp.pop %v2693
        %v2796 = vmul.f32 %v2693, %v2795
        %v2797 = vsub.f32 1.0, %v2796
        %v2798 = vmul.f32 %v2795, %v2797
        %v2799 = vadd.f32 %v2795, %v2798
        %vm2800 = vweird.f32 %v2693
        %vm2801 = vweird.f32 %v2795
        %vm2802 = vmor %vm2800, %vm2801
        %v2803 = vsel %vm2802, %v2795, %v2799
        %v2804 = vand.u32 2147483647, %v2693
        %vm2805 = vcmp.eq.f32.partialorder %v2804, 8.507059e+37
        %v2806 = vand.u32 %v2693, 2147483648
        %v2807 = vor.u32 1.1754944e-38, %v2806
        %v2808 = vsel %vm2805, %v2807, %v2803
        %v2809 = vmul.f32 1.0, %v2808
        %v2810 = vrcp.pop %v2694
        %v2811 = vmul.f32 %v2694, %v2810
        %v2812 = vsub.f32 1.0, %v2811
        %v2813 = vmul.f32 %v2810, %v2812
        %v2814 = vadd.f32 %v2810, %v2813
        %vm2815 = vweird.f32 %v2694
        %vm2816 = vweird.f32 %v2810
        %vm2817 = vmor %vm2815, %vm2816
        %v2818 = vsel %vm2817, %v2810, %v2814
        %v2819 = vand.u32 2147483647, %v2694
        %vm2820 = vcmp.eq.f32.partialorder %v2819, 8.507059e+37
        %v2821 = vand.u32 %v2694, 2147483648
        %v2822 = vor.u32 1.1754944e-38, %v2821
        %v2823 = vsel %vm2820, %v2822, %v2818
        %v2824 = vmul.f32 1.0, %v2823
        %v2825 = vrcp.pop %v2695
        %v2826 = vmul.f32 %v2695, %v2825
        %v2827 = vsub.f32 1.0, %v2826
        %v2828 = vmul.f32 %v2825, %v2827
        %v2829 = vadd.f32 %v2825, %v2828
        %vm2830 = vweird.f32 %v2695
        %vm2831 = vweird.f32 %v2825
        %vm2832 = vmor %vm2830, %vm2831
        %v2833 = vsel %vm2832, %v2825, %v2829
        %v2834 = vand.u32 2147483647, %v2695
        %vm2835 = vcmp.eq.f32.partialorder %v2834, 8.507059e+37
        %v2836 = vand.u32 %v2695, 2147483648
        %v2837 = vor.u32 1.1754944e-38, %v2836
        %v2838 = vsel %vm2835, %v2837, %v2833
        %v2839 = vmul.f32 1.0, %v2838
        %v2840 = vrcp.pop %v2696
        %v2841 = vmul.f32 %v2696, %v2840
        %v2842 = vsub.f32 1.0, %v2841
        %v2843 = vmul.f32 %v2840, %v2842
        %v2844 = vadd.f32 %v2840, %v2843
        %vm2845 = vweird.f32 %v2696
        %vm2846 = vweird.f32 %v2840
        %vm2847 = vmor %vm2845, %vm2846
        %v2848 = vsel %vm2847, %v2840, %v2844
        %v2849 = vand.u32 2147483647, %v2696
        %vm2850 = vcmp.eq.f32.partialorder %v2849, 8.507059e+37
        %v2851 = vand.u32 %v2696, 2147483648
        %v2852 = vor.u32 1.1754944e-38, %v2851
        %v2853 = vsel %vm2850, %v2852, %v2848
        %v2854 = vmul.f32 1.0, %v2853
        %v2855 = vrcp.pop %v2697
        %v2856 = vmul.f32 %v2697, %v2855
        %v2857 = vsub.f32 1.0, %v2856
        %v2858 = vmul.f32 %v2855, %v2857
        %v2859 = vadd.f32 %v2855, %v2858
        %vm2860 = vweird.f32 %v2697
        %vm2861 = vweird.f32 %v2855
        %vm2862 = vmor %vm2860, %vm2861
        %v2863 = vsel %vm2862, %v2855, %v2859
        %v2864 = vand.u32 2147483647, %v2697
        %vm2865 = vcmp.eq.f32.partialorder %v2864, 8.507059e+37
        %v2866 = vand.u32 %v2697, 2147483648
        %v2867 = vor.u32 1.1754944e-38, %v2866
        %v2868 = vsel %vm2865, %v2867, %v2863
        %v2869 = vmul.f32 1.0, %v2868
        %v2870 = vrcp.pop %v2698
        %v2871 = vmul.f32 %v2698, %v2870
        %v2872 = vsub.f32 1.0, %v2871
        %v2873 = vmul.f32 %v2870, %v2872
        %v2874 = vadd.f32 %v2870, %v2873
        %vm2875 = vweird.f32 %v2698
        %vm2876 = vweird.f32 %v2870
        %vm2877 = vmor %vm2875, %vm2876
        %v2878 = vsel %vm2877, %v2870, %v2874
        %v2879 = vand.u32 2147483647, %v2698
        %vm2880 = vcmp.eq.f32.partialorder %v2879, 8.507059e+37
        %v2881 = vand.u32 %v2698, 2147483648
        %v2882 = vor.u32 1.1754944e-38, %v2881
        %v2883 = vsel %vm2880, %v2882, %v2878
        %v2884 = vmul.f32 1.0, %v2883
        %v2885 = vrcp.pop %v2699
        %v2886 = vmul.f32 %v2699, %v2885
        %v2887 = vsub.f32 1.0, %v2886
        %v2888 = vmul.f32 %v2885, %v2887
        %v2889 = vadd.f32 %v2885, %v2888
        %vm2890 = vweird.f32 %v2699
        %vm2891 = vweird.f32 %v2885
        %vm2892 = vmor %vm2890, %vm2891
        %v2893 = vsel %vm2892, %v2885, %v2889
        %v2894 = vand.u32 2147483647, %v2699
        %vm2895 = vcmp.eq.f32.partialorder %v2894, 8.507059e+37
        %v2896 = vand.u32 %v2699, 2147483648
        %v2897 = vor.u32 1.1754944e-38, %v2896
        %v2898 = vsel %vm2895, %v2897, %v2893
        %v2899 = vmul.f32 1.0, %v2898
        %v2900 = vrcp.pop %v2700
        %v2901 = vmul.f32 %v2700, %v2900
        %v2902 = vsub.f32 1.0, %v2901
        %v2903 = vmul.f32 %v2900, %v2902
        %v2904 = vadd.f32 %v2900, %v2903
        %vm2905 = vweird.f32 %v2700
        %vm2906 = vweird.f32 %v2900
        %vm2907 = vmor %vm2905, %vm2906
        %v2908 = vsel %vm2907, %v2900, %v2904
        %v2909 = vand.u32 2147483647, %v2700
        %vm2910 = vcmp.eq.f32.partialorder %v2909, 8.507059e+37
        %v2911 = vand.u32 %v2700, 2147483648
        %v2912 = vor.u32 1.1754944e-38, %v2911
        %v2913 = vsel %vm2910, %v2912, %v2908
        %v2914 = vmul.f32 1.0, %v2913
        %v2915 = vrcp.pop %v2701
        %v2916 = vmul.f32 %v2701, %v2915
        %v2917 = vsub.f32 1.0, %v2916
        %v2918 = vmul.f32 %v2915, %v2917
        %v2919 = vadd.f32 %v2915, %v2918
        %vm2920 = vweird.f32 %v2701
        %vm2921 = vweird.f32 %v2915
        %vm2922 = vmor %vm2920, %vm2921
        %v2923 = vsel %vm2922, %v2915, %v2919
        %v2924 = vand.u32 2147483647, %v2701
        %vm2925 = vcmp.eq.f32.partialorder %v2924, 8.507059e+37
        %v2926 = vand.u32 %v2701, 2147483648
        %v2927 = vor.u32 1.1754944e-38, %v2926
        %v2928 = vsel %vm2925, %v2927, %v2923
        %v2929 = vmul.f32 1.0, %v2928
        %v2930 = vrcp.pop %v2702
        %v2931 = vmul.f32 %v2702, %v2930
        %v2932 = vsub.f32 1.0, %v2931
        %v2933 = vmul.f32 %v2930, %v2932
        %v2934 = vadd.f32 %v2930, %v2933
        %vm2935 = vweird.f32 %v2702
        %vm2936 = vweird.f32 %v2930
        %vm2937 = vmor %vm2935, %vm2936
        %v2938 = vsel %vm2937, %v2930, %v2934
        %v2939 = vand.u32 2147483647, %v2702
        %vm2940 = vcmp.eq.f32.partialorder %v2939, 8.507059e+37
        %v2941 = vand.u32 %v2702, 2147483648
        %v2942 = vor.u32 1.1754944e-38, %v2941
        %v2943 = vsel %vm2940, %v2942, %v2938
        %v2944 = vmul.f32 1.0, %v2943
        %v2945 = vrcp.pop %v2703
        %v2946 = vmul.f32 %v2703, %v2945
        %v2947 = vsub.f32 1.0, %v2946
        %v2948 = vmul.f32 %v2945, %v2947
        %v2949 = vadd.f32 %v2945, %v2948
        %vm2950 = vweird.f32 %v2703
        %vm2951 = vweird.f32 %v2945
        %vm2952 = vmor %vm2950, %vm2951
        %v2953 = vsel %vm2952, %v2945, %v2949
        %v2954 = vand.u32 2147483647, %v2703
        %vm2955 = vcmp.eq.f32.partialorder %v2954, 8.507059e+37
        %v2956 = vand.u32 %v2703, 2147483648
        %v2957 = vor.u32 1.1754944e-38, %v2956
        %v2958 = vsel %vm2955, %v2957, %v2953
        %v2959 = vmul.f32 1.0, %v2958
        %v2960 = vrcp.pop %v2704
        %v2961 = vmul.f32 %v2704, %v2960
        %v2962 = vsub.f32 1.0, %v2961
        %v2963 = vmul.f32 %v2960, %v2962
        %v2964 = vadd.f32 %v2960, %v2963
        %vm2965 = vweird.f32 %v2704
        %vm2966 = vweird.f32 %v2960
        %vm2967 = vmor %vm2965, %vm2966
        %v2968 = vsel %vm2967, %v2960, %v2964
        %v2969 = vand.u32 2147483647, %v2704
        %vm2970 = vcmp.eq.f32.partialorder %v2969, 8.507059e+37
        %v2971 = vand.u32 %v2704, 2147483648
        %v2972 = vor.u32 1.1754944e-38, %v2971
        %v2973 = vsel %vm2970, %v2972, %v2968
        %v2974 = vmul.f32 1.0, %v2973
        %v2975 = vrcp.pop %v2705
        %v2976 = vmul.f32 %v2705, %v2975
        %v2977 = vsub.f32 1.0, %v2976
        %v2978 = vmul.f32 %v2975, %v2977
        %v2979 = vadd.f32 %v2975, %v2978
        %vm2980 = vweird.f32 %v2705
        %vm2981 = vweird.f32 %v2975
        %vm2982 = vmor %vm2980, %vm2981
        %v2983 = vsel %vm2982, %v2975, %v2979
        %v2984 = vand.u32 2147483647, %v2705
        %vm2985 = vcmp.eq.f32.partialorder %v2984, 8.507059e+37
        %v2986 = vand.u32 %v2705, 2147483648
        %v2987 = vor.u32 1.1754944e-38, %v2986
        %v2988 = vsel %vm2985, %v2987, %v2983
        %v2989 = vmul.f32 1.0, %v2988
        %v2990 = vrcp.pop %v2706
        %v2991 = vmul.f32 %v2706, %v2990
        %v2992 = vsub.f32 1.0, %v2991
        %v2993 = vmul.f32 %v2990, %v2992
        %v2994 = vadd.f32 %v2990, %v2993
        %vm2995 = vweird.f32 %v2706
        %vm2996 = vweird.f32 %v2990
        %vm2997 = vmor %vm2995, %vm2996
        %v2998 = vsel %vm2997, %v2990, %v2994
        %v2999 = vand.u32 2147483647, %v2706
        %vm3000 = vcmp.eq.f32.partialorder %v2999, 8.507059e+37
        %v3001 = vand.u32 %v2706, 2147483648
        %v3002 = vor.u32 1.1754944e-38, %v3001
        %v3003 = vsel %vm3000, %v3002, %v2998
        %v3004 = vmul.f32 1.0, %v3003
        %v3005 = vrcp.pop %v2707
        %v3006 = vmul.f32 %v2707, %v3005
        %v3007 = vsub.f32 1.0, %v3006
        %v3008 = vmul.f32 %v3005, %v3007
        %v3009 = vadd.f32 %v3005, %v3008
        %vm3010 = vweird.f32 %v2707
        %vm3011 = vweird.f32 %v3005
        %vm3012 = vmor %vm3010, %vm3011
        %v3013 = vsel %vm3012, %v3005, %v3009
        %v3014 = vand.u32 2147483647, %v2707
        %vm3015 = vcmp.eq.f32.partialorder %v3014, 8.507059e+37
        %v3016 = vand.u32 %v2707, 2147483648
        %v3017 = vor.u32 1.1754944e-38, %v3016
        %v3018 = vsel %vm3015, %v3017, %v3013
        %v3019 = vmul.f32 1.0, %v3018
        %v3020 = vrcp.pop %v2708
        %v3021 = vmul.f32 %v2708, %v3020
        %v3022 = vsub.f32 1.0, %v3021
        %v3023 = vmul.f32 %v3020, %v3022
        %v3024 = vadd.f32 %v3020, %v3023
        %vm3025 = vweird.f32 %v2708
        %vm3026 = vweird.f32 %v3020
        %vm3027 = vmor %vm3025, %vm3026
        %v3028 = vsel %vm3027, %v3020, %v3024
        %v3029 = vand.u32 2147483647, %v2708
        %vm3030 = vcmp.eq.f32.partialorder %v3029, 8.507059e+37
        %v3031 = vand.u32 %v2708, 2147483648
        %v3032 = vor.u32 1.1754944e-38, %v3031
        %v3033 = vsel %vm3030, %v3032, %v3028
        %v3034 = vmul.f32 1.0, %v3033
        %v3035 = vrcp.pop %v2709
        %v3036 = vmul.f32 %v2709, %v3035
        %v3037 = vsub.f32 1.0, %v3036
        %v3038 = vmul.f32 %v3035, %v3037
        %v3039 = vadd.f32 %v3035, %v3038
        %vm3040 = vweird.f32 %v2709
        %vm3041 = vweird.f32 %v3035
        %vm3042 = vmor %vm3040, %vm3041
        %v3043 = vsel %vm3042, %v3035, %v3039
        %v3044 = vand.u32 2147483647, %v2709
        %vm3045 = vcmp.eq.f32.partialorder %v3044, 8.507059e+37
        %v3046 = vand.u32 %v2709, 2147483648
        %v3047 = vor.u32 1.1754944e-38, %v3046
        %v3048 = vsel %vm3045, %v3047, %v3043
        %v3049 = vmul.f32 1.0, %v3048
        %v3050 = vrcp.pop %v2710
        %v3051 = vmul.f32 %v2710, %v3050
        %v3052 = vsub.f32 1.0, %v3051
        %v3053 = vmul.f32 %v3050, %v3052
        %v3054 = vadd.f32 %v3050, %v3053
        %vm3055 = vweird.f32 %v2710
        %vm3056 = vweird.f32 %v3050
        %vm3057 = vmor %vm3055, %vm3056
        %v3058 = vsel %vm3057, %v3050, %v3054
        %v3059 = vand.u32 2147483647, %v2710
        %vm3060 = vcmp.eq.f32.partialorder %v3059, 8.507059e+37
        %v3061 = vand.u32 %v2710, 2147483648
        %v3062 = vor.u32 1.1754944e-38, %v3061
        %v3063 = vsel %vm3060, %v3062, %v3058
        %v3064 = vmul.f32 1.0, %v3063
        %v3065 = vrcp.pop %v2711
        %v3066 = vmul.f32 %v2711, %v3065
        %v3067 = vsub.f32 1.0, %v3066
        %v3068 = vmul.f32 %v3065, %v3067
        %v3069 = vadd.f32 %v3065, %v3068
        %vm3070 = vweird.f32 %v2711
        %vm3071 = vweird.f32 %v3065
        %vm3072 = vmor %vm3070, %vm3071
        %v3073 = vsel %vm3072, %v3065, %v3069
        %v3074 = vand.u32 2147483647, %v2711
        %vm3075 = vcmp.eq.f32.partialorder %v3074, 8.507059e+37
        %v3076 = vand.u32 %v2711, 2147483648
        %v3077 = vor.u32 1.1754944e-38, %v3076
        %v3078 = vsel %vm3075, %v3077, %v3073
        %v3079 = vmul.f32 1.0, %v3078
        %v3080 = vrcp.pop %v2712
        %v3081 = vmul.f32 %v2712, %v3080
        %v3082 = vsub.f32 1.0, %v3081
        %v3083 = vmul.f32 %v3080, %v3082
        %v3084 = vadd.f32 %v3080, %v3083
        %vm3085 = vweird.f32 %v2712
        %vm3086 = vweird.f32 %v3080
        %vm3087 = vmor %vm3085, %vm3086
        %v3088 = vsel %vm3087, %v3080, %v3084
        %v3089 = vand.u32 2147483647, %v2712
        %vm3090 = vcmp.eq.f32.partialorder %v3089, 8.507059e+37
        %v3091 = vand.u32 %v2712, 2147483648
        %v3092 = vor.u32 1.1754944e-38, %v3091
        %v3093 = vsel %vm3090, %v3092, %v3088
        %v3094 = vmul.f32 1.0, %v3093
        %v3095 = vrcp.pop %v2713
        %v3096 = vmul.f32 %v2713, %v3095
        %v3097 = vsub.f32 1.0, %v3096
        %v3098 = vmul.f32 %v3095, %v3097
        %v3099 = vadd.f32 %v3095, %v3098
        %vm3100 = vweird.f32 %v2713
        %vm3101 = vweird.f32 %v3095
        %vm3102 = vmor %vm3100, %vm3101
        %v3103 = vsel %vm3102, %v3095, %v3099
        %v3104 = vand.u32 2147483647, %v2713
        %vm3105 = vcmp.eq.f32.partialorder %v3104, 8.507059e+37
        %v3106 = vand.u32 %v2713, 2147483648
        %v3107 = vor.u32 1.1754944e-38, %v3106
        %v3108 = vsel %vm3105, %v3107, %v3103
        %v3109 = vmul.f32 1.0, %v3108
        %v3110 = vrcp.pop %v2714
        %v3111 = vmul.f32 %v2714, %v3110
        %v3112 = vsub.f32 1.0, %v3111
        %v3113 = vmul.f32 %v3110, %v3112
        %v3114 = vadd.f32 %v3110, %v3113
        %vm3115 = vweird.f32 %v2714
        %vm3116 = vweird.f32 %v3110
        %vm3117 = vmor %vm3115, %vm3116
        %v3118 = vsel %vm3117, %v3110, %v3114
        %v3119 = vand.u32 2147483647, %v2714
        %vm3120 = vcmp.eq.f32.partialorder %v3119, 8.507059e+37
        %v3121 = vand.u32 %v2714, 2147483648
        %v3122 = vor.u32 1.1754944e-38, %v3121
        %v3123 = vsel %vm3120, %v3122, %v3118
        %v3124 = vmul.f32 1.0, %v3123
        %v3125 = vrcp.pop %v2715
        %v3126 = vmul.f32 %v2715, %v3125
        %v3127 = vsub.f32 1.0, %v3126
        %v3128 = vmul.f32 %v3125, %v3127
        %v3129 = vadd.f32 %v3125, %v3128
        %vm3130 = vweird.f32 %v2715
        %vm3131 = vweird.f32 %v3125
        %vm3132 = vmor %vm3130, %vm3131
        %v3133 = vsel %vm3132, %v3125, %v3129
        %v3134 = vand.u32 2147483647, %v2715
        %vm3135 = vcmp.eq.f32.partialorder %v3134, 8.507059e+37
        %v3136 = vand.u32 %v2715, 2147483648
        %v3137 = vor.u32 1.1754944e-38, %v3136
        %v3138 = vsel %vm3135, %v3137, %v3133
        %v3139 = vmul.f32 1.0, %v3138
        %v3140 = vrcp.pop %v2716
        %v3141 = vmul.f32 %v2716, %v3140
        %v3142 = vsub.f32 1.0, %v3141
        %v3143 = vmul.f32 %v3140, %v3142
        %v3144 = vadd.f32 %v3140, %v3143
        %vm3145 = vweird.f32 %v2716
        %vm3146 = vweird.f32 %v3140
        %vm3147 = vmor %vm3145, %vm3146
        %v3148 = vsel %vm3147, %v3140, %v3144
        %v3149 = vand.u32 2147483647, %v2716
        %vm3150 = vcmp.eq.f32.partialorder %v3149, 8.507059e+37
        %v3151 = vand.u32 %v2716, 2147483648
        %v3152 = vor.u32 1.1754944e-38, %v3151
        %v3153 = vsel %vm3150, %v3152, %v3148
        %v3154 = vmul.f32 1.0, %v3153
        %v3155 = vrcp.pop %v2717
        %v3156 = vmul.f32 %v2717, %v3155
        %v3157 = vsub.f32 1.0, %v3156
        %v3158 = vmul.f32 %v3155, %v3157
        %v3159 = vadd.f32 %v3155, %v3158
        %vm3160 = vweird.f32 %v2717
        %vm3161 = vweird.f32 %v3155
        %vm3162 = vmor %vm3160, %vm3161
        %v3163 = vsel %vm3162, %v3155, %v3159
        %v3164 = vand.u32 2147483647, %v2717
        %vm3165 = vcmp.eq.f32.partialorder %v3164, 8.507059e+37
        %v3166 = vand.u32 %v2717, 2147483648
        %v3167 = vor.u32 1.1754944e-38, %v3166
        %v3168 = vsel %vm3165, %v3167, %v3163
        %v3169 = vmul.f32 1.0, %v3168
        %v3170 = vrcp.pop %v2718
        %v3171 = vmul.f32 %v2718, %v3170
        %v3172 = vsub.f32 1.0, %v3171
        %v3173 = vmul.f32 %v3170, %v3172
        %v3174 = vadd.f32 %v3170, %v3173
        %vm3175 = vweird.f32 %v2718
        %vm3176 = vweird.f32 %v3170
        %vm3177 = vmor %vm3175, %vm3176
        %v3178 = vsel %vm3177, %v3170, %v3174
        %v3179 = vand.u32 2147483647, %v2718
        %vm3180 = vcmp.eq.f32.partialorder %v3179, 8.507059e+37
        %v3181 = vand.u32 %v2718, 2147483648
        %v3182 = vor.u32 1.1754944e-38, %v3181
        %v3183 = vsel %vm3180, %v3182, %v3178
        %v3184 = vmul.f32 1.0, %v3183
        %v3185 = vrcp.pop %v2719
        %v3186 = vmul.f32 %v2719, %v3185
        %v3187 = vsub.f32 1.0, %v3186
        %v3188 = vmul.f32 %v3185, %v3187
        %v3189 = vadd.f32 %v3185, %v3188
        %vm3190 = vweird.f32 %v2719
        %vm3191 = vweird.f32 %v3185
        %vm3192 = vmor %vm3190, %vm3191
        %v3193 = vsel %vm3192, %v3185, %v3189
        %v3194 = vand.u32 2147483647, %v2719
        %vm3195 = vcmp.eq.f32.partialorder %v3194, 8.507059e+37
        %v3196 = vand.u32 %v2719, 2147483648
        %v3197 = vor.u32 1.1754944e-38, %v3196
        %v3198 = vsel %vm3195, %v3197, %v3193
        %v3199 = vmul.f32 1.0, %v3198
        %v3200 = vmul.f32 %v2560, %v2734
        %v3201 = vmul.f32 %v2561, %v2749
        %v3202 = vmul.f32 %v2562, %v2764
        %v3203 = vmul.f32 %v2563, %v2779
        %v3204 = vmul.f32 %v2564, %v2794
        %v3205 = vmul.f32 %v2565, %v2809
        %v3206 = vmul.f32 %v2566, %v2824
        %v3207 = vmul.f32 %v2567, %v2839
        %v3208 = vmul.f32 %v2568, %v2854
        %v3209 = vmul.f32 %v2569, %v2869
        %v3210 = vmul.f32 %v2570, %v2884
        %v3211 = vmul.f32 %v2571, %v2899
        %v3212 = vmul.f32 %v2572, %v2914
        %v3213 = vmul.f32 %v2573, %v2929
        %v3214 = vmul.f32 %v2574, %v2944
        %v3215 = vmul.f32 %v2575, %v2959
        %v3216 = vmul.f32 %v2576, %v2974
        %v3217 = vmul.f32 %v2577, %v2989
        %v3218 = vmul.f32 %v2578, %v3004
        %v3219 = vmul.f32 %v2579, %v3019
        %v3220 = vmul.f32 %v2580, %v3034
        %v3221 = vmul.f32 %v2581, %v3049
        %v3222 = vmul.f32 %v2582, %v3064
        %v3223 = vmul.f32 %v2583, %v3079
        %v3224 = vmul.f32 %v2584, %v3094
        %v3225 = vmul.f32 %v2585, %v3109
        %v3226 = vmul.f32 %v2586, %v3124
        %v3227 = vmul.f32 %v2587, %v3139
        %v3228 = vmul.f32 %v2588, %v3154
        %v3229 = vmul.f32 %v2589, %v3169
        %v3230 = vmul.f32 %v2590, %v3184
        %v3231 = vmul.f32 %v2591, %v3199
        %v3232 = vmul.f32 %v3200, 0.90909094
        %v3233 = vmul.f32 %v3201, 0.90909094
        %v3234 = vmul.f32 %v3202, 0.90909094
        %v3235 = vmul.f32 %v3203, 0.90909094
        %v3236 = vmul.f32 %v3204, 0.90909094
        %v3237 = vmul.f32 %v3205, 0.90909094
        %v3238 = vmul.f32 %v3206, 0.90909094
        %v3239 = vmul.f32 %v3207, 0.90909094
        %v3240 = vmul.f32 %v3208, 0.90909094
        %v3241 = vmul.f32 %v3209, 0.90909094
        %v3242 = vmul.f32 %v3210, 0.90909094
        %v3243 = vmul.f32 %v3211, 0.90909094
        %v3244 = vmul.f32 %v3212, 0.90909094
        %v3245 = vmul.f32 %v3213, 0.90909094
        %v3246 = vmul.f32 %v3214, 0.90909094
        %v3247 = vmul.f32 %v3215, 0.90909094
        %v3248 = vmul.f32 %v3216, 0.90909094
        %v3249 = vmul.f32 %v3217, 0.90909094
        %v3250 = vmul.f32 %v3218, 0.90909094
        %v3251 = vmul.f32 %v3219, 0.90909094
        %v3252 = vmul.f32 %v3220, 0.90909094
        %v3253 = vmul.f32 %v3221, 0.90909094
        %v3254 = vmul.f32 %v3222, 0.90909094
        %v3255 = vmul.f32 %v3223, 0.90909094
        %v3256 = vmul.f32 %v3224, 0.90909094
        %v3257 = vmul.f32 %v3225, 0.90909094
        %v3258 = vmul.f32 %v3226, 0.90909094
        %v3259 = vmul.f32 %v3227, 0.90909094
        %v3260 = vmul.f32 %v3228, 0.90909094
        %v3261 = vmul.f32 %v3229, 0.90909094
        %v3262 = vmul.f32 %v3230, 0.90909094
        %v3263 = vmul.f32 %v3231, 0.90909094
        %vm3264 = vcmask 130048
        %3265 = vst.msk [vmem:[%s163] sm:$0xff] %vm3264, %v3232
        %3266 = vst.msk [vmem:[%s163 + $0x8] sm:$0xff] %vm3264, %v3233
        %3267 = vst.msk [vmem:[%s163 + $0x10] sm:$0xff] %vm3264, %v3234
        %3268 = vst.msk [vmem:[%s163 + $0x18] sm:$0xff] %vm3264, %v3235
        %3269 = vst.msk [vmem:[%s163 + $0x20] sm:$0xff] %vm3264, %v3236
        %3270 = vst.msk [vmem:[%s163 + $0x28] sm:$0xff] %vm3264, %v3237
        %3271 = vst.msk [vmem:[%s163 + $0x30] sm:$0xff] %vm3264, %v3238
        %3272 = vst.msk [vmem:[%s163 + $0x38] sm:$0xff] %vm3264, %v3239
        %3273 = vst.msk [vmem:[%s163 + $0x40] sm:$0xff] %vm3264, %v3240
        %3274 = vst.msk [vmem:[%s163 + $0x48] sm:$0xff] %vm3264, %v3241
        %3275 = vst.msk [vmem:[%s163 + $0x50] sm:$0xff] %vm3264, %v3242
        %3276 = vst.msk [vmem:[%s163 + $0x58] sm:$0xff] %vm3264, %v3243
        %3277 = vst.msk [vmem:[%s163 + $0x60] sm:$0xff] %vm3264, %v3244
        %3278 = vst.msk [vmem:[%s163 + $0x68] sm:$0xff] %vm3264, %v3245
        %3279 = vst.msk [vmem:[%s163 + $0x70] sm:$0xff] %vm3264, %v3246
        %3280 = vst.msk [vmem:[%s163 + $0x78] sm:$0xff] %vm3264, %v3247
        %3281 = vst.msk [vmem:[%s163 + $0x80] sm:$0xff] %vm3264, %v3248
        %3282 = vst.msk [vmem:[%s163 + $0x88] sm:$0xff] %vm3264, %v3249
        %3283 = vst.msk [vmem:[%s163 + $0x90] sm:$0xff] %vm3264, %v3250
        %3284 = vst.msk [vmem:[%s163 + $0x98] sm:$0xff] %vm3264, %v3251
        %3285 = vst.msk [vmem:[%s163 + $0xa0] sm:$0xff] %vm3264, %v3252
        %3286 = vst.msk [vmem:[%s163 + $0xa8] sm:$0xff] %vm3264, %v3253
        %3287 = vst.msk [vmem:[%s163 + $0xb0] sm:$0xff] %vm3264, %v3254
        %3288 = vst.msk [vmem:[%s163 + $0xb8] sm:$0xff] %vm3264, %v3255
        %3289 = vst.msk [vmem:[%s163 + $0xc0] sm:$0xff] %vm3264, %v3256
        %3290 = vst.msk [vmem:[%s163 + $0xc8] sm:$0xff] %vm3264, %v3257
        %3291 = vst.msk [vmem:[%s163 + $0xd0] sm:$0xff] %vm3264, %v3258
        %3292 = vst.msk [vmem:[%s163 + $0xd8] sm:$0xff] %vm3264, %v3259
        %3293 = vst.msk [vmem:[%s163 + $0xe0] sm:$0xff] %vm3264, %v3260
        %3294 = vst.msk [vmem:[%s163 + $0xe8] sm:$0xff] %vm3264, %v3261
        %3295 = vst.msk [vmem:[%s163 + $0xf0] sm:$0xff] %vm3264, %v3262
        %3296 = vst.msk [vmem:[%s163 + $0xf8] sm:$0xff] %vm3264, %v3263
        %s3297 = sand.u32 %s93, 1
        %s3298 = scalar_lea.sflag [#allocation4], %s3297
        %s3299 = sand.u32 %s93, 1
        %s3300 = smul.addr %s3299, 256
        %s3301 = scalar_lea.vmem [#allocation3], %s3300
        // Predicated region
        $region33: #{tpu_custom_call.1} parent=31 // pred_check
          %p3302 = pneg %p103
        $region34: #{tpu_custom_call.1} parent=31 // pred_check_branch
          %3304 = sbr.rel (%p3302) target = $region36
        $region35: #{tpu_custom_call.1} parent=31 // pred_region
          %3306 = vsyncadd %s3298, 0
          %s3307 = smul.addr %s17, 32
          %s3308 = smul.addr %s3307, 8
          %s3309 = scalar_lea.hbm %s3, %s3308
          %s3310 = sshll.u32 %s3301, 4
          %s3311 = int_to_ptr.vmem [resolvable:$true] %s3310
          %s3312 = sshll.u32 %s3309, 4
          %s3313 = int_to_ptr.hbm [resolvable:$true] %s3312
          %3318 = dma.vmem_to_hbm [thread:$0]  %s3311, 4096, %s3313, %s3298, 128, 128, 8
        $region36: #{tpu_custom_call.1} parent=31 // pred_fallthru
          _
      $region32: #{tpu_custom_call.1} parent=5 // pred_fallthru
        _
      %p3319 = scmp.le.s32.totalorder 2, %s12
      // Predicated region
      $region37: #{tpu_custom_call.1} parent=5 // pred_check
        %p3320 = pneg %p3319
      $region38: #{tpu_custom_call.1} parent=5 // pred_check_branch
        %3322 = sbr.rel (%p3320) target = $region40
      $region39: #{tpu_custom_call.1} parent=5 // pred_region
        %s3323 = ssub.s32 %s12, 2
        // Predicated region
        $region41: #{tpu_custom_call.1} parent=39 // pred_check
          %p3324 = pneg %p109
        $region42: #{tpu_custom_call.1} parent=39 // pred_check_branch
          %3326 = sbr.rel (%p3324) target = $region44
        $region43: #{tpu_custom_call.1} parent=39 // pred_region
          %s3327 = sand.u32 %s94, 1
          %s3328 = scalar_lea.sflag [#allocation4], %s3327
          %s3329 = sand.u32 %s94, 1
          %s3330 = smul.addr %s3329, 256
          %s3331 = scalar_lea.vmem [#allocation3], %s3330
          %3333 = dma.done %s3328, 4096
        $region44: #{tpu_custom_call.1} parent=39 // pred_fallthru
          _
      $region40: #{tpu_custom_call.1} parent=5 // pred_fallthru
        _
    $region6: #{tpu_custom_call.1} parent=1 // loop_footer
      %s16 = sadd.s32 1, %s12
    $region7: #{tpu_custom_call.1} parent=1 // loop_footer_branch
      %11 = sbr.rel target = $region3
    $region8: #{tpu_custom_call.1} parent=1 // loop_exit
      _
    %3334 = vsyncpa [#allocation4], 1
    %s3335 = scalar_lea.sflag [#allocation4], 1
    %3336 = vsyncpa %s3335, 1

</llo_original>
